<compile_context>
chip_gen: v5e
topology: v5e:2x2
jax: 0.10.0
libtpu: 0.0.40
codegen_flags: <defaults>
</compile_context>

<pallas_src>
from functools import partial

import jax
import jax.numpy as jnp
from jax.experimental import pallas as pl
from jax.experimental.pallas import tpu as pltpu


def _beta_vae_kernel(z_pad, tile_n,
                     scal_ref, x_ref, wenc_ref, benc_ref, eps_ref, wdec_ref, bdec_ref,
                     xrec_ref, loss_ref, recon_ref, kl_ref,
                     z_scr, sq_scr, kld_scr):
    """Grid axis 0 tiles the decoder output dimension D."""
    j = pl.program_id(0)

    # ---- encoder + reparametrize + KL: run once, keep z resident in VMEM scratch ----
    @pl.when(j == 0)
    def _():
        x_bf = x_ref[...].astype(jnp.bfloat16)                     # hoisted bf16 cast
        dist = jnp.dot(x_bf, wenc_ref[...],
                       preferred_element_type=jnp.float32) + benc_ref[...]  # (B, 2*Zp) f32
        mu = dist[:, :z_pad]                                        # (B, Zp)
        logvar = dist[:, z_pad:]                                    # (B, Zp)

        std = jnp.exp(0.5 * logvar)                                 # reparametrize_BH
        z_scr[...] = (mu + std * eps_ref[...]).astype(jnp.bfloat16)  # bf16 decoder operand

        var = std * std                                             # = exp(logvar), no 2nd exp
        klds = -0.5 * (1.0 + logvar - mu * mu - var)                # padded cols contribute 0
        kld_scr[0] = jnp.sum(klds)                                  # one-time scalar reduce
        sq_scr[...] = jnp.zeros_like(sq_scr)                        # recon partial accumulator

    # ---- decoder: one lane-dense D tile per grid step (pipelined w_dec/b_dec/x_recon) ----
    x_recon = jnp.dot(z_scr[...], wdec_ref[...],
                      preferred_element_type=jnp.float32) + bdec_ref[...]    # (B, TN) f32
    xrec_ref[...] = x_recon.astype(xrec_ref.dtype)                  # bf16 writeback

    start = pl.multiple_of(j * tile_n, 128)                         # aligned slice of resident x
    diff = x_recon - x_ref[:, pl.ds(start, tile_n)]                 # no second x stream
    sq_scr[...] += diff * diff                                      # VPU add only; no per-step reduce

    # ---- finalize scalar losses on the last tile ----
    @pl.when(j == pl.num_programs(0) - 1)
    def _():
        beta = scal_ref[0]
        inv_b = scal_ref[1]
        recon = jnp.sum(sq_scr[...]) * inv_b                        # mse 'sum' / batch
        total_kld = kld_scr[0] * inv_b                              # klds.sum(1).mean(0)
        recon_ref[0] = recon
        kl_ref[0] = total_kld
        loss_ref[0] = recon + beta * total_kld


def init_params(key, in_dim, z_dim):
    """Deterministic synthetic parameters for the linear encoder/decoder."""
    k1, k2, k3, k4 = jax.random.split(key, 4)
    w_enc = jax.random.normal(k1, (in_dim, 2 * z_dim), jnp.float32) / jnp.sqrt(in_dim)
    b_enc = 0.01 * jax.random.normal(k2, (1, 2 * z_dim), jnp.float32)
    w_dec = jax.random.normal(k3, (z_dim, in_dim), jnp.float32) / jnp.sqrt(z_dim)
    b_dec = 0.01 * jax.random.normal(k4, (1, in_dim), jnp.float32)
    return {"w_enc": w_enc, "b_enc": b_enc, "w_dec": w_dec, "b_dec": b_dec}


def _pick_tile_n(D, cap):
    """Largest 128-multiple divisor of D up to `cap`; single tile if D is small."""
    if D <= cap:
        return D
    t = (min(cap, D) // 128) * 128
    while t >= 128:
        if D % t == 0:
            return t
        t -= 128
    return D  # D has no 128-multiple divisor <= cap: fall back to a single tile


def beta_vae_forward(x, params, eps, beta, *, tile_n_cap=2048):
    """Padding / fusing / casting glue in plain JAX; hot path is one Pallas kernel."""
    B, C, H, W = x.shape
    D = C * H * W
    Z = params["w_dec"].shape[0]
    Zp = max(128, ((Z + 127) // 128) * 128)           # lane-dense latent dimension

    tile_n = _pick_tile_n(D, tile_n_cap)
    n_tiles = D // tile_n

    x_flat = x.reshape(B, D).astype(jnp.float32)

    # Fused + lane-padded encoder weights: cols [0:Z] = mu weights, [Zp:Zp+Z] = logvar
    # weights; padded columns are exactly zero so padded latents get mu=0, logvar=0
    # (=> 0 KLD contribution) and, with eps padded to 0, z_pad = 0.
    w_enc = params["w_enc"].astype(jnp.float32)
    b_enc = params["b_enc"].astype(jnp.float32).reshape(1, 2 * Z)
    w_enc_p = jnp.zeros((D, 2 * Zp), jnp.float32)
    w_enc_p = w_enc_p.at[:, :Z].set(w_enc[:, :Z]).at[:, Zp:Zp + Z].set(w_enc[:, Z:])
    b_enc_p = jnp.zeros((1, 2 * Zp), jnp.float32)
    b_enc_p = b_enc_p.at[:, :Z].set(b_enc[:, :Z]).at[:, Zp:Zp + Z].set(b_enc[:, Z:])

    eps_p = jnp.zeros((B, Zp), jnp.float32).at[:, :Z].set(eps.astype(jnp.float32))

    w_dec_p = jnp.zeros((Zp, D), jnp.float32).at[:Z, :].set(params["w_dec"].astype(jnp.float32))
    b_dec = params["b_dec"].astype(jnp.float32).reshape(1, D)

    # bf16 matmul operands (f32 accumulation in-kernel): half the weight DMA bytes.
    w_enc_bf = w_enc_p.astype(jnp.bfloat16)
    w_dec_bf = w_dec_p.astype(jnp.bfloat16)

    # beta / 1/B as runtime SMEM scalars: changing them does not trigger recompilation.
    scal = jnp.array([float(beta), 1.0 / float(B)], jnp.float32)

    kernel = partial(_beta_vae_kernel, Zp, tile_n)

    cost = pl.CostEstimate(
        flops=2 * B * D * (2 * Zp) + 2 * B * Zp * D,
        transcendentals=B * Zp,
        bytes_accessed=(x_flat.size * 4                      # x read once
                        + w_enc_bf.size * 2 + w_dec_bf.size * 2
                        + b_enc_p.size * 4 + b_dec.size * 4 + eps_p.size * 4
                        + B * D * 2),                        # bf16 x_recon writeback
    )

    # Re-derived VMEM budget (v7x: 64 MiB physical, 32 MiB scoped default).
    resident_bytes = (x_flat.size * 4 + w_enc_bf.size * 2
                      + b_enc_p.size * 4 + eps_p.size * 4)
    tile_bytes = 2 * (Zp * tile_n * 2 + tile_n * 4 + B * tile_n * 2)   # double-buffered tiles
    scratch_bytes = B * Zp * 2 + B * tile_n * 4
    vmem_limit = int(min(64 * 1024 * 1024,
                         max(32 * 1024 * 1024,
                             2 * (resident_bytes + tile_bytes + scratch_bytes))))

    def build(resident_mode):
        res_kwargs = {} if resident_mode is None else {"pipeline_mode": resident_mode}
        smem_out = lambda: pl.BlockSpec((1,), lambda j: (0,),
                                        memory_space=pltpu.MemorySpace.SMEM)
        return pl.pallas_call(
            kernel,
            out_shape=(
                jax.ShapeDtypeStruct((B, D), jnp.bfloat16),   # decoded images (bf16 writeback)
                jax.ShapeDtypeStruct((1,), jnp.float32),      # beta-VAE loss
                jax.ShapeDtypeStruct((1,), jnp.float32),      # reconstruction loss
                jax.ShapeDtypeStruct((1,), jnp.float32),      # total KLD
            ),
            grid=(n_tiles,),
            in_specs=[
                pl.BlockSpec((2,), lambda j: (0,),
                             memory_space=pltpu.MemorySpace.SMEM),          # [beta, 1/B]
                pl.BlockSpec((B, D), lambda j: (0, 0), **res_kwargs),       # x (resident; enc + recon slice)
                pl.BlockSpec((D, 2 * Zp), lambda j: (0, 0), **res_kwargs),  # fused encoder weights
                pl.BlockSpec((1, 2 * Zp), lambda j: (0, 0), **res_kwargs),  # fused encoder bias
                pl.BlockSpec((B, Zp), lambda j: (0, 0), **res_kwargs),      # eps (padded)
                pl.BlockSpec((Zp, tile_n), lambda j: (0, j)),               # decoder weight tile (pipelined)
                pl.BlockSpec((1, tile_n), lambda j: (0, j)),                # decoder bias tile
            ],
            out_specs=(
                pl.BlockSpec((B, tile_n), lambda j: (0, j)),                # x_recon tile (lane-dense)
                smem_out(), smem_out(), smem_out(),
            ),
            scratch_shapes=[
                pltpu.VMEM((B, Zp), jnp.bfloat16),       # z, resident across D tiles
                pltpu.VMEM((B, tile_n), jnp.float32),    # recon squared-error partials (VPU-only add)
                pltpu.SMEM((1,), jnp.float32),           # total KLD (computed once at j==0)
            ],
            compiler_params=pltpu.CompilerParams(
                dimension_semantics=("arbitrary",),       # scratch-carried accumulators
                vmem_limit_bytes=vmem_limit,
            ),
            cost_estimate=cost,
        )

    args = (scal, x_flat, w_enc_bf, b_enc_p, eps_p, w_dec_bf, b_dec)
    try:
        # Primary path: resident inputs single-buffered (constant index_map -> 2nd buffer is waste).
        x_recon, loss, recon, total_kld = build(pl.Buffered(1))(*args)
    except Exception:
        # Fallback: default double-buffering if Buffered(1) is rejected at top level.
        x_recon, loss, recon, total_kld = build(None)(*args)

    return {
        "loss": loss,                               # shape (1,), = recon + beta * total_kld
        "-log p(x|z)": recon[0],                    # scalar
        "kl": total_kld,                            # shape (1,)
        "decoded_imgs": x_recon.reshape(B, C, H, W),  # bf16 (halved HBM writeback)
    }


def _reference_forward(x, params, eps, beta):
    """Pure-JAX fp32 reference of the BetaVAE_H forward (loss_reduction='sum')."""
    B = x.shape[0]
    xf = x.reshape(B, -1).astype(jnp.float32)
    Z = params["w_dec"].shape[0]
    dist = xf @ params["w_enc"] + params["b_enc"].reshape(1, -1)
    mu, logvar = dist[:, :Z], dist[:, Z:]
    std = jnp.exp(0.5 * logvar)
    z = mu + std * eps
    x_recon = z @ params["w_dec"] + params["b_dec"].reshape(1, -1)
    recon = jnp.sum((x_recon - xf) ** 2) / B
    klds = -0.5 * (1.0 + logvar - mu ** 2 - jnp.exp(logvar))
    total_kld = jnp.sum(klds) / B
    loss = recon + beta * total_kld
    return loss, recon, total_kld


if __name__ == "__main__":
    # Small, module-consistent shapes: batch=2, channels=4, spatial=16, latent_dim=32.
    B, C, H, W = 2, 4, 16, 16
    Z_DIM = 32
    BETA = 4.0  # loss_reduction = 'sum' (the only well-defined path in the reference)

    key = jax.random.PRNGKey(0)
    k_x, k_params, k_eps = jax.random.split(key, 3)

    x = jax.random.normal(k_x, (B, C, H, W), jnp.float32)
    params = init_params(k_params, C * H * W, Z_DIM)
    # Deterministic reparametrization noise (std.data.new(...).normal_() in PyTorch).
    eps = jax.random.normal(k_eps, (B, Z_DIM), jnp.float32)

    out = beta_vae_forward(x, params, eps, BETA)
    jax.block_until_ready(out)

    assert out["loss"].shape == (1,)
    assert out["kl"].shape == (1,)
    assert out["-log p(x|z)"].shape == ()
    assert out["decoded_imgs"].shape == (B, C, H, W)

    # fp32 reference check (loose tolerance: kernel streams bf16 operands).
    ref_loss, ref_recon, ref_kld = _reference_forward(x, params, eps, BETA)
    assert jnp.allclose(out["loss"][0], ref_loss, rtol=1e-1, atol=1.0)
    assert jnp.allclose(out["-log p(x|z)"], ref_recon, rtol=1e-1, atol=1.0)
    assert jnp.allclose(out["kl"][0], ref_kld, rtol=1e-1, atol=1.0)

    print("KERNEL_OK")
</pallas_src>

<mosaic_0001>
module attributes {stable_mosaic.version = 11 : i64} {
  func.func @_beta_vae_kernel(%arg0: i32, %arg1: memref<2xf32, #tpu.memory_space<smem>>, %arg2: memref<2x1024xf32, #tpu.memory_space<vmem>>, %arg3: memref<1024x256xbf16, #tpu.memory_space<vmem>>, %arg4: memref<1x256xf32, #tpu.memory_space<vmem>>, %arg5: memref<2x128xf32, #tpu.memory_space<vmem>>, %arg6: memref<128x1024xbf16, #tpu.memory_space<vmem>>, %arg7: memref<1x1024xf32, #tpu.memory_space<vmem>>, %arg8: memref<2x1024xbf16, #tpu.memory_space<vmem>>, %arg9: memref<1xf32, #tpu.memory_space<smem>>, %arg10: memref<1xf32, #tpu.memory_space<smem>>, %arg11: memref<1xf32, #tpu.memory_space<smem>>, %arg12: memref<2x128xbf16, #tpu.memory_space<vmem>>, %arg13: memref<2x1024xf32, #tpu.memory_space<vmem>>, %arg14: memref<1xf32, #tpu.memory_space<smem>>) attributes {dimension_semantics = [#tpu.dimension_semantics<arbitrary>], iteration_bounds = array<i64: 1>, scalar_prefetch = 0 : i64, scratch_operands = 3 : i64, tpu.core_type = #tpu.core_type<tc>, window_params = [{transform_indices = @transform_0, window_bounds = array<i64: 2>}, {pipeline_mode = #tpu.pipeline_mode<synchronous>, transform_indices = @transform_1, window_bounds = array<i64: 2, 1024>}, {pipeline_mode = #tpu.pipeline_mode<synchronous>, transform_indices = @transform_2, window_bounds = array<i64: 1024, 256>}, {pipeline_mode = #tpu.pipeline_mode<synchronous>, transform_indices = @transform_3, window_bounds = array<i64: 1, 256>}, {pipeline_mode = #tpu.pipeline_mode<synchronous>, transform_indices = @transform_4, window_bounds = array<i64: 2, 128>}, {transform_indices = @transform_5, window_bounds = array<i64: 128, 1024>}, {transform_indices = @transform_6, window_bounds = array<i64: 1, 1024>}, {transform_indices = @transform_7, window_bounds = array<i64: 2, 1024>}, {transform_indices = @transform_8, window_bounds = array<i64: 1>}, {transform_indices = @transform_9, window_bounds = array<i64: 1>}, {transform_indices = @transform_10, window_bounds = array<i64: 1>}]} {
    %c0_i32 = arith.constant 0 : i32
    %0 = arith.cmpi eq, %arg0, %c0_i32 : i32
    %1 = arith.extui %0 : i1 to i32
    %c0_i32_0 = arith.constant 0 : i32
    %2 = arith.cmpi ne, %1, %c0_i32_0 : i32
    scf.if %2 {
      %c0_15 = arith.constant 0 : index
      %c0_16 = arith.constant 0 : index
      %23 = vector.load %arg2[%c0_15, %c0_16] : memref<2x1024xf32, #tpu.memory_space<vmem>>, vector<2x1024xf32>
      %24 = arith.truncf %23 : vector<2x1024xf32> to vector<2x1024xbf16>
      %c0_17 = arith.constant 0 : index
      %c0_18 = arith.constant 0 : index
      %25 = vector.load %arg3[%c0_17, %c0_18] : memref<1024x256xbf16, #tpu.memory_space<vmem>>, vector<1024x256xbf16>
      %cst_19 = arith.constant dense<0.000000e+00> : vector<2x256xf32>
      %26 = tpu.matmul %24, %25, %cst_19 {dimension_numbers = #tpu.dot_dimension_numbers<[1], [0], [0], [1], [0, 0, 1, 1], [], []>} : vector<2x1024xbf16>, vector<1024x256xbf16>, vector<2x256xf32> -> vector<2x256xf32>
      %c0_20 = arith.constant 0 : index
      %c0_21 = arith.constant 0 : index
      %27 = vector.load %arg4[%c0_20, %c0_21] : memref<1x256xf32, #tpu.memory_space<vmem>>, vector<1x256xf32>
      %28 = vector.broadcast %27 : vector<1x256xf32> to vector<2x256xf32>
      %29 = arith.addf %26, %28 : vector<2x256xf32>
      %30 = vector.extract_strided_slice %29 {offsets = [0, 0], sizes = [2, 128], strides = [1, 1]} : vector<2x256xf32> to vector<2x128xf32>
      %31 = vector.extract_strided_slice %29 {offsets = [0, 128], sizes = [2, 128], strides = [1, 1]} : vector<2x256xf32> to vector<2x128xf32>
      %cst_22 = arith.constant 5.000000e-01 : f32
      %32 = vector.broadcast %cst_22 : f32 to vector<2x128xf32>
      %33 = arith.mulf %32, %31 : vector<2x128xf32>
      %34 = math.exp %33 : vector<2x128xf32>
      %c0_23 = arith.constant 0 : index
      %c0_24 = arith.constant 0 : index
      %35 = vector.load %arg5[%c0_23, %c0_24] : memref<2x128xf32, #tpu.memory_space<vmem>>, vector<2x128xf32>
      %36 = arith.mulf %34, %35 : vector<2x128xf32>
      %37 = arith.addf %30, %36 : vector<2x128xf32>
      %38 = arith.truncf %37 : vector<2x128xf32> to vector<2x128xbf16>
      %c0_25 = arith.constant 0 : index
      %c0_26 = arith.constant 0 : index
      %39 = vector.load %arg12[%c0_25, %c0_26] : memref<2x128xbf16, #tpu.memory_space<vmem>>, vector<2x128xbf16>
      tpu.vector_store %arg12[%c0_25, %c0_26], %38 {strides = array<i32>} : memref<2x128xbf16, #tpu.memory_space<vmem>>, vector<2x128xbf16>,
      %40 = arith.mulf %34, %34 : vector<2x128xf32>
      %cst_27 = arith.constant 1.000000e+00 : f32
      %41 = vector.broadcast %cst_27 : f32 to vector<2x128xf32>
      %42 = arith.addf %41, %31 : vector<2x128xf32>
      %43 = arith.mulf %30, %30 : vector<2x128xf32>
      %44 = arith.subf %42, %43 : vector<2x128xf32>
      %45 = arith.subf %44, %40 : vector<2x128xf32>
      %cst_28 = arith.constant -5.000000e-01 : f32
      %46 = vector.broadcast %cst_28 : f32 to vector<2x128xf32>
      %47 = arith.mulf %46, %45 : vector<2x128xf32>
      %48 = vector.shape_cast %47 : vector<2x128xf32> to vector<1x2x128xf32>
      %cst_29 = arith.constant dense<0.000000e+00> : vector<1xf32>
      %49 = vector.multi_reduction <add>, %48, %cst_29 [1, 2] : vector<1x2x128xf32> to vector<1xf32>
      %50 = vector.shape_cast %49 : vector<1xf32> to vector<1x1x1xf32>
      %51 = vector.extract %50[0, 0, 0] : f32 from vector<1x1x1xf32>
      %c0_30 = arith.constant 0 : index
      %52 = memref.load %arg14[%c0_30] : memref<1xf32, #tpu.memory_space<smem>>
      memref.store %51, %arg14[%c0_30] : memref<1xf32, #tpu.memory_space<smem>>
      %cst_31 = arith.constant 0.000000e+00 : f32
      %53 = vector.broadcast %cst_31 : f32 to vector<2x1024xf32>
      %c0_32 = arith.constant 0 : index
      %c0_33 = arith.constant 0 : index
      %54 = vector.load %arg13[%c0_32, %c0_33] : memref<2x1024xf32, #tpu.memory_space<vmem>>, vector<2x1024xf32>
      tpu.vector_store %arg13[%c0_32, %c0_33], %53 {strides = array<i32>} : memref<2x1024xf32, #tpu.memory_space<vmem>>, vector<2x1024xf32>,
    } else {
    }
    %c0 = arith.constant 0 : index
    %c0_1 = arith.constant 0 : index
    %3 = vector.load %arg12[%c0, %c0_1] : memref<2x128xbf16, #tpu.memory_space<vmem>>, vector<2x128xbf16>
    %c0_2 = arith.constant 0 : index
    %c0_3 = arith.constant 0 : index
    %4 = vector.load %arg6[%c0_2, %c0_3] : memref<128x1024xbf16, #tpu.memory_space<vmem>>, vector<128x1024xbf16>
    %cst = arith.constant dense<0.000000e+00> : vector<2x1024xf32>
    %5 = tpu.matmul %3, %4, %cst {dimension_numbers = #tpu.dot_dimension_numbers<[1], [0], [0], [1], [0, 0, 1, 1], [], []>} : vector<2x128xbf16>, vector<128x1024xbf16>, vector<2x1024xf32> -> vector<2x1024xf32>
    %c0_4 = arith.constant 0 : index
    %c0_5 = arith.constant 0 : index
    %6 = vector.load %arg7[%c0_4, %c0_5] : memref<1x1024xf32, #tpu.memory_space<vmem>>, vector<1x1024xf32>
    %7 = vector.broadcast %6 : vector<1x1024xf32> to vector<2x1024xf32>
    %8 = arith.addf %5, %7 : vector<2x1024xf32>
    %9 = arith.truncf %8 : vector<2x1024xf32> to vector<2x1024xbf16>
    %c0_6 = arith.constant 0 : index
    %c0_7 = arith.constant 0 : index
    %10 = vector.load %arg8[%c0_6, %c0_7] : memref<2x1024xbf16, #tpu.memory_space<vmem>>, vector<2x1024xbf16>
    tpu.vector_store %arg8[%c0_6, %c0_7], %9 {strides = array<i32>} : memref<2x1024xbf16, #tpu.memory_space<vmem>>, vector<2x1024xbf16>,
    %c1024_i32 = arith.constant 1024 : i32
    %11 = arith.muli %arg0, %c1024_i32 : i32
    %12 = tpu.assume_multiple %11, 128 : i32
    %c0_8 = arith.constant 0 : index
    %13 = arith.index_cast %12 : i32 to index
    %14 = vector.load %arg2[%c0_8, %13] : memref<2x1024xf32, #tpu.memory_space<vmem>>, vector<2x1024xf32>
    %15 = arith.subf %8, %14 : vector<2x1024xf32>
    %c0_9 = arith.constant 0 : index
    %c0_10 = arith.constant 0 : index
    %16 = vector.load %arg13[%c0_9, %c0_10] : memref<2x1024xf32, #tpu.memory_space<vmem>>, vector<2x1024xf32>
    %17 = arith.mulf %15, %15 : vector<2x1024xf32>
    %18 = arith.addf %16, %17 : vector<2x1024xf32>
    %c0_11 = arith.constant 0 : index
    %c0_12 = arith.constant 0 : index
    %19 = vector.load %arg13[%c0_11, %c0_12] : memref<2x1024xf32, #tpu.memory_space<vmem>>, vector<2x1024xf32>
    tpu.vector_store %arg13[%c0_11, %c0_12], %18 {strides = array<i32>} : memref<2x1024xf32, #tpu.memory_space<vmem>>, vector<2x1024xf32>,
    %c0_i32_13 = arith.constant 0 : i32
    %20 = arith.cmpi eq, %arg0, %c0_i32_13 : i32
    %21 = arith.extui %20 : i1 to i32
    %c0_i32_14 = arith.constant 0 : i32
    %22 = arith.cmpi ne, %21, %c0_i32_14 : i32
    scf.if %22 {
      %c0_15 = arith.constant 0 : index
      %23 = memref.load %arg1[%c0_15] : memref<2xf32, #tpu.memory_space<smem>>
      %c1 = arith.constant 1 : index
      %24 = memref.load %arg1[%c1] : memref<2xf32, #tpu.memory_space<smem>>
      %c0_16 = arith.constant 0 : index
      %c0_17 = arith.constant 0 : index
      %25 = vector.load %arg13[%c0_16, %c0_17] : memref<2x1024xf32, #tpu.memory_space<vmem>>, vector<2x1024xf32>
      %26 = vector.shape_cast %25 : vector<2x1024xf32> to vector<1x2x1024xf32>
      %cst_18 = arith.constant dense<0.000000e+00> : vector<1xf32>
      %27 = vector.multi_reduction <add>, %26, %cst_18 [1, 2] : vector<1x2x1024xf32> to vector<1xf32>
      %28 = vector.shape_cast %27 : vector<1xf32> to vector<1x1x1xf32>
      %29 = vector.extract %28[0, 0, 0] : f32 from vector<1x1x1xf32>
      %30 = arith.mulf %29, %24 : f32
      %c0_19 = arith.constant 0 : index
      %31 = memref.load %arg14[%c0_19] : memref<1xf32, #tpu.memory_space<smem>>
      %32 = arith.mulf %31, %24 : f32
      %c0_20 = arith.constant 0 : index
      %33 = memref.load %arg10[%c0_20] : memref<1xf32, #tpu.memory_space<smem>>
      memref.store %30, %arg10[%c0_20] : memref<1xf32, #tpu.memory_space<smem>>
      %c0_21 = arith.constant 0 : index
      %34 = memref.load %arg11[%c0_21] : memref<1xf32, #tpu.memory_space<smem>>
      memref.store %32, %arg11[%c0_21] : memref<1xf32, #tpu.memory_space<smem>>
      %35 = arith.mulf %23, %32 : f32
      %36 = arith.addf %30, %35 : f32
      %c0_22 = arith.constant 0 : index
      %37 = memref.load %arg9[%c0_22] : memref<1xf32, #tpu.memory_space<smem>>
      memref.store %36, %arg9[%c0_22] : memref<1xf32, #tpu.memory_space<smem>>
    } else {
    }
    return
  }
  func.func @transform_0(%arg0: i32) -> i32 {
    %c0_i32 = arith.constant 0 : i32
    %c0_i32_0 = arith.constant 0 : i32
    return %c0_i32 : i32
  }
  func.func @transform_1(%arg0: i32) -> (i32, i32) {
    %c0_i32 = arith.constant 0 : i32
    %c0_i32_0 = arith.constant 0 : i32
    %c0_i32_1 = arith.constant 0 : i32
    return %c0_i32, %c0_i32_0 : i32, i32
  }
  func.func @transform_2(%arg0: i32) -> (i32, i32) {
    %c0_i32 = arith.constant 0 : i32
    %c0_i32_0 = arith.constant 0 : i32
    %c0_i32_1 = arith.constant 0 : i32
    return %c0_i32, %c0_i32_0 : i32, i32
  }
  func.func @transform_3(%arg0: i32) -> (i32, i32) {
    %c0_i32 = arith.constant 0 : i32
    %c0_i32_0 = arith.constant 0 : i32
    %c0_i32_1 = arith.constant 0 : i32
    return %c0_i32, %c0_i32_0 : i32, i32
  }
  func.func @transform_4(%arg0: i32) -> (i32, i32) {
    %c0_i32 = arith.constant 0 : i32
    %c0_i32_0 = arith.constant 0 : i32
    %c0_i32_1 = arith.constant 0 : i32
    return %c0_i32, %c0_i32_0 : i32, i32
  }
  func.func @transform_5(%arg0: i32) -> (i32, i32) {
    %c0_i32 = arith.constant 0 : i32
    %c0_i32_0 = arith.constant 0 : i32
    return %c0_i32, %arg0 : i32, i32
  }
  func.func @transform_6(%arg0: i32) -> (i32, i32) {
    %c0_i32 = arith.constant 0 : i32
    %c0_i32_0 = arith.constant 0 : i32
    return %c0_i32, %arg0 : i32, i32
  }
  func.func @transform_7(%arg0: i32) -> (i32, i32) {
    %c0_i32 = arith.constant 0 : i32
    %c0_i32_0 = arith.constant 0 : i32
    return %c0_i32, %arg0 : i32, i32
  }
  func.func @transform_8(%arg0: i32) -> i32 {
    %c0_i32 = arith.constant 0 : i32
    %c0_i32_0 = arith.constant 0 : i32
    return %c0_i32 : i32
  }
  func.func @transform_9(%arg0: i32) -> i32 {
    %c0_i32 = arith.constant 0 : i32
    %c0_i32_0 = arith.constant 0 : i32
    return %c0_i32 : i32
  }
  func.func @transform_10(%arg0: i32) -> i32 {
    %c0_i32 = arith.constant 0 : i32
    %c0_i32_0 = arith.constant 0 : i32
    return %c0_i32 : i32
  }
}

module attributes {stable_mosaic.version = 11 : i64} {
  func.func @_beta_vae_kernel(%arg0: i32, %arg1: memref<2xf32, #tpu.memory_space<smem>>, %arg2: memref<2x1024xf32, #tpu.memory_space<vmem>>, %arg3: memref<1024x256xbf16, #tpu.memory_space<vmem>>, %arg4: memref<1x256xf32, #tpu.memory_space<vmem>>, %arg5: memref<2x128xf32, #tpu.memory_space<vmem>>, %arg6: memref<128x1024xbf16, #tpu.memory_space<vmem>>, %arg7: memref<1x1024xf32, #tpu.memory_space<vmem>>, %arg8: memref<2x1024xbf16, #tpu.memory_space<vmem>>, %arg9: memref<1xf32, #tpu.memory_space<smem>>, %arg10: memref<1xf32, #tpu.memory_space<smem>>, %arg11: memref<1xf32, #tpu.memory_space<smem>>, %arg12: memref<2x128xbf16, #tpu.memory_space<vmem>>, %arg13: memref<2x1024xf32, #tpu.memory_space<vmem>>, %arg14: memref<1xf32, #tpu.memory_space<smem>>) attributes {dimension_semantics = [#tpu.dimension_semantics<arbitrary>], iteration_bounds = array<i64: 1>, scalar_prefetch = 0 : i64, scratch_operands = 3 : i64, tpu.core_type = #tpu.core_type<tc>, window_params = [{transform_indices = @transform_0, window_bounds = array<i64: 2>}, {pipeline_mode = #tpu.pipeline_mode<synchronous>, transform_indices = @transform_1, window_bounds = array<i64: 2, 1024>}, {pipeline_mode = #tpu.pipeline_mode<synchronous>, transform_indices = @transform_2, window_bounds = array<i64: 1024, 256>}, {pipeline_mode = #tpu.pipeline_mode<synchronous>, transform_indices = @transform_3, window_bounds = array<i64: 1, 256>}, {pipeline_mode = #tpu.pipeline_mode<synchronous>, transform_indices = @transform_4, window_bounds = array<i64: 2, 128>}, {transform_indices = @transform_5, window_bounds = array<i64: 128, 1024>}, {transform_indices = @transform_6, window_bounds = array<i64: 1, 1024>}, {transform_indices = @transform_7, window_bounds = array<i64: 2, 1024>}, {transform_indices = @transform_8, window_bounds = array<i64: 1>}, {transform_indices = @transform_9, window_bounds = array<i64: 1>}, {transform_indices = @transform_10, window_bounds = array<i64: 1>}]} {
    %c0_i32 = arith.constant 0 : i32
    %0 = arith.cmpi eq, %arg0, %c0_i32 : i32
    %1 = arith.extui %0 : i1 to i32
    %c0_i32_0 = arith.constant 0 : i32
    %2 = arith.cmpi ne, %1, %c0_i32_0 : i32
    scf.if %2 {
      %c0_15 = arith.constant 0 : index
      %c0_16 = arith.constant 0 : index
      %23 = vector.load %arg2[%c0_15, %c0_16] : memref<2x1024xf32, #tpu.memory_space<vmem>>, vector<2x1024xf32>
      %24 = arith.truncf %23 : vector<2x1024xf32> to vector<2x1024xbf16>
      %c0_17 = arith.constant 0 : index
      %c0_18 = arith.constant 0 : index
      %25 = vector.load %arg3[%c0_17, %c0_18] : memref<1024x256xbf16, #tpu.memory_space<vmem>>, vector<1024x256xbf16>
      %cst_19 = arith.constant dense<0.000000e+00> : vector<2x256xf32>
      %26 = tpu.matmul %24, %25, %cst_19 {dimension_numbers = #tpu.dot_dimension_numbers<[1], [0], [0], [1], [0, 0, 1, 1], [], []>} : vector<2x1024xbf16>, vector<1024x256xbf16>, vector<2x256xf32> -> vector<2x256xf32>
      %c0_20 = arith.constant 0 : index
      %c0_21 = arith.constant 0 : index
      %27 = vector.load %arg4[%c0_20, %c0_21] : memref<1x256xf32, #tpu.memory_space<vmem>>, vector<1x256xf32>
      %28 = vector.broadcast %27 : vector<1x256xf32> to vector<2x256xf32>
      %29 = arith.addf %26, %28 : vector<2x256xf32>
      %30 = vector.extract_strided_slice %29 {offsets = [0, 0], sizes = [2, 128], strides = [1, 1]} : vector<2x256xf32> to vector<2x128xf32>
      %31 = vector.extract_strided_slice %29 {offsets = [0, 128], sizes = [2, 128], strides = [1, 1]} : vector<2x256xf32> to vector<2x128xf32>
      %cst_22 = arith.constant 5.000000e-01 : f32
      %32 = vector.broadcast %cst_22 : f32 to vector<2x128xf32>
      %33 = arith.mulf %32, %31 : vector<2x128xf32>
      %34 = math.exp %33 : vector<2x128xf32>
      %c0_23 = arith.constant 0 : index
      %c0_24 = arith.constant 0 : index
      %35 = vector.load %arg5[%c0_23, %c0_24] : memref<2x128xf32, #tpu.memory_space<vmem>>, vector<2x128xf32>
      %36 = arith.mulf %34, %35 : vector<2x128xf32>
      %37 = arith.addf %30, %36 : vector<2x128xf32>
      %38 = arith.truncf %37 : vector<2x128xf32> to vector<2x128xbf16>
      %c0_25 = arith.constant 0 : index
      %c0_26 = arith.constant 0 : index
      %39 = vector.load %arg12[%c0_25, %c0_26] : memref<2x128xbf16, #tpu.memory_space<vmem>>, vector<2x128xbf16>
      tpu.vector_store %arg12[%c0_25, %c0_26], %38 {strides = array<i32>} : memref<2x128xbf16, #tpu.memory_space<vmem>>, vector<2x128xbf16>,
      %40 = arith.mulf %34, %34 : vector<2x128xf32>
      %cst_27 = arith.constant 1.000000e+00 : f32
      %41 = vector.broadcast %cst_27 : f32 to vector<2x128xf32>
      %42 = arith.addf %41, %31 : vector<2x128xf32>
      %43 = arith.mulf %30, %30 : vector<2x128xf32>
      %44 = arith.subf %42, %43 : vector<2x128xf32>
      %45 = arith.subf %44, %40 : vector<2x128xf32>
      %cst_28 = arith.constant -5.000000e-01 : f32
      %46 = vector.broadcast %cst_28 : f32 to vector<2x128xf32>
      %47 = arith.mulf %46, %45 : vector<2x128xf32>
      %48 = vector.shape_cast %47 : vector<2x128xf32> to vector<1x2x128xf32>
      %cst_29 = arith.constant dense<0.000000e+00> : vector<1xf32>
      %49 = vector.multi_reduction <add>, %48, %cst_29 [1, 2] : vector<1x2x128xf32> to vector<1xf32>
      %50 = vector.shape_cast %49 : vector<1xf32> to vector<1x1x1xf32>
      %51 = vector.extract %50[0, 0, 0] : f32 from vector<1x1x1xf32>
      %c0_30 = arith.constant 0 : index
      %52 = memref.load %arg14[%c0_30] : memref<1xf32, #tpu.memory_space<smem>>
      memref.store %51, %arg14[%c0_30] : memref<1xf32, #tpu.memory_space<smem>>
      %cst_31 = arith.constant 0.000000e+00 : f32
      %53 = vector.broadcast %cst_31 : f32 to vector<2x1024xf32>
      %c0_32 = arith.constant 0 : index
      %c0_33 = arith.constant 0 : index
      %54 = vector.load %arg13[%c0_32, %c0_33] : memref<2x1024xf32, #tpu.memory_space<vmem>>, vector<2x1024xf32>
      tpu.vector_store %arg13[%c0_32, %c0_33], %53 {strides = array<i32>} : memref<2x1024xf32, #tpu.memory_space<vmem>>, vector<2x1024xf32>,
    } else {
    }
    %c0 = arith.constant 0 : index
    %c0_1 = arith.constant 0 : index
    %3 = vector.load %arg12[%c0, %c0_1] : memref<2x128xbf16, #tpu.memory_space<vmem>>, vector<2x128xbf16>
    %c0_2 = arith.constant 0 : index
    %c0_3 = arith.constant 0 : index
    %4 = vector.load %arg6[%c0_2, %c0_3] : memref<128x1024xbf16, #tpu.memory_space<vmem>>, vector<128x1024xbf16>
    %cst = arith.constant dense<0.000000e+00> : vector<2x1024xf32>
    %5 = tpu.matmul %3, %4, %cst {dimension_numbers = #tpu.dot_dimension_numbers<[1], [0], [0], [1], [0, 0, 1, 1], [], []>} : vector<2x128xbf16>, vector<128x1024xbf16>, vector<2x1024xf32> -> vector<2x1024xf32>
    %c0_4 = arith.constant 0 : index
    %c0_5 = arith.constant 0 : index
    %6 = vector.load %arg7[%c0_4, %c0_5] : memref<1x1024xf32, #tpu.memory_space<vmem>>, vector<1x1024xf32>
    %7 = vector.broadcast %6 : vector<1x1024xf32> to vector<2x1024xf32>
    %8 = arith.addf %5, %7 : vector<2x1024xf32>
    %9 = arith.truncf %8 : vector<2x1024xf32> to vector<2x1024xbf16>
    %c0_6 = arith.constant 0 : index
    %c0_7 = arith.constant 0 : index
    %10 = vector.load %arg8[%c0_6, %c0_7] : memref<2x1024xbf16, #tpu.memory_space<vmem>>, vector<2x1024xbf16>
    tpu.vector_store %arg8[%c0_6, %c0_7], %9 {strides = array<i32>} : memref<2x1024xbf16, #tpu.memory_space<vmem>>, vector<2x1024xbf16>,
    %c1024_i32 = arith.constant 1024 : i32
    %11 = arith.muli %arg0, %c1024_i32 : i32
    %12 = tpu.assume_multiple %11, 128 : i32
    %c0_8 = arith.constant 0 : index
    %13 = arith.index_cast %12 : i32 to index
    %14 = vector.load %arg2[%c0_8, %13] : memref<2x1024xf32, #tpu.memory_space<vmem>>, vector<2x1024xf32>
    %15 = arith.subf %8, %14 : vector<2x1024xf32>
    %c0_9 = arith.constant 0 : index
    %c0_10 = arith.constant 0 : index
    %16 = vector.load %arg13[%c0_9, %c0_10] : memref<2x1024xf32, #tpu.memory_space<vmem>>, vector<2x1024xf32>
    %17 = arith.mulf %15, %15 : vector<2x1024xf32>
    %18 = arith.addf %16, %17 : vector<2x1024xf32>
    %c0_11 = arith.constant 0 : index
    %c0_12 = arith.constant 0 : index
    %19 = vector.load %arg13[%c0_11, %c0_12] : memref<2x1024xf32, #tpu.memory_space<vmem>>, vector<2x1024xf32>
    tpu.vector_store %arg13[%c0_11, %c0_12], %18 {strides = array<i32>} : memref<2x1024xf32, #tpu.memory_space<vmem>>, vector<2x1024xf32>,
    %c0_i32_13 = arith.constant 0 : i32
    %20 = arith.cmpi eq, %arg0, %c0_i32_13 : i32
    %21 = arith.extui %20 : i1 to i32
    %c0_i32_14 = arith.constant 0 : i32
    %22 = arith.cmpi ne, %21, %c0_i32_14 : i32
    scf.if %22 {
      %c0_15 = arith.constant 0 : index
      %23 = memref.load %arg1[%c0_15] : memref<2xf32, #tpu.memory_space<smem>>
      %c1 = arith.constant 1 : index
      %24 = memref.load %arg1[%c1] : memref<2xf32, #tpu.memory_space<smem>>
      %c0_16 = arith.constant 0 : index
      %c0_17 = arith.constant 0 : index
      %25 = vector.load %arg13[%c0_16, %c0_17] : memref<2x1024xf32, #tpu.memory_space<vmem>>, vector<2x1024xf32>
      %26 = vector.shape_cast %25 : vector<2x1024xf32> to vector<1x2x1024xf32>
      %cst_18 = arith.constant dense<0.000000e+00> : vector<1xf32>
      %27 = vector.multi_reduction <add>, %26, %cst_18 [1, 2] : vector<1x2x1024xf32> to vector<1xf32>
      %28 = vector.shape_cast %27 : vector<1xf32> to vector<1x1x1xf32>
      %29 = vector.extract %28[0, 0, 0] : f32 from vector<1x1x1xf32>
      %30 = arith.mulf %29, %24 : f32
      %c0_19 = arith.constant 0 : index
      %31 = memref.load %arg14[%c0_19] : memref<1xf32, #tpu.memory_space<smem>>
      %32 = arith.mulf %31, %24 : f32
      %c0_20 = arith.constant 0 : index
      %33 = memref.load %arg10[%c0_20] : memref<1xf32, #tpu.memory_space<smem>>
      memref.store %30, %arg10[%c0_20] : memref<1xf32, #tpu.memory_space<smem>>
      %c0_21 = arith.constant 0 : index
      %34 = memref.load %arg11[%c0_21] : memref<1xf32, #tpu.memory_space<smem>>
      memref.store %32, %arg11[%c0_21] : memref<1xf32, #tpu.memory_space<smem>>
      %35 = arith.mulf %23, %32 : f32
      %36 = arith.addf %30, %35 : f32
      %c0_22 = arith.constant 0 : index
      %37 = memref.load %arg9[%c0_22] : memref<1xf32, #tpu.memory_space<smem>>
      memref.store %36, %arg9[%c0_22] : memref<1xf32, #tpu.memory_space<smem>>
    } else {
    }
    return
  }
  func.func @transform_0(%arg0: i32) -> i32 {
    %c0_i32 = arith.constant 0 : i32
    %c0_i32_0 = arith.constant 0 : i32
    return %c0_i32 : i32
  }
  func.func @transform_1(%arg0: i32) -> (i32, i32) {
    %c0_i32 = arith.constant 0 : i32
    %c0_i32_0 = arith.constant 0 : i32
    %c0_i32_1 = arith.constant 0 : i32
    return %c0_i32, %c0_i32_0 : i32, i32
  }
  func.func @transform_2(%arg0: i32) -> (i32, i32) {
    %c0_i32 = arith.constant 0 : i32
    %c0_i32_0 = arith.constant 0 : i32
    %c0_i32_1 = arith.constant 0 : i32
    return %c0_i32, %c0_i32_0 : i32, i32
  }
  func.func @transform_3(%arg0: i32) -> (i32, i32) {
    %c0_i32 = arith.constant 0 : i32
    %c0_i32_0 = arith.constant 0 : i32
    %c0_i32_1 = arith.constant 0 : i32
    return %c0_i32, %c0_i32_0 : i32, i32
  }
  func.func @transform_4(%arg0: i32) -> (i32, i32) {
    %c0_i32 = arith.constant 0 : i32
    %c0_i32_0 = arith.constant 0 : i32
    %c0_i32_1 = arith.constant 0 : i32
    return %c0_i32, %c0_i32_0 : i32, i32
  }
  func.func @transform_5(%arg0: i32) -> (i32, i32) {
    %c0_i32 = arith.constant 0 : i32
    %c0_i32_0 = arith.constant 0 : i32
    return %c0_i32, %arg0 : i32, i32
  }
  func.func @transform_6(%arg0: i32) -> (i32, i32) {
    %c0_i32 = arith.constant 0 : i32
    %c0_i32_0 = arith.constant 0 : i32
    return %c0_i32, %arg0 : i32, i32
  }
  func.func @transform_7(%arg0: i32) -> (i32, i32) {
    %c0_i32 = arith.constant 0 : i32
    %c0_i32_0 = arith.constant 0 : i32
    return %c0_i32, %arg0 : i32, i32
  }
  func.func @transform_8(%arg0: i32) -> i32 {
    %c0_i32 = arith.constant 0 : i32
    %c0_i32_0 = arith.constant 0 : i32
    return %c0_i32 : i32
  }
  func.func @transform_9(%arg0: i32) -> i32 {
    %c0_i32 = arith.constant 0 : i32
    %c0_i32_0 = arith.constant 0 : i32
    return %c0_i32 : i32
  }
  func.func @transform_10(%arg0: i32) -> i32 {
    %c0_i32 = arith.constant 0 : i32
    %c0_i32_0 = arith.constant 0 : i32
    return %c0_i32 : i32
  }
}

</mosaic_0001>

<llo_original>
// kernel: tpu_custom_call.1
$region0: #{tpu_custom_call.1}
  #allocation0 [shape = 'u32[]', space=smem, size = 0x4, offset = 0x4, fixed_abs, tag = 'smem constant byte address 0x4 - core index']
  #allocation1 [shape = 'u32[72,128]{1,0:T(1,128)}', space=vmem, size = 0x9000, scoped, tag = 'internal scratch']
  #allocation2 [shape = 'bf16[2,128]{1,0:T(2,128)(2,1)}', space=vmem, size = 0x200, scoped, tag = 'scratch operand']
  #allocation3 [shape = 'f32[2,1024]{1,0:T(2,128)}', space=vmem, size = 0x2000, scoped, tag = 'scratch operand']
  #allocation4 [shape = 'f32[1]{0:T(128)}', space=smem, size = 0x200, scoped, tag = 'scratch operand']
  %s0 = inlined_call_operand.hbm [shape: f32[2], index: 0, kind: input, shape index: {}]
  %s1 = inlined_call_operand.hbm [shape: f32[2,1024], index: 1, kind: input, shape index: {}]
  %s2 = inlined_call_operand.hbm [shape: bf16[1024,256], index: 2, kind: input, shape index: {}]
  %s3 = inlined_call_operand.vmem [shape: f32[1,256], index: 3, kind: input, shape index: {}]
  %s4 = inlined_call_operand.hbm [shape: f32[2,128], index: 4, kind: input, shape index: {}]
  %s5 = inlined_call_operand.hbm [shape: bf16[128,1024], index: 5, kind: input, shape index: {}]
  %s6 = inlined_call_operand.hbm [shape: f32[1,1024], index: 6, kind: input, shape index: {}]
  %s7 = inlined_call_operand.hbm [shape: bf16[2,1024], index: 7, kind: output, shape index: {0}]
  %s8 = inlined_call_operand.hbm [shape: f32[1], index: 8, kind: output, shape index: {1}]
  %s9 = inlined_call_operand.hbm [shape: f32[1], index: 9, kind: output, shape index: {2}]
  %s10 = inlined_call_operand.hbm [shape: f32[1], index: 10, kind: output, shape index: {3}]
  %11 = xla_tuple %s7, %s8, %s9, %s10
  %s12 = sld [smem:[#allocation0]]
  $region94: #{tpu_custom_call.1} parent=0
    _
  %s14 = ssub.s32 1, %s12
  %s15 = scalar_select 0, %s14, %s12
  $region1: #{tpu_custom_call.1} parent=0
    #allocation5 [shape = 'u8[512]{0}', space=smem, size = 0x200, scoped, tag = 'input window, operand 0, single buffered']
    #allocation6 [shape = 's32[1]{0}', space=sflag, size = 0x4, scoped, tag = 'scoped memory for tpu_custom_call.1']
    #allocation7 [shape = 's32[1]{0}', space=sflag, size = 0x4, scoped, tag = 'scoped memory for tpu_custom_call.1']
    #allocation8 [shape = 's32[1]{0}', space=sflag, size = 0x4, scoped, tag = 'scoped memory for tpu_custom_call.1']
    #allocation9 [shape = 's32[1]{0}', space=sflag, size = 0x4, scoped, tag = 'scoped memory for tpu_custom_call.1']
    #allocation10 [shape = 'u8[8192]{0}', space=vmem, size = 0x2000, scoped, tag = 'input window, operand 1, single buffered']
    #allocation11 [shape = 'u8[524288]{0}', space=vmem, size = 0x80000, scoped, tag = 'input window, operand 2, single buffered']
    #allocation12 [shape = 's32[1]{0}', space=sflag, size = 0x4, scoped, tag = 'scoped memory for tpu_custom_call.1']
    #allocation13 [shape = 'u8[1024]{0}', space=vmem, size = 0x400, scoped, tag = 'input window, operand 4, single buffered']
    #allocation14 [shape = 'u8[262144]{0}', space=vmem, size = 0x40000, scoped, tag = 'input window, operand 5, single buffered']
    #allocation15 [shape = 's32[1]{0}', space=sflag, size = 0x4, scoped, tag = 'scoped memory for tpu_custom_call.1']
    #allocation16 [shape = 'u8[4096]{0}', space=vmem, size = 0x1000, scoped, tag = 'input window, operand 6, single buffered']
    #allocation17 [shape = 'u8[4096]{0}', space=vmem, size = 0x1000, scoped, tag = 'output window, operand 0, single buffered']
    #allocation18 [shape = 'u8[512]{0}', space=smem, size = 0x200, scoped, tag = 'output window, operand 1, single buffered']
    #allocation19 [shape = 'u8[512]{0}', space=smem, size = 0x200, scoped, tag = 'output window, operand 2, single buffered']
    #allocation20 [shape = 's32[1]{0}', space=sflag, size = 0x4, scoped, tag = 'scoped memory for tpu_custom_call.1']
    #allocation21 [shape = 'u8[512]{0}', space=smem, size = 0x200, scoped, tag = 'output window, operand 3, single buffered']
    %16 = vsyncpa [#allocation8], 0
    %17 = vsyncpa [#allocation6], 0
    %18 = vsyncpa [#allocation12], 0
    %19 = vsyncpa [#allocation15], 0
    %20 = vsyncpa [#allocation7], 0
    %21 = vsyncpa [#allocation9], 0
    %22 = vsyncpa [#allocation20], 0
    // Predicated region
    $region2: #{tpu_custom_call.1} parent=1 // pred_check
      _
    $region3: #{tpu_custom_call.1} parent=1 // pred_check_branch
      %24 = sbr.rel (0) target = $region5
    $region4: #{tpu_custom_call.1} parent=1 // pred_region
      %26 = vsyncadd [#allocation8], 0
      %s28 = sshll.u32 %s0, 4
      %s29 = int_to_ptr.hbm [resolvable:$true] %s28
      %31 = dma.hbm_to_smem %s29, 16, [#allocation5], [#allocation8]
    $region5: #{tpu_custom_call.1} parent=1 // pred_fallthru
      _
    // Predicated region
    $region6: #{tpu_custom_call.1} parent=1 // pred_check
      _
    $region7: #{tpu_custom_call.1} parent=1 // pred_check_branch
      %33 = sbr.rel (0) target = $region9
    $region8: #{tpu_custom_call.1} parent=1 // pred_region
      %35 = vsyncadd [#allocation6], 0
      %s37 = sshll.u32 %s1, 4
      %s38 = int_to_ptr.hbm [resolvable:$true] %s37
      %s39 = sshll.u32 [#allocation10], 4
      %s40 = int_to_ptr.vmem [resolvable:$true] %s39
      %42 = dma.hbm_to_vmem [thread:$0]  %s38, 256, %s40, [#allocation6]
    $region9: #{tpu_custom_call.1} parent=1 // pred_fallthru
      _
    // Predicated region
    $region10: #{tpu_custom_call.1} parent=1 // pred_check
      _
    $region11: #{tpu_custom_call.1} parent=1 // pred_check_branch
      %44 = sbr.rel (0) target = $region13
    $region12: #{tpu_custom_call.1} parent=1 // pred_region
      %46 = vsyncadd [#allocation12], 0
      %s47 = sshll.u32 %s2, 4
      %s48 = int_to_ptr.hbm [resolvable:$true] %s47
      %s49 = sshll.u32 [#allocation11], 4
      %s50 = int_to_ptr.vmem [resolvable:$true] %s49
      %55 = dma.hbm_to_vmem [thread:$0]  %s48, 16384, %s50, [#allocation12], 128, 128, 8
    $region13: #{tpu_custom_call.1} parent=1 // pred_fallthru
      _
    // Predicated region
    $region14: #{tpu_custom_call.1} parent=1 // pred_check
      _
    $region15: #{tpu_custom_call.1} parent=1 // pred_check_branch
      %57 = sbr.rel (0) target = $region17
    $region16: #{tpu_custom_call.1} parent=1 // pred_region
      _
    $region17: #{tpu_custom_call.1} parent=1 // pred_fallthru
      _
    // Predicated region
    $region18: #{tpu_custom_call.1} parent=1 // pred_check
      _
    $region19: #{tpu_custom_call.1} parent=1 // pred_check_branch
      %59 = sbr.rel (0) target = $region21
    $region20: #{tpu_custom_call.1} parent=1 // pred_region
      %61 = vsyncadd [#allocation12], 0
      %s63 = sshll.u32 %s4, 4
      %s64 = int_to_ptr.hbm [resolvable:$true] %s63
      %s65 = sshll.u32 [#allocation13], 4
      %s66 = int_to_ptr.vmem [resolvable:$true] %s65
      %68 = dma.hbm_to_vmem [thread:$0]  %s64, 32, %s66, [#allocation12]
    $region21: #{tpu_custom_call.1} parent=1 // pred_fallthru
      _
    // Predicated region
    $region22: #{tpu_custom_call.1} parent=1 // pred_check
      _
    $region23: #{tpu_custom_call.1} parent=1 // pred_check_branch
      %70 = sbr.rel (0) target = $region25
    $region24: #{tpu_custom_call.1} parent=1 // pred_region
      %72 = vsyncadd [#allocation15], 0
      %s73 = sshll.u32 %s5, 4
      %s74 = int_to_ptr.hbm [resolvable:$true] %s73
      %s75 = sshll.u32 [#allocation14], 4
      %s76 = int_to_ptr.vmem [resolvable:$true] %s75
      %81 = dma.hbm_to_vmem [thread:$0]  %s74, 8192, %s76, [#allocation15], 512, 512, 32
    $region25: #{tpu_custom_call.1} parent=1 // pred_fallthru
      _
    // Predicated region
    $region26: #{tpu_custom_call.1} parent=1 // pred_check
      _
    $region27: #{tpu_custom_call.1} parent=1 // pred_check_branch
      %83 = sbr.rel (0) target = $region29
    $region28: #{tpu_custom_call.1} parent=1 // pred_region
      %85 = vsyncadd [#allocation15], 0
      %s87 = sshll.u32 %s6, 4
      %s88 = int_to_ptr.hbm [resolvable:$true] %s87
      %s89 = sshll.u32 [#allocation16], 4
      %s90 = int_to_ptr.vmem [resolvable:$true] %s89
      %92 = dma.hbm_to_vmem [thread:$0]  %s88, 128, %s90, [#allocation15]
    $region29: #{tpu_custom_call.1} parent=1 // pred_fallthru
      _
    // Predicated region
    $region30: #{tpu_custom_call.1} parent=1 // pred_check
      _
    $region31: #{tpu_custom_call.1} parent=1 // pred_check_branch
      %94 = sbr.rel (0) target = $region33
    $region32: #{tpu_custom_call.1} parent=1 // pred_region
      %96 = dma.done [#allocation8], 16
    $region33: #{tpu_custom_call.1} parent=1 // pred_fallthru
      _
    // Predicated region
    $region34: #{tpu_custom_call.1} parent=1 // pred_check
      _
    $region35: #{tpu_custom_call.1} parent=1 // pred_check_branch
      %98 = sbr.rel (0) target = $region37
    $region36: #{tpu_custom_call.1} parent=1 // pred_region
      %100 = dma.done [#allocation6], 256
    $region37: #{tpu_custom_call.1} parent=1 // pred_fallthru
      _
    // Predicated region
    $region38: #{tpu_custom_call.1} parent=1 // pred_check
      _
    $region39: #{tpu_custom_call.1} parent=1 // pred_check_branch
      %102 = sbr.rel (0) target = $region41
    $region40: #{tpu_custom_call.1} parent=1 // pred_region
      %104 = dma.done [#allocation12], 16384
    $region41: #{tpu_custom_call.1} parent=1 // pred_fallthru
      _
    // Predicated region
    $region42: #{tpu_custom_call.1} parent=1 // pred_check
      _
    $region43: #{tpu_custom_call.1} parent=1 // pred_check_branch
      %106 = sbr.rel (0) target = $region45
    $region44: #{tpu_custom_call.1} parent=1 // pred_region
      %108 = dma.done [#allocation12], 32
    $region45: #{tpu_custom_call.1} parent=1 // pred_fallthru
      _
    // Predicated region
    $region46: #{tpu_custom_call.1} parent=1 // pred_check
      _
    $region47: #{tpu_custom_call.1} parent=1 // pred_check_branch
      %110 = sbr.rel (0) target = $region49
    $region48: #{tpu_custom_call.1} parent=1 // pred_region
      %112 = dma.done [#allocation15], 8192
    $region49: #{tpu_custom_call.1} parent=1 // pred_fallthru
      _
    // Predicated region
    $region50: #{tpu_custom_call.1} parent=1 // pred_check
      _
    $region51: #{tpu_custom_call.1} parent=1 // pred_check_branch
      %114 = sbr.rel (0) target = $region53
    $region52: #{tpu_custom_call.1} parent=1 // pred_region
      %116 = dma.done [#allocation15], 128
    $region53: #{tpu_custom_call.1} parent=1 // pred_fallthru
      _
    %117 = sfence
    %p118 = scmp.eq.s32.totalorder 0, 0
    // Predicated region
    $region54: #{tpu_custom_call.1} parent=1 // pred_check
      %p119 = pneg %p118
    $region55: #{tpu_custom_call.1} parent=1 // pred_check_branch
      %121 = sbr.rel (%p119) target = $region57
    $region56: #{tpu_custom_call.1} parent=1 // pred_region
      %v122 = vld [vmem:[#allocation10] sm:$0xff]
      %v123 = vld [vmem:[#allocation10 + $0x8] sm:$0xff]
      %126 = vst [vmem:[#allocation1] ss:$4 sm:$0xff] %v122
      %s127 = scalar_lea.vmem [#allocation1], 32
      %128 = vst [vmem:[%s127] ss:$4 sm:$0xff] %v123
      %v129 = vld.sshfl [vmem:[#allocation1] sm:$0xff pattern:$0x73625140]
      %v130 = vld.sshfl [vmem:[#allocation1 + $0x8] sm:$0xff pattern:$0x73625140]
      %v131 = vld.sshfl [vmem:[#allocation1 + $0x10] sm:$0xff pattern:$0x73625140]
      %v132 = vld.sshfl [vmem:[#allocation1 + $0x18] sm:$0xff pattern:$0x73625140]
      %v133 = vld.sshfl [vmem:[#allocation1 + $0x20] sm:$0xff pattern:$0x73625140]
      %v134 = vld.sshfl [vmem:[#allocation1 + $0x28] sm:$0xff pattern:$0x73625140]
      %v135 = vld.sshfl [vmem:[#allocation1 + $0x30] sm:$0xff pattern:$0x73625140]
      %v136 = vld.sshfl [vmem:[#allocation1 + $0x38] sm:$0xff pattern:$0x73625140]
      %v145 = vpack.c.bf16 %v129, %v129
      %v146 = vpack.c.bf16 %v130, %v130
      %v147 = vpack.c.bf16 %v131, %v131
      %v148 = vpack.c.bf16 %v132, %v132
      %v149 = vpack.c.bf16 %v133, %v133
      %v150 = vpack.c.bf16 %v134, %v134
      %v151 = vpack.c.bf16 %v135, %v135
      %v152 = vpack.c.bf16 %v136, %v136
      %v153 = vld [vmem:[#allocation11] sm:$0xff]
      %v154 = vld [vmem:[#allocation11 + $0x8] sm:$0xff]
      %v155 = vld [vmem:[#allocation11 + $0x10] sm:$0xff]
      %v156 = vld [vmem:[#allocation11 + $0x18] sm:$0xff]
      %v157 = vld [vmem:[#allocation11 + $0x20] sm:$0xff]
      %v158 = vld [vmem:[#allocation11 + $0x28] sm:$0xff]
      %v159 = vld [vmem:[#allocation11 + $0x30] sm:$0xff]
      %v160 = vld [vmem:[#allocation11 + $0x38] sm:$0xff]
      %v161 = vld [vmem:[#allocation11 + $0x40] sm:$0xff]
      %v162 = vld [vmem:[#allocation11 + $0x48] sm:$0xff]
      %v163 = vld [vmem:[#allocation11 + $0x50] sm:$0xff]
      %v164 = vld [vmem:[#allocation11 + $0x58] sm:$0xff]
      %v165 = vld [vmem:[#allocation11 + $0x60] sm:$0xff]
      %v166 = vld [vmem:[#allocation11 + $0x68] sm:$0xff]
      %v167 = vld [vmem:[#allocation11 + $0x70] sm:$0xff]
      %v168 = vld [vmem:[#allocation11 + $0x78] sm:$0xff]
      %v169 = vld [vmem:[#allocation11 + $0x80] sm:$0xff]
      %v170 = vld [vmem:[#allocation11 + $0x88] sm:$0xff]
      %v171 = vld [vmem:[#allocation11 + $0x90] sm:$0xff]
      %v172 = vld [vmem:[#allocation11 + $0x98] sm:$0xff]
      %v173 = vld [vmem:[#allocation11 + $0xa0] sm:$0xff]
      %v174 = vld [vmem:[#allocation11 + $0xa8] sm:$0xff]
      %v175 = vld [vmem:[#allocation11 + $0xb0] sm:$0xff]
      %v176 = vld [vmem:[#allocation11 + $0xb8] sm:$0xff]
      %v177 = vld [vmem:[#allocation11 + $0xc0] sm:$0xff]
      %v178 = vld [vmem:[#allocation11 + $0xc8] sm:$0xff]
      %v179 = vld [vmem:[#allocation11 + $0xd0] sm:$0xff]
      %v180 = vld [vmem:[#allocation11 + $0xd8] sm:$0xff]
      %v181 = vld [vmem:[#allocation11 + $0xe0] sm:$0xff]
      %v182 = vld [vmem:[#allocation11 + $0xe8] sm:$0xff]
      %v183 = vld [vmem:[#allocation11 + $0xf0] sm:$0xff]
      %v184 = vld [vmem:[#allocation11 + $0xf8] sm:$0xff]
      %v185 = vld [vmem:[#allocation11 + $0x100] sm:$0xff]
      %v186 = vld [vmem:[#allocation11 + $0x108] sm:$0xff]
      %v187 = vld [vmem:[#allocation11 + $0x110] sm:$0xff]
      %v188 = vld [vmem:[#allocation11 + $0x118] sm:$0xff]
      %v189 = vld [vmem:[#allocation11 + $0x120] sm:$0xff]
      %v190 = vld [vmem:[#allocation11 + $0x128] sm:$0xff]
      %v191 = vld [vmem:[#allocation11 + $0x130] sm:$0xff]
      %v192 = vld [vmem:[#allocation11 + $0x138] sm:$0xff]
      %v193 = vld [vmem:[#allocation11 + $0x140] sm:$0xff]
      %v194 = vld [vmem:[#allocation11 + $0x148] sm:$0xff]
      %v195 = vld [vmem:[#allocation11 + $0x150] sm:$0xff]
      %v196 = vld [vmem:[#allocation11 + $0x158] sm:$0xff]
      %v197 = vld [vmem:[#allocation11 + $0x160] sm:$0xff]
      %v198 = vld [vmem:[#allocation11 + $0x168] sm:$0xff]
      %v199 = vld [vmem:[#allocation11 + $0x170] sm:$0xff]
      %v200 = vld [vmem:[#allocation11 + $0x178] sm:$0xff]
      %v201 = vld [vmem:[#allocation11 + $0x180] sm:$0xff]
      %v202 = vld [vmem:[#allocation11 + $0x188] sm:$0xff]
      %v203 = vld [vmem:[#allocation11 + $0x190] sm:$0xff]
      %v204 = vld [vmem:[#allocation11 + $0x198] sm:$0xff]
      %v205 = vld [vmem:[#allocation11 + $0x1a0] sm:$0xff]
      %v206 = vld [vmem:[#allocation11 + $0x1a8] sm:$0xff]
      %v207 = vld [vmem:[#allocation11 + $0x1b0] sm:$0xff]
      %v208 = vld [vmem:[#allocation11 + $0x1b8] sm:$0xff]
      %v209 = vld [vmem:[#allocation11 + $0x1c0] sm:$0xff]
      %v210 = vld [vmem:[#allocation11 + $0x1c8] sm:$0xff]
      %v211 = vld [vmem:[#allocation11 + $0x1d0] sm:$0xff]
      %v212 = vld [vmem:[#allocation11 + $0x1d8] sm:$0xff]
      %v213 = vld [vmem:[#allocation11 + $0x1e0] sm:$0xff]
      %v214 = vld [vmem:[#allocation11 + $0x1e8] sm:$0xff]
      %v215 = vld [vmem:[#allocation11 + $0x1f0] sm:$0xff]
      %v216 = vld [vmem:[#allocation11 + $0x1f8] sm:$0xff]
      %v217 = vld [vmem:[#allocation11 + $0x200] sm:$0xff]
      %v218 = vld [vmem:[#allocation11 + $0x208] sm:$0xff]
      %v219 = vld [vmem:[#allocation11 + $0x210] sm:$0xff]
      %v220 = vld [vmem:[#allocation11 + $0x218] sm:$0xff]
      %v221 = vld [vmem:[#allocation11 + $0x220] sm:$0xff]
      %v222 = vld [vmem:[#allocation11 + $0x228] sm:$0xff]
      %v223 = vld [vmem:[#allocation11 + $0x230] sm:$0xff]
      %v224 = vld [vmem:[#allocation11 + $0x238] sm:$0xff]
      %v225 = vld [vmem:[#allocation11 + $0x240] sm:$0xff]
      %v226 = vld [vmem:[#allocation11 + $0x248] sm:$0xff]
      %v227 = vld [vmem:[#allocation11 + $0x250] sm:$0xff]
      %v228 = vld [vmem:[#allocation11 + $0x258] sm:$0xff]
      %v229 = vld [vmem:[#allocation11 + $0x260] sm:$0xff]
      %v230 = vld [vmem:[#allocation11 + $0x268] sm:$0xff]
      %v231 = vld [vmem:[#allocation11 + $0x270] sm:$0xff]
      %v232 = vld [vmem:[#allocation11 + $0x278] sm:$0xff]
      %v233 = vld [vmem:[#allocation11 + $0x280] sm:$0xff]
      %v234 = vld [vmem:[#allocation11 + $0x288] sm:$0xff]
      %v235 = vld [vmem:[#allocation11 + $0x290] sm:$0xff]
      %v236 = vld [vmem:[#allocation11 + $0x298] sm:$0xff]
      %v237 = vld [vmem:[#allocation11 + $0x2a0] sm:$0xff]
      %v238 = vld [vmem:[#allocation11 + $0x2a8] sm:$0xff]
      %v239 = vld [vmem:[#allocation11 + $0x2b0] sm:$0xff]
      %v240 = vld [vmem:[#allocation11 + $0x2b8] sm:$0xff]
      %v241 = vld [vmem:[#allocation11 + $0x2c0] sm:$0xff]
      %v242 = vld [vmem:[#allocation11 + $0x2c8] sm:$0xff]
      %v243 = vld [vmem:[#allocation11 + $0x2d0] sm:$0xff]
      %v244 = vld [vmem:[#allocation11 + $0x2d8] sm:$0xff]
      %v245 = vld [vmem:[#allocation11 + $0x2e0] sm:$0xff]
      %v246 = vld [vmem:[#allocation11 + $0x2e8] sm:$0xff]
      %v247 = vld [vmem:[#allocation11 + $0x2f0] sm:$0xff]
      %v248 = vld [vmem:[#allocation11 + $0x2f8] sm:$0xff]
      %v249 = vld [vmem:[#allocation11 + $0x300] sm:$0xff]
      %v250 = vld [vmem:[#allocation11 + $0x308] sm:$0xff]
      %v251 = vld [vmem:[#allocation11 + $0x310] sm:$0xff]
      %v252 = vld [vmem:[#allocation11 + $0x318] sm:$0xff]
      %v253 = vld [vmem:[#allocation11 + $0x320] sm:$0xff]
      %v254 = vld [vmem:[#allocation11 + $0x328] sm:$0xff]
      %v255 = vld [vmem:[#allocation11 + $0x330] sm:$0xff]
      %v256 = vld [vmem:[#allocation11 + $0x338] sm:$0xff]
      %v257 = vld [vmem:[#allocation11 + $0x340] sm:$0xff]
      %v258 = vld [vmem:[#allocation11 + $0x348] sm:$0xff]
      %v259 = vld [vmem:[#allocation11 + $0x350] sm:$0xff]
      %v260 = vld [vmem:[#allocation11 + $0x358] sm:$0xff]
      %v261 = vld [vmem:[#allocation11 + $0x360] sm:$0xff]
      %v262 = vld [vmem:[#allocation11 + $0x368] sm:$0xff]
      %v263 = vld [vmem:[#allocation11 + $0x370] sm:$0xff]
      %v264 = vld [vmem:[#allocation11 + $0x378] sm:$0xff]
      %v265 = vld [vmem:[#allocation11 + $0x380] sm:$0xff]
      %v266 = vld [vmem:[#allocation11 + $0x388] sm:$0xff]
      %v267 = vld [vmem:[#allocation11 + $0x390] sm:$0xff]
      %v268 = vld [vmem:[#allocation11 + $0x398] sm:$0xff]
      %v269 = vld [vmem:[#allocation11 + $0x3a0] sm:$0xff]
      %v270 = vld [vmem:[#allocation11 + $0x3a8] sm:$0xff]
      %v271 = vld [vmem:[#allocation11 + $0x3b0] sm:$0xff]
      %v272 = vld [vmem:[#allocation11 + $0x3b8] sm:$0xff]
      %v273 = vld [vmem:[#allocation11 + $0x3c0] sm:$0xff]
      %v274 = vld [vmem:[#allocation11 + $0x3c8] sm:$0xff]
      %v275 = vld [vmem:[#allocation11 + $0x3d0] sm:$0xff]
      %v276 = vld [vmem:[#allocation11 + $0x3d8] sm:$0xff]
      %v277 = vld [vmem:[#allocation11 + $0x3e0] sm:$0xff]
      %v278 = vld [vmem:[#allocation11 + $0x3e8] sm:$0xff]
      %v279 = vld [vmem:[#allocation11 + $0x3f0] sm:$0xff]
      %v280 = vld [vmem:[#allocation11 + $0x3f8] sm:$0xff]
      %v281 = vld [vmem:[%s3] sm:$0x3]
      %v283 = vperm.slane %v281, 0
      %v284 = vperm.slane %v281, 1
      %v415 = vunpack.c.l.b16 %v153
      %v416 = vunpack.c.h.b16 %v153
      %v417 = vunpack.c.l.b16 %v154
      %v418 = vunpack.c.h.b16 %v154
      %v419 = vunpack.c.l.b16 %v155
      %v420 = vunpack.c.h.b16 %v155
      %v421 = vunpack.c.l.b16 %v156
      %v422 = vunpack.c.h.b16 %v156
      %v423 = vunpack.c.l.b16 %v157
      %v424 = vunpack.c.h.b16 %v157
      %v425 = vunpack.c.l.b16 %v158
      %v426 = vunpack.c.h.b16 %v158
      %v427 = vunpack.c.l.b16 %v159
      %v428 = vunpack.c.h.b16 %v159
      %v429 = vunpack.c.l.b16 %v160
      %v430 = vunpack.c.h.b16 %v160
      %v431 = vunpack.c.l.b16 %v161
      %v432 = vunpack.c.h.b16 %v161
      %v433 = vunpack.c.l.b16 %v162
      %v434 = vunpack.c.h.b16 %v162
      %v435 = vunpack.c.l.b16 %v163
      %v436 = vunpack.c.h.b16 %v163
      %v437 = vunpack.c.l.b16 %v164
      %v438 = vunpack.c.h.b16 %v164
      %v439 = vunpack.c.l.b16 %v165
      %v440 = vunpack.c.h.b16 %v165
      %v441 = vunpack.c.l.b16 %v166
      %v442 = vunpack.c.h.b16 %v166
      %v443 = vunpack.c.l.b16 %v167
      %v444 = vunpack.c.h.b16 %v167
      %v445 = vunpack.c.l.b16 %v168
      %v446 = vunpack.c.h.b16 %v168
      %v447 = vunpack.c.l.b16 %v169
      %v448 = vunpack.c.h.b16 %v169
      %v449 = vunpack.c.l.b16 %v170
      %v450 = vunpack.c.h.b16 %v170
      %v451 = vunpack.c.l.b16 %v171
      %v452 = vunpack.c.h.b16 %v171
      %v453 = vunpack.c.l.b16 %v172
      %v454 = vunpack.c.h.b16 %v172
      %v455 = vunpack.c.l.b16 %v173
      %v456 = vunpack.c.h.b16 %v173
      %v457 = vunpack.c.l.b16 %v174
      %v458 = vunpack.c.h.b16 %v174
      %v459 = vunpack.c.l.b16 %v175
      %v460 = vunpack.c.h.b16 %v175
      %v461 = vunpack.c.l.b16 %v176
      %v462 = vunpack.c.h.b16 %v176
      %v463 = vunpack.c.l.b16 %v177
      %v464 = vunpack.c.h.b16 %v177
      %v465 = vunpack.c.l.b16 %v178
      %v466 = vunpack.c.h.b16 %v178
      %v467 = vunpack.c.l.b16 %v179
      %v468 = vunpack.c.h.b16 %v179
      %v469 = vunpack.c.l.b16 %v180
      %v470 = vunpack.c.h.b16 %v180
      %v471 = vunpack.c.l.b16 %v181
      %v472 = vunpack.c.h.b16 %v181
      %v473 = vunpack.c.l.b16 %v182
      %v474 = vunpack.c.h.b16 %v182
      %v475 = vunpack.c.l.b16 %v183
      %v476 = vunpack.c.h.b16 %v183
      %v477 = vunpack.c.l.b16 %v184
      %v478 = vunpack.c.h.b16 %v184
      %v479 = vunpack.c.l.b16 %v185
      %v480 = vunpack.c.h.b16 %v185
      %v481 = vunpack.c.l.b16 %v186
      %v482 = vunpack.c.h.b16 %v186
      %v483 = vunpack.c.l.b16 %v187
      %v484 = vunpack.c.h.b16 %v187
      %v485 = vunpack.c.l.b16 %v188
      %v486 = vunpack.c.h.b16 %v188
      %v487 = vunpack.c.l.b16 %v189
      %v488 = vunpack.c.h.b16 %v189
      %v489 = vunpack.c.l.b16 %v190
      %v490 = vunpack.c.h.b16 %v190
      %v491 = vunpack.c.l.b16 %v191
      %v492 = vunpack.c.h.b16 %v191
      %v493 = vunpack.c.l.b16 %v192
      %v494 = vunpack.c.h.b16 %v192
      %v495 = vunpack.c.l.b16 %v193
      %v496 = vunpack.c.h.b16 %v193
      %v497 = vunpack.c.l.b16 %v194
      %v498 = vunpack.c.h.b16 %v194
      %v499 = vunpack.c.l.b16 %v195
      %v500 = vunpack.c.h.b16 %v195
      %v501 = vunpack.c.l.b16 %v196
      %v502 = vunpack.c.h.b16 %v196
      %v503 = vunpack.c.l.b16 %v197
      %v504 = vunpack.c.h.b16 %v197
      %v505 = vunpack.c.l.b16 %v198
      %v506 = vunpack.c.h.b16 %v198
      %v507 = vunpack.c.l.b16 %v199
      %v508 = vunpack.c.h.b16 %v199
      %v509 = vunpack.c.l.b16 %v200
      %v510 = vunpack.c.h.b16 %v200
      %v511 = vunpack.c.l.b16 %v201
      %v512 = vunpack.c.h.b16 %v201
      %v513 = vunpack.c.l.b16 %v202
      %v514 = vunpack.c.h.b16 %v202
      %v515 = vunpack.c.l.b16 %v203
      %v516 = vunpack.c.h.b16 %v203
      %v517 = vunpack.c.l.b16 %v204
      %v518 = vunpack.c.h.b16 %v204
      %v519 = vunpack.c.l.b16 %v205
      %v520 = vunpack.c.h.b16 %v205
      %v521 = vunpack.c.l.b16 %v206
      %v522 = vunpack.c.h.b16 %v206
      %v523 = vunpack.c.l.b16 %v207
      %v524 = vunpack.c.h.b16 %v207
      %v525 = vunpack.c.l.b16 %v208
      %v526 = vunpack.c.h.b16 %v208
      %v527 = vunpack.c.l.b16 %v209
      %v528 = vunpack.c.h.b16 %v209
      %v529 = vunpack.c.l.b16 %v210
      %v530 = vunpack.c.h.b16 %v210
      %v531 = vunpack.c.l.b16 %v211
      %v532 = vunpack.c.h.b16 %v211
      %v533 = vunpack.c.l.b16 %v212
      %v534 = vunpack.c.h.b16 %v212
      %v535 = vunpack.c.l.b16 %v213
      %v536 = vunpack.c.h.b16 %v213
      %v537 = vunpack.c.l.b16 %v214
      %v538 = vunpack.c.h.b16 %v214
      %v539 = vunpack.c.l.b16 %v215
      %v540 = vunpack.c.h.b16 %v215
      %v541 = vunpack.c.l.b16 %v216
      %v542 = vunpack.c.h.b16 %v216
      %v543 = vunpack.c.l.b16 %v217
      %v544 = vunpack.c.h.b16 %v217
      %v545 = vunpack.c.l.b16 %v218
      %v546 = vunpack.c.h.b16 %v218
      %v547 = vunpack.c.l.b16 %v219
      %v548 = vunpack.c.h.b16 %v219
      %v549 = vunpack.c.l.b16 %v220
      %v550 = vunpack.c.h.b16 %v220
      %v551 = vunpack.c.l.b16 %v221
      %v552 = vunpack.c.h.b16 %v221
      %v553 = vunpack.c.l.b16 %v222
      %v554 = vunpack.c.h.b16 %v222
      %v555 = vunpack.c.l.b16 %v223
      %v556 = vunpack.c.h.b16 %v223
      %v557 = vunpack.c.l.b16 %v224
      %v558 = vunpack.c.h.b16 %v224
      %v559 = vunpack.c.l.b16 %v225
      %v560 = vunpack.c.h.b16 %v225
      %v561 = vunpack.c.l.b16 %v226
      %v562 = vunpack.c.h.b16 %v226
      %v563 = vunpack.c.l.b16 %v227
      %v564 = vunpack.c.h.b16 %v227
      %v565 = vunpack.c.l.b16 %v228
      %v566 = vunpack.c.h.b16 %v228
      %v567 = vunpack.c.l.b16 %v229
      %v568 = vunpack.c.h.b16 %v229
      %v569 = vunpack.c.l.b16 %v230
      %v570 = vunpack.c.h.b16 %v230
      %v571 = vunpack.c.l.b16 %v231
      %v572 = vunpack.c.h.b16 %v231
      %v573 = vunpack.c.l.b16 %v232
      %v574 = vunpack.c.h.b16 %v232
      %v575 = vunpack.c.l.b16 %v233
      %v576 = vunpack.c.h.b16 %v233
      %v577 = vunpack.c.l.b16 %v234
      %v578 = vunpack.c.h.b16 %v234
      %v579 = vunpack.c.l.b16 %v235
      %v580 = vunpack.c.h.b16 %v235
      %v581 = vunpack.c.l.b16 %v236
      %v582 = vunpack.c.h.b16 %v236
      %v583 = vunpack.c.l.b16 %v237
      %v584 = vunpack.c.h.b16 %v237
      %v585 = vunpack.c.l.b16 %v238
      %v586 = vunpack.c.h.b16 %v238
      %v587 = vunpack.c.l.b16 %v239
      %v588 = vunpack.c.h.b16 %v239
      %v589 = vunpack.c.l.b16 %v240
      %v590 = vunpack.c.h.b16 %v240
      %v591 = vunpack.c.l.b16 %v241
      %v592 = vunpack.c.h.b16 %v241
      %v593 = vunpack.c.l.b16 %v242
      %v594 = vunpack.c.h.b16 %v242
      %v595 = vunpack.c.l.b16 %v243
      %v596 = vunpack.c.h.b16 %v243
      %v597 = vunpack.c.l.b16 %v244
      %v598 = vunpack.c.h.b16 %v244
      %v599 = vunpack.c.l.b16 %v245
      %v600 = vunpack.c.h.b16 %v245
      %v601 = vunpack.c.l.b16 %v246
      %v602 = vunpack.c.h.b16 %v246
      %v603 = vunpack.c.l.b16 %v247
      %v604 = vunpack.c.h.b16 %v247
      %v605 = vunpack.c.l.b16 %v248
      %v606 = vunpack.c.h.b16 %v248
      %v607 = vunpack.c.l.b16 %v249
      %v608 = vunpack.c.h.b16 %v249
      %v609 = vunpack.c.l.b16 %v250
      %v610 = vunpack.c.h.b16 %v250
      %v611 = vunpack.c.l.b16 %v251
      %v612 = vunpack.c.h.b16 %v251
      %v613 = vunpack.c.l.b16 %v252
      %v614 = vunpack.c.h.b16 %v252
      %v615 = vunpack.c.l.b16 %v253
      %v616 = vunpack.c.h.b16 %v253
      %v617 = vunpack.c.l.b16 %v254
      %v618 = vunpack.c.h.b16 %v254
      %v619 = vunpack.c.l.b16 %v255
      %v620 = vunpack.c.h.b16 %v255
      %v621 = vunpack.c.l.b16 %v256
      %v622 = vunpack.c.h.b16 %v256
      %v623 = vunpack.c.l.b16 %v257
      %v624 = vunpack.c.h.b16 %v257
      %v625 = vunpack.c.l.b16 %v258
      %v626 = vunpack.c.h.b16 %v258
      %v627 = vunpack.c.l.b16 %v259
      %v628 = vunpack.c.h.b16 %v259
      %v629 = vunpack.c.l.b16 %v260
      %v630 = vunpack.c.h.b16 %v260
      %v631 = vunpack.c.l.b16 %v261
      %v632 = vunpack.c.h.b16 %v261
      %v633 = vunpack.c.l.b16 %v262
      %v634 = vunpack.c.h.b16 %v262
      %v635 = vunpack.c.l.b16 %v263
      %v636 = vunpack.c.h.b16 %v263
      %v637 = vunpack.c.l.b16 %v264
      %v638 = vunpack.c.h.b16 %v264
      %v639 = vunpack.c.l.b16 %v265
      %v640 = vunpack.c.h.b16 %v265
      %v641 = vunpack.c.l.b16 %v266
      %v642 = vunpack.c.h.b16 %v266
      %v643 = vunpack.c.l.b16 %v267
      %v644 = vunpack.c.h.b16 %v267
      %v645 = vunpack.c.l.b16 %v268
      %v646 = vunpack.c.h.b16 %v268
      %v647 = vunpack.c.l.b16 %v269
      %v648 = vunpack.c.h.b16 %v269
      %v649 = vunpack.c.l.b16 %v270
      %v650 = vunpack.c.h.b16 %v270
      %v651 = vunpack.c.l.b16 %v271
      %v652 = vunpack.c.h.b16 %v271
      %v653 = vunpack.c.l.b16 %v272
      %v654 = vunpack.c.h.b16 %v272
      %v655 = vunpack.c.l.b16 %v273
      %v656 = vunpack.c.h.b16 %v273
      %v657 = vunpack.c.l.b16 %v274
      %v658 = vunpack.c.h.b16 %v274
      %v659 = vunpack.c.l.b16 %v275
      %v660 = vunpack.c.h.b16 %v275
      %v661 = vunpack.c.l.b16 %v276
      %v662 = vunpack.c.h.b16 %v276
      %v663 = vunpack.c.l.b16 %v277
      %v664 = vunpack.c.h.b16 %v277
      %v665 = vunpack.c.l.b16 %v278
      %v666 = vunpack.c.h.b16 %v278
      %v667 = vunpack.c.l.b16 %v279
      %v668 = vunpack.c.h.b16 %v279
      %v669 = vunpack.c.l.b16 %v280
      %v670 = vunpack.c.h.b16 %v280
      %v671 = vpack.c.b16 %v417, %v415
      %v672 = vpack.c.b16 %v418, %v416
      %v673 = vpack.c.b16 %v421, %v419
      %v674 = vpack.c.b16 %v422, %v420
      %v675 = vpack.c.b16 %v425, %v423
      %v676 = vpack.c.b16 %v426, %v424
      %v677 = vpack.c.b16 %v429, %v427
      %v678 = vpack.c.b16 %v430, %v428
      %v679 = vpack.c.b16 %v433, %v431
      %v680 = vpack.c.b16 %v434, %v432
      %v681 = vpack.c.b16 %v437, %v435
      %v682 = vpack.c.b16 %v438, %v436
      %v683 = vpack.c.b16 %v441, %v439
      %v684 = vpack.c.b16 %v442, %v440
      %v685 = vpack.c.b16 %v445, %v443
      %v686 = vpack.c.b16 %v446, %v444
      %v687 = vpack.c.b16 %v449, %v447
      %v688 = vpack.c.b16 %v450, %v448
      %v689 = vpack.c.b16 %v453, %v451
      %v690 = vpack.c.b16 %v454, %v452
      %v691 = vpack.c.b16 %v457, %v455
      %v692 = vpack.c.b16 %v458, %v456
      %v693 = vpack.c.b16 %v461, %v459
      %v694 = vpack.c.b16 %v462, %v460
      %v695 = vpack.c.b16 %v465, %v463
      %v696 = vpack.c.b16 %v466, %v464
      %v697 = vpack.c.b16 %v469, %v467
      %v698 = vpack.c.b16 %v470, %v468
      %v699 = vpack.c.b16 %v473, %v471
      %v700 = vpack.c.b16 %v474, %v472
      %v701 = vpack.c.b16 %v477, %v475
      %v702 = vpack.c.b16 %v478, %v476
      %v703 = vpack.c.b16 %v481, %v479
      %v704 = vpack.c.b16 %v482, %v480
      %v705 = vpack.c.b16 %v485, %v483
      %v706 = vpack.c.b16 %v486, %v484
      %v707 = vpack.c.b16 %v489, %v487
      %v708 = vpack.c.b16 %v490, %v488
      %v709 = vpack.c.b16 %v493, %v491
      %v710 = vpack.c.b16 %v494, %v492
      %v711 = vpack.c.b16 %v497, %v495
      %v712 = vpack.c.b16 %v498, %v496
      %v713 = vpack.c.b16 %v501, %v499
      %v714 = vpack.c.b16 %v502, %v500
      %v715 = vpack.c.b16 %v505, %v503
      %v716 = vpack.c.b16 %v506, %v504
      %v717 = vpack.c.b16 %v509, %v507
      %v718 = vpack.c.b16 %v510, %v508
      %v719 = vpack.c.b16 %v513, %v511
      %v720 = vpack.c.b16 %v514, %v512
      %v721 = vpack.c.b16 %v517, %v515
      %v722 = vpack.c.b16 %v518, %v516
      %v723 = vpack.c.b16 %v521, %v519
      %v724 = vpack.c.b16 %v522, %v520
      %v725 = vpack.c.b16 %v525, %v523
      %v726 = vpack.c.b16 %v526, %v524
      %v727 = vpack.c.b16 %v529, %v527
      %v728 = vpack.c.b16 %v530, %v528
      %v729 = vpack.c.b16 %v533, %v531
      %v730 = vpack.c.b16 %v534, %v532
      %v731 = vpack.c.b16 %v537, %v535
      %v732 = vpack.c.b16 %v538, %v536
      %v733 = vpack.c.b16 %v541, %v539
      %v734 = vpack.c.b16 %v542, %v540
      %v735 = vpack.c.b16 %v545, %v543
      %v736 = vpack.c.b16 %v546, %v544
      %v737 = vpack.c.b16 %v549, %v547
      %v738 = vpack.c.b16 %v550, %v548
      %v739 = vpack.c.b16 %v553, %v551
      %v740 = vpack.c.b16 %v554, %v552
      %v741 = vpack.c.b16 %v557, %v555
      %v742 = vpack.c.b16 %v558, %v556
      %v743 = vpack.c.b16 %v561, %v559
      %v744 = vpack.c.b16 %v562, %v560
      %v745 = vpack.c.b16 %v565, %v563
      %v746 = vpack.c.b16 %v566, %v564
      %v747 = vpack.c.b16 %v569, %v567
      %v748 = vpack.c.b16 %v570, %v568
      %v749 = vpack.c.b16 %v573, %v571
      %v750 = vpack.c.b16 %v574, %v572
      %v751 = vpack.c.b16 %v577, %v575
      %v752 = vpack.c.b16 %v578, %v576
      %v753 = vpack.c.b16 %v581, %v579
      %v754 = vpack.c.b16 %v582, %v580
      %v755 = vpack.c.b16 %v585, %v583
      %v756 = vpack.c.b16 %v586, %v584
      %v757 = vpack.c.b16 %v589, %v587
      %v758 = vpack.c.b16 %v590, %v588
      %v759 = vpack.c.b16 %v593, %v591
      %v760 = vpack.c.b16 %v594, %v592
      %v761 = vpack.c.b16 %v597, %v595
      %v762 = vpack.c.b16 %v598, %v596
      %v763 = vpack.c.b16 %v601, %v599
      %v764 = vpack.c.b16 %v602, %v600
      %v765 = vpack.c.b16 %v605, %v603
      %v766 = vpack.c.b16 %v606, %v604
      %v767 = vpack.c.b16 %v609, %v607
      %v768 = vpack.c.b16 %v610, %v608
      %v769 = vpack.c.b16 %v613, %v611
      %v770 = vpack.c.b16 %v614, %v612
      %v771 = vpack.c.b16 %v617, %v615
      %v772 = vpack.c.b16 %v618, %v616
      %v773 = vpack.c.b16 %v621, %v619
      %v774 = vpack.c.b16 %v622, %v620
      %v775 = vpack.c.b16 %v625, %v623
      %v776 = vpack.c.b16 %v626, %v624
      %v777 = vpack.c.b16 %v629, %v627
      %v778 = vpack.c.b16 %v630, %v628
      %v779 = vpack.c.b16 %v633, %v631
      %v780 = vpack.c.b16 %v634, %v632
      %v781 = vpack.c.b16 %v637, %v635
      %v782 = vpack.c.b16 %v638, %v636
      %v783 = vpack.c.b16 %v641, %v639
      %v784 = vpack.c.b16 %v642, %v640
      %v785 = vpack.c.b16 %v645, %v643
      %v786 = vpack.c.b16 %v646, %v644
      %v787 = vpack.c.b16 %v649, %v647
      %v788 = vpack.c.b16 %v650, %v648
      %v789 = vpack.c.b16 %v653, %v651
      %v790 = vpack.c.b16 %v654, %v652
      %v791 = vpack.c.b16 %v657, %v655
      %v792 = vpack.c.b16 %v658, %v656
      %v793 = vpack.c.b16 %v661, %v659
      %v794 = vpack.c.b16 %v662, %v660
      %v795 = vpack.c.b16 %v665, %v663
      %v796 = vpack.c.b16 %v666, %v664
      %v797 = vpack.c.b16 %v669, %v667
      %v798 = vpack.c.b16 %v670, %v668
      %927 = vmatpush.bf16.msra.mxu0 %v685
      %928 = vmatpush.bf16.msra.mxu0 %v683
      %929 = vmatpush.bf16.msra.mxu0 %v681
      %930 = vmatpush.bf16.msra.mxu0 %v679
      %931 = vmatpush.bf16.msra.mxu0 %v677
      %932 = vmatpush.bf16.msra.mxu0 %v675
      %933 = vmatpush.bf16.msra.mxu0 %v673
      %934 = vmatpush.bf16.msra.mxu0 %v671
      %935 = vmatmul.bf16.gmra.mxu0 %v145
      %v936 = vpop.f32.mrf.mxu0
      %v937 = vadd.f32 %v283, %v936
      %v938 = vpop.f32.mrf.mxu0
      %939 = vdwg.mxu0
      %940 = vmatpush.bf16.msra.mxu0 %v701
      %941 = vmatpush.bf16.msra.mxu0 %v699
      %942 = vmatpush.bf16.msra.mxu0 %v697
      %943 = vmatpush.bf16.msra.mxu0 %v695
      %944 = vmatpush.bf16.msra.mxu0 %v693
      %945 = vmatpush.bf16.msra.mxu0 %v691
      %946 = vmatpush.bf16.msra.mxu0 %v689
      %947 = vmatpush.bf16.msra.mxu0 %v687
      %948 = vmatmul.bf16.gmra.mxu0 %v146
      %v949 = vpop.f32.mrf.mxu0
      %v950 = vadd.f32 %v937, %v949
      %v951 = vpop.f32.mrf.mxu0
      %952 = vdwg.mxu0
      %953 = vmatpush.bf16.msra.mxu0 %v717
      %954 = vmatpush.bf16.msra.mxu0 %v715
      %955 = vmatpush.bf16.msra.mxu0 %v713
      %956 = vmatpush.bf16.msra.mxu0 %v711
      %957 = vmatpush.bf16.msra.mxu0 %v709
      %958 = vmatpush.bf16.msra.mxu0 %v707
      %959 = vmatpush.bf16.msra.mxu0 %v705
      %960 = vmatpush.bf16.msra.mxu0 %v703
      %961 = vmatmul.bf16.gmra.mxu0 %v147
      %v962 = vpop.f32.mrf.mxu0
      %v963 = vadd.f32 %v950, %v962
      %v964 = vpop.f32.mrf.mxu0
      %965 = vdwg.mxu0
      %966 = vmatpush.bf16.msra.mxu0 %v733
      %967 = vmatpush.bf16.msra.mxu0 %v731
      %968 = vmatpush.bf16.msra.mxu0 %v729
      %969 = vmatpush.bf16.msra.mxu0 %v727
      %970 = vmatpush.bf16.msra.mxu0 %v725
      %971 = vmatpush.bf16.msra.mxu0 %v723
      %972 = vmatpush.bf16.msra.mxu0 %v721
      %973 = vmatpush.bf16.msra.mxu0 %v719
      %974 = vmatmul.bf16.gmra.mxu0 %v148
      %v975 = vpop.f32.mrf.mxu0
      %v976 = vadd.f32 %v963, %v975
      %v977 = vpop.f32.mrf.mxu0
      %978 = vdwg.mxu0
      %979 = vmatpush.bf16.msra.mxu0 %v749
      %980 = vmatpush.bf16.msra.mxu0 %v747
      %981 = vmatpush.bf16.msra.mxu0 %v745
      %982 = vmatpush.bf16.msra.mxu0 %v743
      %983 = vmatpush.bf16.msra.mxu0 %v741
      %984 = vmatpush.bf16.msra.mxu0 %v739
      %985 = vmatpush.bf16.msra.mxu0 %v737
      %986 = vmatpush.bf16.msra.mxu0 %v735
      %987 = vmatmul.bf16.gmra.mxu0 %v149
      %v988 = vpop.f32.mrf.mxu0
      %v989 = vadd.f32 %v976, %v988
      %v990 = vpop.f32.mrf.mxu0
      %991 = vdwg.mxu0
      %992 = vmatpush.bf16.msra.mxu0 %v765
      %993 = vmatpush.bf16.msra.mxu0 %v763
      %994 = vmatpush.bf16.msra.mxu0 %v761
      %995 = vmatpush.bf16.msra.mxu0 %v759
      %996 = vmatpush.bf16.msra.mxu0 %v757
      %997 = vmatpush.bf16.msra.mxu0 %v755
      %998 = vmatpush.bf16.msra.mxu0 %v753
      %999 = vmatpush.bf16.msra.mxu0 %v751
      %1000 = vmatmul.bf16.gmra.mxu0 %v150
      %v1001 = vpop.f32.mrf.mxu0
      %v1002 = vadd.f32 %v989, %v1001
      %v1003 = vpop.f32.mrf.mxu0
      %1004 = vdwg.mxu0
      %1005 = vmatpush.bf16.msra.mxu0 %v781
      %1006 = vmatpush.bf16.msra.mxu0 %v779
      %1007 = vmatpush.bf16.msra.mxu0 %v777
      %1008 = vmatpush.bf16.msra.mxu0 %v775
      %1009 = vmatpush.bf16.msra.mxu0 %v773
      %1010 = vmatpush.bf16.msra.mxu0 %v771
      %1011 = vmatpush.bf16.msra.mxu0 %v769
      %1012 = vmatpush.bf16.msra.mxu0 %v767
      %1013 = vmatmul.bf16.gmra.mxu0 %v151
      %v1014 = vpop.f32.mrf.mxu0
      %v1015 = vadd.f32 %v1002, %v1014
      %v1016 = vpop.f32.mrf.mxu0
      %1017 = vdwg.mxu0
      %1018 = vmatpush.bf16.msra.mxu0 %v797
      %1019 = vmatpush.bf16.msra.mxu0 %v795
      %1020 = vmatpush.bf16.msra.mxu0 %v793
      %1021 = vmatpush.bf16.msra.mxu0 %v791
      %1022 = vmatpush.bf16.msra.mxu0 %v789
      %1023 = vmatpush.bf16.msra.mxu0 %v787
      %1024 = vmatpush.bf16.msra.mxu0 %v785
      %1025 = vmatpush.bf16.msra.mxu0 %v783
      %1026 = vmatmul.bf16.gmra.mxu0 %v152
      %v1027 = vpop.f32.mrf.mxu0
      %v1028 = vadd.f32 %v1015, %v1027
      %v1029 = vpop.f32.mrf.mxu0
      %1030 = vdwg.mxu0
      %1031 = vmatpush.bf16.msra.mxu0 %v686
      %1032 = vmatpush.bf16.msra.mxu0 %v684
      %1033 = vmatpush.bf16.msra.mxu0 %v682
      %1034 = vmatpush.bf16.msra.mxu0 %v680
      %1035 = vmatpush.bf16.msra.mxu0 %v678
      %1036 = vmatpush.bf16.msra.mxu0 %v676
      %1037 = vmatpush.bf16.msra.mxu0 %v674
      %1038 = vmatpush.bf16.msra.mxu0 %v672
      %1039 = vmatmul.bf16.gmra.mxu0 %v145
      %v1040 = vpop.f32.mrf.mxu0
      %v1041 = vadd.f32 %v284, %v1040
      %v1042 = vpop.f32.mrf.mxu0
      %1043 = vdwg.mxu0
      %1044 = vmatpush.bf16.msra.mxu0 %v702
      %1045 = vmatpush.bf16.msra.mxu0 %v700
      %1046 = vmatpush.bf16.msra.mxu0 %v698
      %1047 = vmatpush.bf16.msra.mxu0 %v696
      %1048 = vmatpush.bf16.msra.mxu0 %v694
      %1049 = vmatpush.bf16.msra.mxu0 %v692
      %1050 = vmatpush.bf16.msra.mxu0 %v690
      %1051 = vmatpush.bf16.msra.mxu0 %v688
      %1052 = vmatmul.bf16.gmra.mxu0 %v146
      %v1053 = vpop.f32.mrf.mxu0
      %v1054 = vadd.f32 %v1041, %v1053
      %v1055 = vpop.f32.mrf.mxu0
      %1056 = vdwg.mxu0
      %1057 = vmatpush.bf16.msra.mxu0 %v718
      %1058 = vmatpush.bf16.msra.mxu0 %v716
      %1059 = vmatpush.bf16.msra.mxu0 %v714
      %1060 = vmatpush.bf16.msra.mxu0 %v712
      %1061 = vmatpush.bf16.msra.mxu0 %v710
      %1062 = vmatpush.bf16.msra.mxu0 %v708
      %1063 = vmatpush.bf16.msra.mxu0 %v706
      %1064 = vmatpush.bf16.msra.mxu0 %v704
      %1065 = vmatmul.bf16.gmra.mxu0 %v147
      %v1066 = vpop.f32.mrf.mxu0
      %v1067 = vadd.f32 %v1054, %v1066
      %v1068 = vpop.f32.mrf.mxu0
      %1069 = vdwg.mxu0
      %1070 = vmatpush.bf16.msra.mxu0 %v734
      %1071 = vmatpush.bf16.msra.mxu0 %v732
      %1072 = vmatpush.bf16.msra.mxu0 %v730
      %1073 = vmatpush.bf16.msra.mxu0 %v728
      %1074 = vmatpush.bf16.msra.mxu0 %v726
      %1075 = vmatpush.bf16.msra.mxu0 %v724
      %1076 = vmatpush.bf16.msra.mxu0 %v722
      %1077 = vmatpush.bf16.msra.mxu0 %v720
      %1078 = vmatmul.bf16.gmra.mxu0 %v148
      %v1079 = vpop.f32.mrf.mxu0
      %v1080 = vadd.f32 %v1067, %v1079
      %v1081 = vpop.f32.mrf.mxu0
      %1082 = vdwg.mxu0
      %1083 = vmatpush.bf16.msra.mxu0 %v750
      %1084 = vmatpush.bf16.msra.mxu0 %v748
      %1085 = vmatpush.bf16.msra.mxu0 %v746
      %1086 = vmatpush.bf16.msra.mxu0 %v744
      %1087 = vmatpush.bf16.msra.mxu0 %v742
      %1088 = vmatpush.bf16.msra.mxu0 %v740
      %1089 = vmatpush.bf16.msra.mxu0 %v738
      %1090 = vmatpush.bf16.msra.mxu0 %v736
      %1091 = vmatmul.bf16.gmra.mxu0 %v149
      %v1092 = vpop.f32.mrf.mxu0
      %v1093 = vadd.f32 %v1080, %v1092
      %v1094 = vpop.f32.mrf.mxu0
      %1095 = vdwg.mxu0
      %1096 = vmatpush.bf16.msra.mxu0 %v766
      %1097 = vmatpush.bf16.msra.mxu0 %v764
      %1098 = vmatpush.bf16.msra.mxu0 %v762
      %1099 = vmatpush.bf16.msra.mxu0 %v760
      %1100 = vmatpush.bf16.msra.mxu0 %v758
      %1101 = vmatpush.bf16.msra.mxu0 %v756
      %1102 = vmatpush.bf16.msra.mxu0 %v754
      %1103 = vmatpush.bf16.msra.mxu0 %v752
      %1104 = vmatmul.bf16.gmra.mxu0 %v150
      %v1105 = vpop.f32.mrf.mxu0
      %v1106 = vadd.f32 %v1093, %v1105
      %v1107 = vpop.f32.mrf.mxu0
      %1108 = vdwg.mxu0
      %1109 = vmatpush.bf16.msra.mxu0 %v782
      %1110 = vmatpush.bf16.msra.mxu0 %v780
      %1111 = vmatpush.bf16.msra.mxu0 %v778
      %1112 = vmatpush.bf16.msra.mxu0 %v776
      %1113 = vmatpush.bf16.msra.mxu0 %v774
      %1114 = vmatpush.bf16.msra.mxu0 %v772
      %1115 = vmatpush.bf16.msra.mxu0 %v770
      %1116 = vmatpush.bf16.msra.mxu0 %v768
      %1117 = vmatmul.bf16.gmra.mxu0 %v151
      %v1118 = vpop.f32.mrf.mxu0
      %v1119 = vadd.f32 %v1106, %v1118
      %v1120 = vpop.f32.mrf.mxu0
      %1121 = vdwg.mxu0
      %1122 = vmatpush.bf16.msra.mxu0 %v798
      %1123 = vmatpush.bf16.msra.mxu0 %v796
      %1124 = vmatpush.bf16.msra.mxu0 %v794
      %1125 = vmatpush.bf16.msra.mxu0 %v792
      %1126 = vmatpush.bf16.msra.mxu0 %v790
      %1127 = vmatpush.bf16.msra.mxu0 %v788
      %1128 = vmatpush.bf16.msra.mxu0 %v786
      %1129 = vmatpush.bf16.msra.mxu0 %v784
      %1130 = vmatmul.bf16.gmra.mxu0 %v152
      %v1131 = vpop.f32.mrf.mxu0
      %v1132 = vadd.f32 %v1119, %v1131
      %v1133 = vpop.f32.mrf.mxu0
      %1134 = vdwg.mxu0
      %v1135 = vmul.f32 %v1132, 0.5
      %v1136 = vmul.f32 %v1135, 1.442695
      %v1137 = vpow.pop %v1136
      %v1138 = vld [vmem:[#allocation13] sm:$0x3]
      %v1139 = vmul.f32 %v1137, %v1138
      %v1140 = vadd.f32 %v1028, %v1139
      %v1141 = vpack.c.bf16 %v1140, %v1140
      %1142 = vst [vmem:[#allocation2] sm:$0x1] %v1141
      %v1143 = vmul.f32 %v1137, %v1137
      %v1144 = vadd.f32 %v1132, 1.0
      %v1145 = vmul.f32 %v1028, %v1028
      %v1146 = vsub.f32 %v1144, %v1145
      %v1147 = vsub.f32 %v1146, %v1143
      %v1148 = vmul.f32 %v1147, -0.5
      %vm1149 = vcmask 1041408
      %v1150 = vsel %vm1149, %v1148, 0.0
      %1151 = vadd.xlane.f32.xlu0 %v1150
      %v1152 = vpop.xlane.xlu0 %1151
      %v1153 = vrot.slane %v1152, 4
      %v1154 = vadd.f32 %v1152, %v1153
      %v1155 = vrot.slane %v1154, 2
      %v1156 = vadd.f32 %v1154, %v1155
      %v1157 = vrot.slane %v1156, 1
      %v1158 = vadd.f32 %v1156, %v1157
      %s1159 = vtos %v1158
      %s1160 = scalar_lea.smem [#allocation4], 0
      %1161 = sst [smem:[%s1160]] %s1159
      %1162 = vst [vmem:[#allocation3] sm:$0xff] 0.0
      %1163 = vst [vmem:[#allocation3 + $0x8] sm:$0xff] 0.0
    $region57: #{tpu_custom_call.1} parent=1 // pred_fallthru
      _
    %v1164 = vld [vmem:[#allocation2] sm:$0x1]
    %v1165 = vld [vmem:[#allocation14] sm:$0xff]
    %v1166 = vld [vmem:[#allocation14 + $0x8] sm:$0xff]
    %v1167 = vld [vmem:[#allocation14 + $0x10] sm:$0xff]
    %v1168 = vld [vmem:[#allocation14 + $0x18] sm:$0xff]
    %v1169 = vld [vmem:[#allocation14 + $0x20] sm:$0xff]
    %v1170 = vld [vmem:[#allocation14 + $0x28] sm:$0xff]
    %v1171 = vld [vmem:[#allocation14 + $0x30] sm:$0xff]
    %v1172 = vld [vmem:[#allocation14 + $0x38] sm:$0xff]
    %v1173 = vld [vmem:[#allocation14 + $0x40] sm:$0xff]
    %v1174 = vld [vmem:[#allocation14 + $0x48] sm:$0xff]
    %v1175 = vld [vmem:[#allocation14 + $0x50] sm:$0xff]
    %v1176 = vld [vmem:[#allocation14 + $0x58] sm:$0xff]
    %v1177 = vld [vmem:[#allocation14 + $0x60] sm:$0xff]
    %v1178 = vld [vmem:[#allocation14 + $0x68] sm:$0xff]
    %v1179 = vld [vmem:[#allocation14 + $0x70] sm:$0xff]
    %v1180 = vld [vmem:[#allocation14 + $0x78] sm:$0xff]
    %v1181 = vld [vmem:[#allocation14 + $0x80] sm:$0xff]
    %v1182 = vld [vmem:[#allocation14 + $0x88] sm:$0xff]
    %v1183 = vld [vmem:[#allocation14 + $0x90] sm:$0xff]
    %v1184 = vld [vmem:[#allocation14 + $0x98] sm:$0xff]
    %v1185 = vld [vmem:[#allocation14 + $0xa0] sm:$0xff]
    %v1186 = vld [vmem:[#allocation14 + $0xa8] sm:$0xff]
    %v1187 = vld [vmem:[#allocation14 + $0xb0] sm:$0xff]
    %v1188 = vld [vmem:[#allocation14 + $0xb8] sm:$0xff]
    %v1189 = vld [vmem:[#allocation14 + $0xc0] sm:$0xff]
    %v1190 = vld [vmem:[#allocation14 + $0xc8] sm:$0xff]
    %v1191 = vld [vmem:[#allocation14 + $0xd0] sm:$0xff]
    %v1192 = vld [vmem:[#allocation14 + $0xd8] sm:$0xff]
    %v1193 = vld [vmem:[#allocation14 + $0xe0] sm:$0xff]
    %v1194 = vld [vmem:[#allocation14 + $0xe8] sm:$0xff]
    %v1195 = vld [vmem:[#allocation14 + $0xf0] sm:$0xff]
    %v1196 = vld [vmem:[#allocation14 + $0xf8] sm:$0xff]
    %v1197 = vld [vmem:[#allocation14 + $0x100] sm:$0xff]
    %v1198 = vld [vmem:[#allocation14 + $0x108] sm:$0xff]
    %v1199 = vld [vmem:[#allocation14 + $0x110] sm:$0xff]
    %v1200 = vld [vmem:[#allocation14 + $0x118] sm:$0xff]
    %v1201 = vld [vmem:[#allocation14 + $0x120] sm:$0xff]
    %v1202 = vld [vmem:[#allocation14 + $0x128] sm:$0xff]
    %v1203 = vld [vmem:[#allocation14 + $0x130] sm:$0xff]
    %v1204 = vld [vmem:[#allocation14 + $0x138] sm:$0xff]
    %v1205 = vld [vmem:[#allocation14 + $0x140] sm:$0xff]
    %v1206 = vld [vmem:[#allocation14 + $0x148] sm:$0xff]
    %v1207 = vld [vmem:[#allocation14 + $0x150] sm:$0xff]
    %v1208 = vld [vmem:[#allocation14 + $0x158] sm:$0xff]
    %v1209 = vld [vmem:[#allocation14 + $0x160] sm:$0xff]
    %v1210 = vld [vmem:[#allocation14 + $0x168] sm:$0xff]
    %v1211 = vld [vmem:[#allocation14 + $0x170] sm:$0xff]
    %v1212 = vld [vmem:[#allocation14 + $0x178] sm:$0xff]
    %v1213 = vld [vmem:[#allocation14 + $0x180] sm:$0xff]
    %v1214 = vld [vmem:[#allocation14 + $0x188] sm:$0xff]
    %v1215 = vld [vmem:[#allocation14 + $0x190] sm:$0xff]
    %v1216 = vld [vmem:[#allocation14 + $0x198] sm:$0xff]
    %v1217 = vld [vmem:[#allocation14 + $0x1a0] sm:$0xff]
    %v1218 = vld [vmem:[#allocation14 + $0x1a8] sm:$0xff]
    %v1219 = vld [vmem:[#allocation14 + $0x1b0] sm:$0xff]
    %v1220 = vld [vmem:[#allocation14 + $0x1b8] sm:$0xff]
    %v1221 = vld [vmem:[#allocation14 + $0x1c0] sm:$0xff]
    %v1222 = vld [vmem:[#allocation14 + $0x1c8] sm:$0xff]
    %v1223 = vld [vmem:[#allocation14 + $0x1d0] sm:$0xff]
    %v1224 = vld [vmem:[#allocation14 + $0x1d8] sm:$0xff]
    %v1225 = vld [vmem:[#allocation14 + $0x1e0] sm:$0xff]
    %v1226 = vld [vmem:[#allocation14 + $0x1e8] sm:$0xff]
    %v1227 = vld [vmem:[#allocation14 + $0x1f0] sm:$0xff]
    %v1228 = vld [vmem:[#allocation14 + $0x1f8] sm:$0xff]
    %v1229 = vld [vmem:[#allocation16] sm:$0xff]
    %v1231 = vperm.slane %v1229, 0
    %v1232 = vperm.slane %v1229, 1
    %v1233 = vperm.slane %v1229, 2
    %v1234 = vperm.slane %v1229, 3
    %v1235 = vperm.slane %v1229, 4
    %v1236 = vperm.slane %v1229, 5
    %v1237 = vperm.slane %v1229, 6
    %v1238 = vperm.slane %v1229, 7
    %v1311 = vunpack.c.l.b16 %v1165
    %v1312 = vunpack.c.h.b16 %v1165
    %v1313 = vunpack.c.l.b16 %v1166
    %v1314 = vunpack.c.h.b16 %v1166
    %v1315 = vunpack.c.l.b16 %v1167
    %v1316 = vunpack.c.h.b16 %v1167
    %v1317 = vunpack.c.l.b16 %v1168
    %v1318 = vunpack.c.h.b16 %v1168
    %v1319 = vunpack.c.l.b16 %v1169
    %v1320 = vunpack.c.h.b16 %v1169
    %v1321 = vunpack.c.l.b16 %v1170
    %v1322 = vunpack.c.h.b16 %v1170
    %v1323 = vunpack.c.l.b16 %v1171
    %v1324 = vunpack.c.h.b16 %v1171
    %v1325 = vunpack.c.l.b16 %v1172
    %v1326 = vunpack.c.h.b16 %v1172
    %v1327 = vunpack.c.l.b16 %v1173
    %v1328 = vunpack.c.h.b16 %v1173
    %v1329 = vunpack.c.l.b16 %v1174
    %v1330 = vunpack.c.h.b16 %v1174
    %v1331 = vunpack.c.l.b16 %v1175
    %v1332 = vunpack.c.h.b16 %v1175
    %v1333 = vunpack.c.l.b16 %v1176
    %v1334 = vunpack.c.h.b16 %v1176
    %v1335 = vunpack.c.l.b16 %v1177
    %v1336 = vunpack.c.h.b16 %v1177
    %v1337 = vunpack.c.l.b16 %v1178
    %v1338 = vunpack.c.h.b16 %v1178
    %v1339 = vunpack.c.l.b16 %v1179
    %v1340 = vunpack.c.h.b16 %v1179
    %v1341 = vunpack.c.l.b16 %v1180
    %v1342 = vunpack.c.h.b16 %v1180
    %v1343 = vunpack.c.l.b16 %v1181
    %v1344 = vunpack.c.h.b16 %v1181
    %v1345 = vunpack.c.l.b16 %v1182
    %v1346 = vunpack.c.h.b16 %v1182
    %v1347 = vunpack.c.l.b16 %v1183
    %v1348 = vunpack.c.h.b16 %v1183
    %v1349 = vunpack.c.l.b16 %v1184
    %v1350 = vunpack.c.h.b16 %v1184
    %v1351 = vunpack.c.l.b16 %v1185
    %v1352 = vunpack.c.h.b16 %v1185
    %v1353 = vunpack.c.l.b16 %v1186
    %v1354 = vunpack.c.h.b16 %v1186
    %v1355 = vunpack.c.l.b16 %v1187
    %v1356 = vunpack.c.h.b16 %v1187
    %v1357 = vunpack.c.l.b16 %v1188
    %v1358 = vunpack.c.h.b16 %v1188
    %v1359 = vunpack.c.l.b16 %v1189
    %v1360 = vunpack.c.h.b16 %v1189
    %v1361 = vunpack.c.l.b16 %v1190
    %v1362 = vunpack.c.h.b16 %v1190
    %v1363 = vunpack.c.l.b16 %v1191
    %v1364 = vunpack.c.h.b16 %v1191
    %v1365 = vunpack.c.l.b16 %v1192
    %v1366 = vunpack.c.h.b16 %v1192
    %v1367 = vunpack.c.l.b16 %v1193
    %v1368 = vunpack.c.h.b16 %v1193
    %v1369 = vunpack.c.l.b16 %v1194
    %v1370 = vunpack.c.h.b16 %v1194
    %v1371 = vunpack.c.l.b16 %v1195
    %v1372 = vunpack.c.h.b16 %v1195
    %v1373 = vunpack.c.l.b16 %v1196
    %v1374 = vunpack.c.h.b16 %v1196
    %v1375 = vunpack.c.l.b16 %v1197
    %v1376 = vunpack.c.h.b16 %v1197
    %v1377 = vunpack.c.l.b16 %v1198
    %v1378 = vunpack.c.h.b16 %v1198
    %v1379 = vunpack.c.l.b16 %v1199
    %v1380 = vunpack.c.h.b16 %v1199
    %v1381 = vunpack.c.l.b16 %v1200
    %v1382 = vunpack.c.h.b16 %v1200
    %v1383 = vunpack.c.l.b16 %v1201
    %v1384 = vunpack.c.h.b16 %v1201
    %v1385 = vunpack.c.l.b16 %v1202
    %v1386 = vunpack.c.h.b16 %v1202
    %v1387 = vunpack.c.l.b16 %v1203
    %v1388 = vunpack.c.h.b16 %v1203
    %v1389 = vunpack.c.l.b16 %v1204
    %v1390 = vunpack.c.h.b16 %v1204
    %v1391 = vunpack.c.l.b16 %v1205
    %v1392 = vunpack.c.h.b16 %v1205
    %v1393 = vunpack.c.l.b16 %v1206
    %v1394 = vunpack.c.h.b16 %v1206
    %v1395 = vunpack.c.l.b16 %v1207
    %v1396 = vunpack.c.h.b16 %v1207
    %v1397 = vunpack.c.l.b16 %v1208
    %v1398 = vunpack.c.h.b16 %v1208
    %v1399 = vunpack.c.l.b16 %v1209
    %v1400 = vunpack.c.h.b16 %v1209
    %v1401 = vunpack.c.l.b16 %v1210
    %v1402 = vunpack.c.h.b16 %v1210
    %v1403 = vunpack.c.l.b16 %v1211
    %v1404 = vunpack.c.h.b16 %v1211
    %v1405 = vunpack.c.l.b16 %v1212
    %v1406 = vunpack.c.h.b16 %v1212
    %v1407 = vunpack.c.l.b16 %v1213
    %v1408 = vunpack.c.h.b16 %v1213
    %v1409 = vunpack.c.l.b16 %v1214
    %v1410 = vunpack.c.h.b16 %v1214
    %v1411 = vunpack.c.l.b16 %v1215
    %v1412 = vunpack.c.h.b16 %v1215
    %v1413 = vunpack.c.l.b16 %v1216
    %v1414 = vunpack.c.h.b16 %v1216
    %v1415 = vunpack.c.l.b16 %v1217
    %v1416 = vunpack.c.h.b16 %v1217
    %v1417 = vunpack.c.l.b16 %v1218
    %v1418 = vunpack.c.h.b16 %v1218
    %v1419 = vunpack.c.l.b16 %v1219
    %v1420 = vunpack.c.h.b16 %v1219
    %v1421 = vunpack.c.l.b16 %v1220
    %v1422 = vunpack.c.h.b16 %v1220
    %v1423 = vunpack.c.l.b16 %v1221
    %v1424 = vunpack.c.h.b16 %v1221
    %v1425 = vunpack.c.l.b16 %v1222
    %v1426 = vunpack.c.h.b16 %v1222
    %v1427 = vunpack.c.l.b16 %v1223
    %v1428 = vunpack.c.h.b16 %v1223
    %v1429 = vunpack.c.l.b16 %v1224
    %v1430 = vunpack.c.h.b16 %v1224
    %v1431 = vunpack.c.l.b16 %v1225
    %v1432 = vunpack.c.h.b16 %v1225
    %v1433 = vunpack.c.l.b16 %v1226
    %v1434 = vunpack.c.h.b16 %v1226
    %v1435 = vunpack.c.l.b16 %v1227
    %v1436 = vunpack.c.h.b16 %v1227
    %v1437 = vunpack.c.l.b16 %v1228
    %v1438 = vunpack.c.h.b16 %v1228
    %v1439 = vpack.c.b16 %v1319, %v1311
    %v1440 = vpack.c.b16 %v1320, %v1312
    %v1441 = vpack.c.b16 %v1321, %v1313
    %v1442 = vpack.c.b16 %v1322, %v1314
    %v1443 = vpack.c.b16 %v1323, %v1315
    %v1444 = vpack.c.b16 %v1324, %v1316
    %v1445 = vpack.c.b16 %v1325, %v1317
    %v1446 = vpack.c.b16 %v1326, %v1318
    %v1447 = vpack.c.b16 %v1335, %v1327
    %v1448 = vpack.c.b16 %v1336, %v1328
    %v1449 = vpack.c.b16 %v1337, %v1329
    %v1450 = vpack.c.b16 %v1338, %v1330
    %v1451 = vpack.c.b16 %v1339, %v1331
    %v1452 = vpack.c.b16 %v1340, %v1332
    %v1453 = vpack.c.b16 %v1341, %v1333
    %v1454 = vpack.c.b16 %v1342, %v1334
    %v1455 = vpack.c.b16 %v1351, %v1343
    %v1456 = vpack.c.b16 %v1352, %v1344
    %v1457 = vpack.c.b16 %v1353, %v1345
    %v1458 = vpack.c.b16 %v1354, %v1346
    %v1459 = vpack.c.b16 %v1355, %v1347
    %v1460 = vpack.c.b16 %v1356, %v1348
    %v1461 = vpack.c.b16 %v1357, %v1349
    %v1462 = vpack.c.b16 %v1358, %v1350
    %v1463 = vpack.c.b16 %v1367, %v1359
    %v1464 = vpack.c.b16 %v1368, %v1360
    %v1465 = vpack.c.b16 %v1369, %v1361
    %v1466 = vpack.c.b16 %v1370, %v1362
    %v1467 = vpack.c.b16 %v1371, %v1363
    %v1468 = vpack.c.b16 %v1372, %v1364
    %v1469 = vpack.c.b16 %v1373, %v1365
    %v1470 = vpack.c.b16 %v1374, %v1366
    %v1471 = vpack.c.b16 %v1383, %v1375
    %v1472 = vpack.c.b16 %v1384, %v1376
    %v1473 = vpack.c.b16 %v1385, %v1377
    %v1474 = vpack.c.b16 %v1386, %v1378
    %v1475 = vpack.c.b16 %v1387, %v1379
    %v1476 = vpack.c.b16 %v1388, %v1380
    %v1477 = vpack.c.b16 %v1389, %v1381
    %v1478 = vpack.c.b16 %v1390, %v1382
    %v1479 = vpack.c.b16 %v1399, %v1391
    %v1480 = vpack.c.b16 %v1400, %v1392
    %v1481 = vpack.c.b16 %v1401, %v1393
    %v1482 = vpack.c.b16 %v1402, %v1394
    %v1483 = vpack.c.b16 %v1403, %v1395
    %v1484 = vpack.c.b16 %v1404, %v1396
    %v1485 = vpack.c.b16 %v1405, %v1397
    %v1486 = vpack.c.b16 %v1406, %v1398
    %v1487 = vpack.c.b16 %v1415, %v1407
    %v1488 = vpack.c.b16 %v1416, %v1408
    %v1489 = vpack.c.b16 %v1417, %v1409
    %v1490 = vpack.c.b16 %v1418, %v1410
    %v1491 = vpack.c.b16 %v1419, %v1411
    %v1492 = vpack.c.b16 %v1420, %v1412
    %v1493 = vpack.c.b16 %v1421, %v1413
    %v1494 = vpack.c.b16 %v1422, %v1414
    %v1495 = vpack.c.b16 %v1431, %v1423
    %v1496 = vpack.c.b16 %v1432, %v1424
    %v1497 = vpack.c.b16 %v1433, %v1425
    %v1498 = vpack.c.b16 %v1434, %v1426
    %v1499 = vpack.c.b16 %v1435, %v1427
    %v1500 = vpack.c.b16 %v1436, %v1428
    %v1501 = vpack.c.b16 %v1437, %v1429
    %v1502 = vpack.c.b16 %v1438, %v1430
    %1567 = vmatpush.bf16.msra.mxu0 %v1495
    %1568 = vmatpush.bf16.msra.mxu0 %v1487
    %1569 = vmatpush.bf16.msra.mxu0 %v1479
    %1570 = vmatpush.bf16.msra.mxu0 %v1471
    %1571 = vmatpush.bf16.msra.mxu0 %v1463
    %1572 = vmatpush.bf16.msra.mxu0 %v1455
    %1573 = vmatpush.bf16.msra.mxu0 %v1447
    %1574 = vmatpush.bf16.msra.mxu0 %v1439
    %1575 = vmatmul.bf16.gmra.mxu0 %v1164
    %v1576 = vpop.f32.mrf.mxu0
    %v1577 = vadd.f32 %v1231, %v1576
    %v1578 = vpop.f32.mrf.mxu0
    %1579 = vdwg.mxu0
    %1580 = vmatpush.bf16.msra.mxu0 %v1496
    %1581 = vmatpush.bf16.msra.mxu0 %v1488
    %1582 = vmatpush.bf16.msra.mxu0 %v1480
    %1583 = vmatpush.bf16.msra.mxu0 %v1472
    %1584 = vmatpush.bf16.msra.mxu0 %v1464
    %1585 = vmatpush.bf16.msra.mxu0 %v1456
    %1586 = vmatpush.bf16.msra.mxu0 %v1448
    %1587 = vmatpush.bf16.msra.mxu0 %v1440
    %1588 = vmatmul.bf16.gmra.mxu0 %v1164
    %v1589 = vpop.f32.mrf.mxu0
    %v1590 = vadd.f32 %v1232, %v1589
    %v1591 = vpop.f32.mrf.mxu0
    %1592 = vdwg.mxu0
    %1593 = vmatpush.bf16.msra.mxu0 %v1497
    %1594 = vmatpush.bf16.msra.mxu0 %v1489
    %1595 = vmatpush.bf16.msra.mxu0 %v1481
    %1596 = vmatpush.bf16.msra.mxu0 %v1473
    %1597 = vmatpush.bf16.msra.mxu0 %v1465
    %1598 = vmatpush.bf16.msra.mxu0 %v1457
    %1599 = vmatpush.bf16.msra.mxu0 %v1449
    %1600 = vmatpush.bf16.msra.mxu0 %v1441
    %1601 = vmatmul.bf16.gmra.mxu0 %v1164
    %v1602 = vpop.f32.mrf.mxu0
    %v1603 = vadd.f32 %v1233, %v1602
    %v1604 = vpop.f32.mrf.mxu0
    %1605 = vdwg.mxu0
    %1606 = vmatpush.bf16.msra.mxu0 %v1498
    %1607 = vmatpush.bf16.msra.mxu0 %v1490
    %1608 = vmatpush.bf16.msra.mxu0 %v1482
    %1609 = vmatpush.bf16.msra.mxu0 %v1474
    %1610 = vmatpush.bf16.msra.mxu0 %v1466
    %1611 = vmatpush.bf16.msra.mxu0 %v1458
    %1612 = vmatpush.bf16.msra.mxu0 %v1450
    %1613 = vmatpush.bf16.msra.mxu0 %v1442
    %1614 = vmatmul.bf16.gmra.mxu0 %v1164
    %v1615 = vpop.f32.mrf.mxu0
    %v1616 = vadd.f32 %v1234, %v1615
    %v1617 = vpop.f32.mrf.mxu0
    %1618 = vdwg.mxu0
    %1619 = vmatpush.bf16.msra.mxu0 %v1499
    %1620 = vmatpush.bf16.msra.mxu0 %v1491
    %1621 = vmatpush.bf16.msra.mxu0 %v1483
    %1622 = vmatpush.bf16.msra.mxu0 %v1475
    %1623 = vmatpush.bf16.msra.mxu0 %v1467
    %1624 = vmatpush.bf16.msra.mxu0 %v1459
    %1625 = vmatpush.bf16.msra.mxu0 %v1451
    %1626 = vmatpush.bf16.msra.mxu0 %v1443
    %1627 = vmatmul.bf16.gmra.mxu0 %v1164
    %v1628 = vpop.f32.mrf.mxu0
    %v1629 = vadd.f32 %v1235, %v1628
    %v1630 = vpop.f32.mrf.mxu0
    %1631 = vdwg.mxu0
    %1632 = vmatpush.bf16.msra.mxu0 %v1500
    %1633 = vmatpush.bf16.msra.mxu0 %v1492
    %1634 = vmatpush.bf16.msra.mxu0 %v1484
    %1635 = vmatpush.bf16.msra.mxu0 %v1476
    %1636 = vmatpush.bf16.msra.mxu0 %v1468
    %1637 = vmatpush.bf16.msra.mxu0 %v1460
    %1638 = vmatpush.bf16.msra.mxu0 %v1452
    %1639 = vmatpush.bf16.msra.mxu0 %v1444
    %1640 = vmatmul.bf16.gmra.mxu0 %v1164
    %v1641 = vpop.f32.mrf.mxu0
    %v1642 = vadd.f32 %v1236, %v1641
    %v1643 = vpop.f32.mrf.mxu0
    %1644 = vdwg.mxu0
    %1645 = vmatpush.bf16.msra.mxu0 %v1501
    %1646 = vmatpush.bf16.msra.mxu0 %v1493
    %1647 = vmatpush.bf16.msra.mxu0 %v1485
    %1648 = vmatpush.bf16.msra.mxu0 %v1477
    %1649 = vmatpush.bf16.msra.mxu0 %v1469
    %1650 = vmatpush.bf16.msra.mxu0 %v1461
    %1651 = vmatpush.bf16.msra.mxu0 %v1453
    %1652 = vmatpush.bf16.msra.mxu0 %v1445
    %1653 = vmatmul.bf16.gmra.mxu0 %v1164
    %v1654 = vpop.f32.mrf.mxu0
    %v1655 = vadd.f32 %v1237, %v1654
    %v1656 = vpop.f32.mrf.mxu0
    %1657 = vdwg.mxu0
    %1658 = vmatpush.bf16.msra.mxu0 %v1502
    %1659 = vmatpush.bf16.msra.mxu0 %v1494
    %1660 = vmatpush.bf16.msra.mxu0 %v1486
    %1661 = vmatpush.bf16.msra.mxu0 %v1478
    %1662 = vmatpush.bf16.msra.mxu0 %v1470
    %1663 = vmatpush.bf16.msra.mxu0 %v1462
    %1664 = vmatpush.bf16.msra.mxu0 %v1454
    %1665 = vmatpush.bf16.msra.mxu0 %v1446
    %1666 = vmatmul.bf16.gmra.mxu0 %v1164
    %v1667 = vpop.f32.mrf.mxu0
    %v1668 = vadd.f32 %v1238, %v1667
    %v1669 = vpop.f32.mrf.mxu0
    %1670 = vdwg.mxu0
    %v1671 = vpack.c.bf16 %v1590, %v1577
    %v1672 = vpack.c.bf16 %v1616, %v1603
    %v1673 = vpack.c.bf16 %v1642, %v1629
    %v1674 = vpack.c.bf16 %v1668, %v1655
    %v1679 = vrot.slane %v1671, 3
    %v1680 = vrot.slane %v1672, 6
    %v1681 = vrot.slane %v1672, 1
    %v1682 = vrot.slane %v1673, 4
    %v1683 = vrot.slane %v1673, 7
    %v1684 = vrot.slane %v1674, 2
    %v1685 = vrot.slane %v1674, 5
    %vm1686 = vcmask 1040384
    %v1689 = vsel %vm1686, %v1671, %v1679
    %vm1690 = vcmask 1042434
    %v1693 = vsel %vm1690, %v1680, %v1681
    %vm1694 = vcmask 1041408
    %v1695 = vsel %vm1694, %v1689, %v1693
    %vm1696 = vcmask 1044484
    %v1699 = vsel %vm1696, %v1682, %v1683
    %vm1700 = vcmask 1046534
    %v1703 = vsel %vm1700, %v1684, %v1685
    %vm1704 = vcmask 1045508
    %v1705 = vsel %vm1704, %v1699, %v1703
    %vm1706 = vcmask 1043456
    %v1707 = vsel %vm1706, %v1695, %v1705
    %1709 = vst [vmem:[#allocation17] sm:$0xff] %v1707
    %s1710 = smul.u32 0, 1024
    %s1711 = sshra.s32 %s1710, 7
    %s1712 = sand.u32 %s1710, 127
    %s1713 = smul.addr %s1711, 2
    %s1714 = scalar_lea.vmem [#allocation10], %s1713
    %v1715 = vld [vmem:[%s1714] sm:$0xff]
    %v1716 = vld [vmem:[%s1714 + $0x8] sm:$0xff]
    %1719 = vst [vmem:[#allocation1] ss:$4 sm:$0xff] %v1715
    %s1720 = scalar_lea.vmem [#allocation1], 32
    %1721 = vst [vmem:[%s1720] ss:$4 sm:$0xff] %v1716
    %v1722 = vld.sshfl [vmem:[#allocation1] sm:$0xff pattern:$0x73625140]
    %v1723 = vld.sshfl [vmem:[#allocation1 + $0x8] sm:$0xff pattern:$0x73625140]
    %v1724 = vld.sshfl [vmem:[#allocation1 + $0x10] sm:$0xff pattern:$0x73625140]
    %v1725 = vld.sshfl [vmem:[#allocation1 + $0x18] sm:$0xff pattern:$0x73625140]
    %v1726 = vld.sshfl [vmem:[#allocation1 + $0x20] sm:$0xff pattern:$0x73625140]
    %v1727 = vld.sshfl [vmem:[#allocation1 + $0x28] sm:$0xff pattern:$0x73625140]
    %v1728 = vld.sshfl [vmem:[#allocation1 + $0x30] sm:$0xff pattern:$0x73625140]
    %v1729 = vld.sshfl [vmem:[#allocation1 + $0x38] sm:$0xff pattern:$0x73625140]
    %v1738 = vsub.f32 %v1577, %v1722
    %v1739 = vsub.f32 %v1590, %v1723
    %v1740 = vsub.f32 %v1603, %v1724
    %v1741 = vsub.f32 %v1616, %v1725
    %v1742 = vsub.f32 %v1629, %v1726
    %v1743 = vsub.f32 %v1642, %v1727
    %v1744 = vsub.f32 %v1655, %v1728
    %v1745 = vsub.f32 %v1668, %v1729
    %v1746 = vld [vmem:[#allocation3] sm:$0xff]
    %v1747 = vld [vmem:[#allocation3 + $0x8] sm:$0xff]
    %v1748 = vmul.f32 %v1738, %v1738
    %v1749 = vmul.f32 %v1739, %v1739
    %v1750 = vmul.f32 %v1740, %v1740
    %v1751 = vmul.f32 %v1741, %v1741
    %v1752 = vmul.f32 %v1742, %v1742
    %v1753 = vmul.f32 %v1743, %v1743
    %v1754 = vmul.f32 %v1744, %v1744
    %v1755 = vmul.f32 %v1745, %v1745
    %v1764 = vrot.slane %v1749, 6
    %v1765 = vrot.slane %v1750, 4
    %v1766 = vrot.slane %v1751, 2
    %v1767 = vrot.slane %v1753, 6
    %v1768 = vrot.slane %v1754, 4
    %v1769 = vrot.slane %v1755, 2
    %v1770 = vsel %vm1694, %v1748, %v1764
    %v1771 = vsel %vm1704, %v1765, %v1766
    %v1772 = vsel %vm1706, %v1770, %v1771
    %v1773 = vsel %vm1694, %v1752, %v1767
    %v1774 = vsel %vm1704, %v1768, %v1769
    %v1775 = vsel %vm1706, %v1773, %v1774
    %v1778 = vadd.f32 %v1746, %v1772
    %v1779 = vadd.f32 %v1747, %v1775
    %1780 = vst [vmem:[#allocation3] sm:$0xff] %v1778
    %1781 = vst [vmem:[#allocation3 + $0x8] sm:$0xff] %v1779
    // Predicated region
    $region58: #{tpu_custom_call.1} parent=1 // pred_check
      %p1782 = pneg %p118
    $region59: #{tpu_custom_call.1} parent=1 // pred_check_branch
      %1784 = sbr.rel (%p1782) target = $region61
    $region60: #{tpu_custom_call.1} parent=1 // pred_region
      %s1785 = sld [smem:[#allocation5]]
      %s1786 = sld [smem:[#allocation5 + $0x1]]
      %v1787 = vld [vmem:[#allocation3] sm:$0xff]
      %v1788 = vld [vmem:[#allocation3 + $0x8] sm:$0xff]
      %1791 = vst [vmem:[#allocation1] ss:$4 sm:$0xff] %v1787
      %s1792 = scalar_lea.vmem [#allocation1], 32
      %1793 = vst [vmem:[%s1792] ss:$4 sm:$0xff] %v1788
      %v1794 = vld.sshfl [vmem:[#allocation1] sm:$0xff pattern:$0x73625140]
      %v1795 = vld.sshfl [vmem:[#allocation1 + $0x8] sm:$0xff pattern:$0x73625140]
      %v1796 = vld.sshfl [vmem:[#allocation1 + $0x10] sm:$0xff pattern:$0x73625140]
      %v1797 = vld.sshfl [vmem:[#allocation1 + $0x18] sm:$0xff pattern:$0x73625140]
      %v1798 = vld.sshfl [vmem:[#allocation1 + $0x20] sm:$0xff pattern:$0x73625140]
      %v1799 = vld.sshfl [vmem:[#allocation1 + $0x28] sm:$0xff pattern:$0x73625140]
      %v1800 = vld.sshfl [vmem:[#allocation1 + $0x30] sm:$0xff pattern:$0x73625140]
      %v1801 = vld.sshfl [vmem:[#allocation1 + $0x38] sm:$0xff pattern:$0x73625140]
      %v1810 = vsel %vm1694, %v1794, 0.0
      %v1811 = vsel %vm1694, %v1795, 0.0
      %v1812 = vadd.f32 %v1810, %v1811
      %v1813 = vsel %vm1694, %v1796, 0.0
      %v1814 = vadd.f32 %v1812, %v1813
      %v1815 = vsel %vm1694, %v1797, 0.0
      %v1816 = vadd.f32 %v1814, %v1815
      %v1817 = vsel %vm1694, %v1798, 0.0
      %v1818 = vadd.f32 %v1816, %v1817
      %v1819 = vsel %vm1694, %v1799, 0.0
      %v1820 = vadd.f32 %v1818, %v1819
      %v1821 = vsel %vm1694, %v1800, 0.0
      %v1822 = vadd.f32 %v1820, %v1821
      %v1823 = vsel %vm1694, %v1801, 0.0
      %v1824 = vadd.f32 %v1822, %v1823
      %1825 = vadd.xlane.f32.xlu0 %v1824
      %v1826 = vpop.xlane.xlu0 %1825
      %v1827 = vrot.slane %v1826, 4
      %v1828 = vadd.f32 %v1826, %v1827
      %v1829 = vrot.slane %v1828, 2
      %v1830 = vadd.f32 %v1828, %v1829
      %v1831 = vrot.slane %v1830, 1
      %v1832 = vadd.f32 %v1830, %v1831
      %s1833 = vtos %v1832
      %s1834 = smul.f32 %s1833, %s1786
      %s1835 = sld [smem:[#allocation4]]
      %s1836 = smul.f32 %s1835, %s1786
      %s1837 = scalar_lea.smem [#allocation19], 0
      %1838 = sst [smem:[%s1837]] %s1834
      %s1839 = scalar_lea.smem [#allocation21], 0
      %1840 = sst [smem:[%s1839]] %s1836
      %s1841 = smul.f32 %s1785, %s1836
      %s1842 = sadd.f32 %s1834, %s1841
      %s1843 = scalar_lea.smem [#allocation18], 0
      %1844 = sst [smem:[%s1843]] %s1842
    $region61: #{tpu_custom_call.1} parent=1 // pred_fallthru
      _
    // Predicated region
    $region62: #{tpu_custom_call.1} parent=1 // pred_check
      _
    $region63: #{tpu_custom_call.1} parent=1 // pred_check_branch
      %1846 = sbr.rel (0) target = $region65
    $region64: #{tpu_custom_call.1} parent=1 // pred_region
      %1848 = vsyncadd [#allocation7], 0
      %s1850 = sshll.u32 [#allocation17], 4
      %s1851 = int_to_ptr.vmem [resolvable:$true] %s1850
      %s1852 = sshll.u32 %s7, 4
      %s1853 = int_to_ptr.hbm [resolvable:$true] %s1852
      %1855 = dma.vmem_to_hbm [thread:$0]  %s1851, 128, %s1853, [#allocation7]
    $region65: #{tpu_custom_call.1} parent=1 // pred_fallthru
      _
    // Predicated region
    $region66: #{tpu_custom_call.1} parent=1 // pred_check
      _
    $region67: #{tpu_custom_call.1} parent=1 // pred_check_branch
      %1857 = sbr.rel (0) target = $region69
    $region68: #{tpu_custom_call.1} parent=1 // pred_region
      %1859 = vsyncadd [#allocation9], 0
      %s1861 = sshll.u32 %s8, 4
      %s1862 = int_to_ptr.hbm [resolvable:$true] %s1861
      %1864 = dma.smem_to_hbm [#allocation18], 16, %s1862, [#allocation9]
    $region69: #{tpu_custom_call.1} parent=1 // pred_fallthru
      _
    // Predicated region
    $region70: #{tpu_custom_call.1} parent=1 // pred_check
      _
    $region71: #{tpu_custom_call.1} parent=1 // pred_check_branch
      %1866 = sbr.rel (0) target = $region73
    $region72: #{tpu_custom_call.1} parent=1 // pred_region
      %1868 = vsyncadd [#allocation20], 0
      %s1870 = sshll.u32 %s9, 4
      %s1871 = int_to_ptr.hbm [resolvable:$true] %s1870
      %1873 = dma.smem_to_hbm [#allocation19], 16, %s1871, [#allocation20]
    $region73: #{tpu_custom_call.1} parent=1 // pred_fallthru
      _
    // Predicated region
    $region74: #{tpu_custom_call.1} parent=1 // pred_check
      _
    $region75: #{tpu_custom_call.1} parent=1 // pred_check_branch
      %1875 = sbr.rel (0) target = $region77
    $region76: #{tpu_custom_call.1} parent=1 // pred_region
      %1877 = vsyncadd [#allocation20], 0
      %s1879 = sshll.u32 %s10, 4
      %s1880 = int_to_ptr.hbm [resolvable:$true] %s1879
      %1882 = dma.smem_to_hbm [#allocation21], 16, %s1880, [#allocation20]
    $region77: #{tpu_custom_call.1} parent=1 // pred_fallthru
      _
    // Predicated region
    $region78: #{tpu_custom_call.1} parent=1 // pred_check
      _
    $region79: #{tpu_custom_call.1} parent=1 // pred_check_branch
      %1884 = sbr.rel (0) target = $region81
    $region80: #{tpu_custom_call.1} parent=1 // pred_region
      %1886 = dma.done [#allocation7], 128
    $region81: #{tpu_custom_call.1} parent=1 // pred_fallthru
      _
    // Predicated region
    $region82: #{tpu_custom_call.1} parent=1 // pred_check
      _
    $region83: #{tpu_custom_call.1} parent=1 // pred_check_branch
      %1888 = sbr.rel (0) target = $region85
    $region84: #{tpu_custom_call.1} parent=1 // pred_region
      %1890 = dma.done [#allocation9], 16
    $region85: #{tpu_custom_call.1} parent=1 // pred_fallthru
      _
    // Predicated region
    $region86: #{tpu_custom_call.1} parent=1 // pred_check
      _
    $region87: #{tpu_custom_call.1} parent=1 // pred_check_branch
      %1892 = sbr.rel (0) target = $region89
    $region88: #{tpu_custom_call.1} parent=1 // pred_region
      %1894 = dma.done [#allocation20], 16
    $region89: #{tpu_custom_call.1} parent=1 // pred_fallthru
      _
    // Predicated region
    $region90: #{tpu_custom_call.1} parent=1 // pred_check
      _
    $region91: #{tpu_custom_call.1} parent=1 // pred_check_branch
      %1896 = sbr.rel (0) target = $region93
    $region92: #{tpu_custom_call.1} parent=1 // pred_region
      %1898 = dma.done [#allocation20], 16
    $region93: #{tpu_custom_call.1} parent=1 // pred_fallthru
      _
    %1899 = sfence
    %1900 = vsyncpa [#allocation6], 1
    %1901 = vsyncpa [#allocation12], 1
    %1902 = vsyncpa [#allocation15], 1
    %1903 = vsyncpa [#allocation7], 1
    %1904 = vsyncpa [#allocation8], 1
    %1905 = vsyncpa [#allocation9], 1
    %1906 = vsyncpa [#allocation20], 1

// kernel: tpu_custom_call.1
$region0: #{tpu_custom_call.1}
  #allocation0 [shape = 'u32[]', space=smem, size = 0x4, offset = 0x4, fixed_abs, tag = 'smem constant byte address 0x4 - core index']
  #allocation1 [shape = 'u32[72,128]{1,0:T(1,128)}', space=vmem, size = 0x9000, scoped, tag = 'internal scratch']
  #allocation2 [shape = 'bf16[2,128]{1,0:T(2,128)(2,1)}', space=vmem, size = 0x200, scoped, tag = 'scratch operand']
  #allocation3 [shape = 'f32[2,1024]{1,0:T(2,128)}', space=vmem, size = 0x2000, scoped, tag = 'scratch operand']
  #allocation4 [shape = 'f32[1]{0:T(128)}', space=smem, size = 0x200, scoped, tag = 'scratch operand']
  %s0 = inlined_call_operand.hbm [shape: f32[2], index: 0, kind: input, shape index: {}]
  %s1 = inlined_call_operand.hbm [shape: f32[2,1024], index: 1, kind: input, shape index: {}]
  %s2 = inlined_call_operand.hbm [shape: bf16[1024,256], index: 2, kind: input, shape index: {}]
  %s3 = inlined_call_operand.vmem [shape: f32[1,256], index: 3, kind: input, shape index: {}]
  %s4 = inlined_call_operand.hbm [shape: f32[2,128], index: 4, kind: input, shape index: {}]
  %s5 = inlined_call_operand.hbm [shape: bf16[128,1024], index: 5, kind: input, shape index: {}]
  %s6 = inlined_call_operand.hbm [shape: f32[1,1024], index: 6, kind: input, shape index: {}]
  %s7 = inlined_call_operand.hbm [shape: bf16[2,1024], index: 7, kind: output, shape index: {0}]
  %s8 = inlined_call_operand.hbm [shape: f32[1], index: 8, kind: output, shape index: {1}]
  %s9 = inlined_call_operand.hbm [shape: f32[1], index: 9, kind: output, shape index: {2}]
  %s10 = inlined_call_operand.hbm [shape: f32[1], index: 10, kind: output, shape index: {3}]
  %11 = xla_tuple %s7, %s8, %s9, %s10
  %s12 = sld [smem:[#allocation0]]
  $region94: #{tpu_custom_call.1} parent=0
    _
  %s14 = ssub.s32 1, %s12
  %s15 = scalar_select 0, %s14, %s12
  $region1: #{tpu_custom_call.1} parent=0
    #allocation5 [shape = 'u8[512]{0}', space=smem, size = 0x200, scoped, tag = 'input window, operand 0, single buffered']
    #allocation6 [shape = 's32[1]{0}', space=sflag, size = 0x4, scoped, tag = 'scoped memory for tpu_custom_call.1']
    #allocation7 [shape = 's32[1]{0}', space=sflag, size = 0x4, scoped, tag = 'scoped memory for tpu_custom_call.1']
    #allocation8 [shape = 's32[1]{0}', space=sflag, size = 0x4, scoped, tag = 'scoped memory for tpu_custom_call.1']
    #allocation9 [shape = 's32[1]{0}', space=sflag, size = 0x4, scoped, tag = 'scoped memory for tpu_custom_call.1']
    #allocation10 [shape = 'u8[8192]{0}', space=vmem, size = 0x2000, scoped, tag = 'input window, operand 1, single buffered']
    #allocation11 [shape = 'u8[524288]{0}', space=vmem, size = 0x80000, scoped, tag = 'input window, operand 2, single buffered']
    #allocation12 [shape = 's32[1]{0}', space=sflag, size = 0x4, scoped, tag = 'scoped memory for tpu_custom_call.1']
    #allocation13 [shape = 'u8[1024]{0}', space=vmem, size = 0x400, scoped, tag = 'input window, operand 4, single buffered']
    #allocation14 [shape = 'u8[262144]{0}', space=vmem, size = 0x40000, scoped, tag = 'input window, operand 5, single buffered']
    #allocation15 [shape = 's32[1]{0}', space=sflag, size = 0x4, scoped, tag = 'scoped memory for tpu_custom_call.1']
    #allocation16 [shape = 'u8[4096]{0}', space=vmem, size = 0x1000, scoped, tag = 'input window, operand 6, single buffered']
    #allocation17 [shape = 'u8[4096]{0}', space=vmem, size = 0x1000, scoped, tag = 'output window, operand 0, single buffered']
    #allocation18 [shape = 'u8[512]{0}', space=smem, size = 0x200, scoped, tag = 'output window, operand 1, single buffered']
    #allocation19 [shape = 'u8[512]{0}', space=smem, size = 0x200, scoped, tag = 'output window, operand 2, single buffered']
    #allocation20 [shape = 's32[1]{0}', space=sflag, size = 0x4, scoped, tag = 'scoped memory for tpu_custom_call.1']
    #allocation21 [shape = 'u8[512]{0}', space=smem, size = 0x200, scoped, tag = 'output window, operand 3, single buffered']
    %16 = vsyncpa [#allocation8], 0
    %17 = vsyncpa [#allocation6], 0
    %18 = vsyncpa [#allocation12], 0
    %19 = vsyncpa [#allocation15], 0
    %20 = vsyncpa [#allocation7], 0
    %21 = vsyncpa [#allocation9], 0
    %22 = vsyncpa [#allocation20], 0
    // Predicated region
    $region2: #{tpu_custom_call.1} parent=1 // pred_check
      _
    $region3: #{tpu_custom_call.1} parent=1 // pred_check_branch
      %24 = sbr.rel (0) target = $region5
    $region4: #{tpu_custom_call.1} parent=1 // pred_region
      %26 = vsyncadd [#allocation8], 0
      %s28 = sshll.u32 %s0, 4
      %s29 = int_to_ptr.hbm [resolvable:$true] %s28
      %31 = dma.hbm_to_smem %s29, 16, [#allocation5], [#allocation8]
    $region5: #{tpu_custom_call.1} parent=1 // pred_fallthru
      _
    // Predicated region
    $region6: #{tpu_custom_call.1} parent=1 // pred_check
      _
    $region7: #{tpu_custom_call.1} parent=1 // pred_check_branch
      %33 = sbr.rel (0) target = $region9
    $region8: #{tpu_custom_call.1} parent=1 // pred_region
      %35 = vsyncadd [#allocation6], 0
      %s37 = sshll.u32 %s1, 4
      %s38 = int_to_ptr.hbm [resolvable:$true] %s37
      %s39 = sshll.u32 [#allocation10], 4
      %s40 = int_to_ptr.vmem [resolvable:$true] %s39
      %42 = dma.hbm_to_vmem [thread:$0]  %s38, 256, %s40, [#allocation6]
    $region9: #{tpu_custom_call.1} parent=1 // pred_fallthru
      _
    // Predicated region
    $region10: #{tpu_custom_call.1} parent=1 // pred_check
      _
    $region11: #{tpu_custom_call.1} parent=1 // pred_check_branch
      %44 = sbr.rel (0) target = $region13
    $region12: #{tpu_custom_call.1} parent=1 // pred_region
      %46 = vsyncadd [#allocation12], 0
      %s47 = sshll.u32 %s2, 4
      %s48 = int_to_ptr.hbm [resolvable:$true] %s47
      %s49 = sshll.u32 [#allocation11], 4
      %s50 = int_to_ptr.vmem [resolvable:$true] %s49
      %55 = dma.hbm_to_vmem [thread:$0]  %s48, 16384, %s50, [#allocation12], 128, 128, 8
    $region13: #{tpu_custom_call.1} parent=1 // pred_fallthru
      _
    // Predicated region
    $region14: #{tpu_custom_call.1} parent=1 // pred_check
      _
    $region15: #{tpu_custom_call.1} parent=1 // pred_check_branch
      %57 = sbr.rel (0) target = $region17
    $region16: #{tpu_custom_call.1} parent=1 // pred_region
      _
    $region17: #{tpu_custom_call.1} parent=1 // pred_fallthru
      _
    // Predicated region
    $region18: #{tpu_custom_call.1} parent=1 // pred_check
      _
    $region19: #{tpu_custom_call.1} parent=1 // pred_check_branch
      %59 = sbr.rel (0) target = $region21
    $region20: #{tpu_custom_call.1} parent=1 // pred_region
      %61 = vsyncadd [#allocation12], 0
      %s63 = sshll.u32 %s4, 4
      %s64 = int_to_ptr.hbm [resolvable:$true] %s63
      %s65 = sshll.u32 [#allocation13], 4
      %s66 = int_to_ptr.vmem [resolvable:$true] %s65
      %68 = dma.hbm_to_vmem [thread:$0]  %s64, 32, %s66, [#allocation12]
    $region21: #{tpu_custom_call.1} parent=1 // pred_fallthru
      _
    // Predicated region
    $region22: #{tpu_custom_call.1} parent=1 // pred_check
      _
    $region23: #{tpu_custom_call.1} parent=1 // pred_check_branch
      %70 = sbr.rel (0) target = $region25
    $region24: #{tpu_custom_call.1} parent=1 // pred_region
      %72 = vsyncadd [#allocation15], 0
      %s73 = sshll.u32 %s5, 4
      %s74 = int_to_ptr.hbm [resolvable:$true] %s73
      %s75 = sshll.u32 [#allocation14], 4
      %s76 = int_to_ptr.vmem [resolvable:$true] %s75
      %81 = dma.hbm_to_vmem [thread:$0]  %s74, 8192, %s76, [#allocation15], 512, 512, 32
    $region25: #{tpu_custom_call.1} parent=1 // pred_fallthru
      _
    // Predicated region
    $region26: #{tpu_custom_call.1} parent=1 // pred_check
      _
    $region27: #{tpu_custom_call.1} parent=1 // pred_check_branch
      %83 = sbr.rel (0) target = $region29
    $region28: #{tpu_custom_call.1} parent=1 // pred_region
      %85 = vsyncadd [#allocation15], 0
      %s87 = sshll.u32 %s6, 4
      %s88 = int_to_ptr.hbm [resolvable:$true] %s87
      %s89 = sshll.u32 [#allocation16], 4
      %s90 = int_to_ptr.vmem [resolvable:$true] %s89
      %92 = dma.hbm_to_vmem [thread:$0]  %s88, 128, %s90, [#allocation15]
    $region29: #{tpu_custom_call.1} parent=1 // pred_fallthru
      _
    // Predicated region
    $region30: #{tpu_custom_call.1} parent=1 // pred_check
      _
    $region31: #{tpu_custom_call.1} parent=1 // pred_check_branch
      %94 = sbr.rel (0) target = $region33
    $region32: #{tpu_custom_call.1} parent=1 // pred_region
      %96 = dma.done [#allocation8], 16
    $region33: #{tpu_custom_call.1} parent=1 // pred_fallthru
      _
    // Predicated region
    $region34: #{tpu_custom_call.1} parent=1 // pred_check
      _
    $region35: #{tpu_custom_call.1} parent=1 // pred_check_branch
      %98 = sbr.rel (0) target = $region37
    $region36: #{tpu_custom_call.1} parent=1 // pred_region
      %100 = dma.done [#allocation6], 256
    $region37: #{tpu_custom_call.1} parent=1 // pred_fallthru
      _
    // Predicated region
    $region38: #{tpu_custom_call.1} parent=1 // pred_check
      _
    $region39: #{tpu_custom_call.1} parent=1 // pred_check_branch
      %102 = sbr.rel (0) target = $region41
    $region40: #{tpu_custom_call.1} parent=1 // pred_region
      %104 = dma.done [#allocation12], 16384
    $region41: #{tpu_custom_call.1} parent=1 // pred_fallthru
      _
    // Predicated region
    $region42: #{tpu_custom_call.1} parent=1 // pred_check
      _
    $region43: #{tpu_custom_call.1} parent=1 // pred_check_branch
      %106 = sbr.rel (0) target = $region45
    $region44: #{tpu_custom_call.1} parent=1 // pred_region
      %108 = dma.done [#allocation12], 32
    $region45: #{tpu_custom_call.1} parent=1 // pred_fallthru
      _
    // Predicated region
    $region46: #{tpu_custom_call.1} parent=1 // pred_check
      _
    $region47: #{tpu_custom_call.1} parent=1 // pred_check_branch
      %110 = sbr.rel (0) target = $region49
    $region48: #{tpu_custom_call.1} parent=1 // pred_region
      %112 = dma.done [#allocation15], 8192
    $region49: #{tpu_custom_call.1} parent=1 // pred_fallthru
      _
    // Predicated region
    $region50: #{tpu_custom_call.1} parent=1 // pred_check
      _
    $region51: #{tpu_custom_call.1} parent=1 // pred_check_branch
      %114 = sbr.rel (0) target = $region53
    $region52: #{tpu_custom_call.1} parent=1 // pred_region
      %116 = dma.done [#allocation15], 128
    $region53: #{tpu_custom_call.1} parent=1 // pred_fallthru
      _
    %117 = sfence
    %p118 = scmp.eq.s32.totalorder 0, 0
    // Predicated region
    $region54: #{tpu_custom_call.1} parent=1 // pred_check
      %p119 = pneg %p118
    $region55: #{tpu_custom_call.1} parent=1 // pred_check_branch
      %121 = sbr.rel (%p119) target = $region57
    $region56: #{tpu_custom_call.1} parent=1 // pred_region
      %v122 = vld [vmem:[#allocation10] sm:$0xff]
      %v123 = vld [vmem:[#allocation10 + $0x8] sm:$0xff]
      %126 = vst [vmem:[#allocation1] ss:$4 sm:$0xff] %v122
      %s127 = scalar_lea.vmem [#allocation1], 32
      %128 = vst [vmem:[%s127] ss:$4 sm:$0xff] %v123
      %v129 = vld.sshfl [vmem:[#allocation1] sm:$0xff pattern:$0x73625140]
      %v130 = vld.sshfl [vmem:[#allocation1 + $0x8] sm:$0xff pattern:$0x73625140]
      %v131 = vld.sshfl [vmem:[#allocation1 + $0x10] sm:$0xff pattern:$0x73625140]
      %v132 = vld.sshfl [vmem:[#allocation1 + $0x18] sm:$0xff pattern:$0x73625140]
      %v133 = vld.sshfl [vmem:[#allocation1 + $0x20] sm:$0xff pattern:$0x73625140]
      %v134 = vld.sshfl [vmem:[#allocation1 + $0x28] sm:$0xff pattern:$0x73625140]
      %v135 = vld.sshfl [vmem:[#allocation1 + $0x30] sm:$0xff pattern:$0x73625140]
      %v136 = vld.sshfl [vmem:[#allocation1 + $0x38] sm:$0xff pattern:$0x73625140]
      %v145 = vpack.c.bf16 %v129, %v129
      %v146 = vpack.c.bf16 %v130, %v130
      %v147 = vpack.c.bf16 %v131, %v131
      %v148 = vpack.c.bf16 %v132, %v132
      %v149 = vpack.c.bf16 %v133, %v133
      %v150 = vpack.c.bf16 %v134, %v134
      %v151 = vpack.c.bf16 %v135, %v135
      %v152 = vpack.c.bf16 %v136, %v136
      %v153 = vld [vmem:[#allocation11] sm:$0xff]
      %v154 = vld [vmem:[#allocation11 + $0x8] sm:$0xff]
      %v155 = vld [vmem:[#allocation11 + $0x10] sm:$0xff]
      %v156 = vld [vmem:[#allocation11 + $0x18] sm:$0xff]
      %v157 = vld [vmem:[#allocation11 + $0x20] sm:$0xff]
      %v158 = vld [vmem:[#allocation11 + $0x28] sm:$0xff]
      %v159 = vld [vmem:[#allocation11 + $0x30] sm:$0xff]
      %v160 = vld [vmem:[#allocation11 + $0x38] sm:$0xff]
      %v161 = vld [vmem:[#allocation11 + $0x40] sm:$0xff]
      %v162 = vld [vmem:[#allocation11 + $0x48] sm:$0xff]
      %v163 = vld [vmem:[#allocation11 + $0x50] sm:$0xff]
      %v164 = vld [vmem:[#allocation11 + $0x58] sm:$0xff]
      %v165 = vld [vmem:[#allocation11 + $0x60] sm:$0xff]
      %v166 = vld [vmem:[#allocation11 + $0x68] sm:$0xff]
      %v167 = vld [vmem:[#allocation11 + $0x70] sm:$0xff]
      %v168 = vld [vmem:[#allocation11 + $0x78] sm:$0xff]
      %v169 = vld [vmem:[#allocation11 + $0x80] sm:$0xff]
      %v170 = vld [vmem:[#allocation11 + $0x88] sm:$0xff]
      %v171 = vld [vmem:[#allocation11 + $0x90] sm:$0xff]
      %v172 = vld [vmem:[#allocation11 + $0x98] sm:$0xff]
      %v173 = vld [vmem:[#allocation11 + $0xa0] sm:$0xff]
      %v174 = vld [vmem:[#allocation11 + $0xa8] sm:$0xff]
      %v175 = vld [vmem:[#allocation11 + $0xb0] sm:$0xff]
      %v176 = vld [vmem:[#allocation11 + $0xb8] sm:$0xff]
      %v177 = vld [vmem:[#allocation11 + $0xc0] sm:$0xff]
      %v178 = vld [vmem:[#allocation11 + $0xc8] sm:$0xff]
      %v179 = vld [vmem:[#allocation11 + $0xd0] sm:$0xff]
      %v180 = vld [vmem:[#allocation11 + $0xd8] sm:$0xff]
      %v181 = vld [vmem:[#allocation11 + $0xe0] sm:$0xff]
      %v182 = vld [vmem:[#allocation11 + $0xe8] sm:$0xff]
      %v183 = vld [vmem:[#allocation11 + $0xf0] sm:$0xff]
      %v184 = vld [vmem:[#allocation11 + $0xf8] sm:$0xff]
      %v185 = vld [vmem:[#allocation11 + $0x100] sm:$0xff]
      %v186 = vld [vmem:[#allocation11 + $0x108] sm:$0xff]
      %v187 = vld [vmem:[#allocation11 + $0x110] sm:$0xff]
      %v188 = vld [vmem:[#allocation11 + $0x118] sm:$0xff]
      %v189 = vld [vmem:[#allocation11 + $0x120] sm:$0xff]
      %v190 = vld [vmem:[#allocation11 + $0x128] sm:$0xff]
      %v191 = vld [vmem:[#allocation11 + $0x130] sm:$0xff]
      %v192 = vld [vmem:[#allocation11 + $0x138] sm:$0xff]
      %v193 = vld [vmem:[#allocation11 + $0x140] sm:$0xff]
      %v194 = vld [vmem:[#allocation11 + $0x148] sm:$0xff]
      %v195 = vld [vmem:[#allocation11 + $0x150] sm:$0xff]
      %v196 = vld [vmem:[#allocation11 + $0x158] sm:$0xff]
      %v197 = vld [vmem:[#allocation11 + $0x160] sm:$0xff]
      %v198 = vld [vmem:[#allocation11 + $0x168] sm:$0xff]
      %v199 = vld [vmem:[#allocation11 + $0x170] sm:$0xff]
      %v200 = vld [vmem:[#allocation11 + $0x178] sm:$0xff]
      %v201 = vld [vmem:[#allocation11 + $0x180] sm:$0xff]
      %v202 = vld [vmem:[#allocation11 + $0x188] sm:$0xff]
      %v203 = vld [vmem:[#allocation11 + $0x190] sm:$0xff]
      %v204 = vld [vmem:[#allocation11 + $0x198] sm:$0xff]
      %v205 = vld [vmem:[#allocation11 + $0x1a0] sm:$0xff]
      %v206 = vld [vmem:[#allocation11 + $0x1a8] sm:$0xff]
      %v207 = vld [vmem:[#allocation11 + $0x1b0] sm:$0xff]
      %v208 = vld [vmem:[#allocation11 + $0x1b8] sm:$0xff]
      %v209 = vld [vmem:[#allocation11 + $0x1c0] sm:$0xff]
      %v210 = vld [vmem:[#allocation11 + $0x1c8] sm:$0xff]
      %v211 = vld [vmem:[#allocation11 + $0x1d0] sm:$0xff]
      %v212 = vld [vmem:[#allocation11 + $0x1d8] sm:$0xff]
      %v213 = vld [vmem:[#allocation11 + $0x1e0] sm:$0xff]
      %v214 = vld [vmem:[#allocation11 + $0x1e8] sm:$0xff]
      %v215 = vld [vmem:[#allocation11 + $0x1f0] sm:$0xff]
      %v216 = vld [vmem:[#allocation11 + $0x1f8] sm:$0xff]
      %v217 = vld [vmem:[#allocation11 + $0x200] sm:$0xff]
      %v218 = vld [vmem:[#allocation11 + $0x208] sm:$0xff]
      %v219 = vld [vmem:[#allocation11 + $0x210] sm:$0xff]
      %v220 = vld [vmem:[#allocation11 + $0x218] sm:$0xff]
      %v221 = vld [vmem:[#allocation11 + $0x220] sm:$0xff]
      %v222 = vld [vmem:[#allocation11 + $0x228] sm:$0xff]
      %v223 = vld [vmem:[#allocation11 + $0x230] sm:$0xff]
      %v224 = vld [vmem:[#allocation11 + $0x238] sm:$0xff]
      %v225 = vld [vmem:[#allocation11 + $0x240] sm:$0xff]
      %v226 = vld [vmem:[#allocation11 + $0x248] sm:$0xff]
      %v227 = vld [vmem:[#allocation11 + $0x250] sm:$0xff]
      %v228 = vld [vmem:[#allocation11 + $0x258] sm:$0xff]
      %v229 = vld [vmem:[#allocation11 + $0x260] sm:$0xff]
      %v230 = vld [vmem:[#allocation11 + $0x268] sm:$0xff]
      %v231 = vld [vmem:[#allocation11 + $0x270] sm:$0xff]
      %v232 = vld [vmem:[#allocation11 + $0x278] sm:$0xff]
      %v233 = vld [vmem:[#allocation11 + $0x280] sm:$0xff]
      %v234 = vld [vmem:[#allocation11 + $0x288] sm:$0xff]
      %v235 = vld [vmem:[#allocation11 + $0x290] sm:$0xff]
      %v236 = vld [vmem:[#allocation11 + $0x298] sm:$0xff]
      %v237 = vld [vmem:[#allocation11 + $0x2a0] sm:$0xff]
      %v238 = vld [vmem:[#allocation11 + $0x2a8] sm:$0xff]
      %v239 = vld [vmem:[#allocation11 + $0x2b0] sm:$0xff]
      %v240 = vld [vmem:[#allocation11 + $0x2b8] sm:$0xff]
      %v241 = vld [vmem:[#allocation11 + $0x2c0] sm:$0xff]
      %v242 = vld [vmem:[#allocation11 + $0x2c8] sm:$0xff]
      %v243 = vld [vmem:[#allocation11 + $0x2d0] sm:$0xff]
      %v244 = vld [vmem:[#allocation11 + $0x2d8] sm:$0xff]
      %v245 = vld [vmem:[#allocation11 + $0x2e0] sm:$0xff]
      %v246 = vld [vmem:[#allocation11 + $0x2e8] sm:$0xff]
      %v247 = vld [vmem:[#allocation11 + $0x2f0] sm:$0xff]
      %v248 = vld [vmem:[#allocation11 + $0x2f8] sm:$0xff]
      %v249 = vld [vmem:[#allocation11 + $0x300] sm:$0xff]
      %v250 = vld [vmem:[#allocation11 + $0x308] sm:$0xff]
      %v251 = vld [vmem:[#allocation11 + $0x310] sm:$0xff]
      %v252 = vld [vmem:[#allocation11 + $0x318] sm:$0xff]
      %v253 = vld [vmem:[#allocation11 + $0x320] sm:$0xff]
      %v254 = vld [vmem:[#allocation11 + $0x328] sm:$0xff]
      %v255 = vld [vmem:[#allocation11 + $0x330] sm:$0xff]
      %v256 = vld [vmem:[#allocation11 + $0x338] sm:$0xff]
      %v257 = vld [vmem:[#allocation11 + $0x340] sm:$0xff]
      %v258 = vld [vmem:[#allocation11 + $0x348] sm:$0xff]
      %v259 = vld [vmem:[#allocation11 + $0x350] sm:$0xff]
      %v260 = vld [vmem:[#allocation11 + $0x358] sm:$0xff]
      %v261 = vld [vmem:[#allocation11 + $0x360] sm:$0xff]
      %v262 = vld [vmem:[#allocation11 + $0x368] sm:$0xff]
      %v263 = vld [vmem:[#allocation11 + $0x370] sm:$0xff]
      %v264 = vld [vmem:[#allocation11 + $0x378] sm:$0xff]
      %v265 = vld [vmem:[#allocation11 + $0x380] sm:$0xff]
      %v266 = vld [vmem:[#allocation11 + $0x388] sm:$0xff]
      %v267 = vld [vmem:[#allocation11 + $0x390] sm:$0xff]
      %v268 = vld [vmem:[#allocation11 + $0x398] sm:$0xff]
      %v269 = vld [vmem:[#allocation11 + $0x3a0] sm:$0xff]
      %v270 = vld [vmem:[#allocation11 + $0x3a8] sm:$0xff]
      %v271 = vld [vmem:[#allocation11 + $0x3b0] sm:$0xff]
      %v272 = vld [vmem:[#allocation11 + $0x3b8] sm:$0xff]
      %v273 = vld [vmem:[#allocation11 + $0x3c0] sm:$0xff]
      %v274 = vld [vmem:[#allocation11 + $0x3c8] sm:$0xff]
      %v275 = vld [vmem:[#allocation11 + $0x3d0] sm:$0xff]
      %v276 = vld [vmem:[#allocation11 + $0x3d8] sm:$0xff]
      %v277 = vld [vmem:[#allocation11 + $0x3e0] sm:$0xff]
      %v278 = vld [vmem:[#allocation11 + $0x3e8] sm:$0xff]
      %v279 = vld [vmem:[#allocation11 + $0x3f0] sm:$0xff]
      %v280 = vld [vmem:[#allocation11 + $0x3f8] sm:$0xff]
      %v281 = vld [vmem:[%s3] sm:$0x3]
      %v283 = vperm.slane %v281, 0
      %v284 = vperm.slane %v281, 1
      %v415 = vunpack.c.l.b16 %v153
      %v416 = vunpack.c.h.b16 %v153
      %v417 = vunpack.c.l.b16 %v154
      %v418 = vunpack.c.h.b16 %v154
      %v419 = vunpack.c.l.b16 %v155
      %v420 = vunpack.c.h.b16 %v155
      %v421 = vunpack.c.l.b16 %v156
      %v422 = vunpack.c.h.b16 %v156
      %v423 = vunpack.c.l.b16 %v157
      %v424 = vunpack.c.h.b16 %v157
      %v425 = vunpack.c.l.b16 %v158
      %v426 = vunpack.c.h.b16 %v158
      %v427 = vunpack.c.l.b16 %v159
      %v428 = vunpack.c.h.b16 %v159
      %v429 = vunpack.c.l.b16 %v160
      %v430 = vunpack.c.h.b16 %v160
      %v431 = vunpack.c.l.b16 %v161
      %v432 = vunpack.c.h.b16 %v161
      %v433 = vunpack.c.l.b16 %v162
      %v434 = vunpack.c.h.b16 %v162
      %v435 = vunpack.c.l.b16 %v163
      %v436 = vunpack.c.h.b16 %v163
      %v437 = vunpack.c.l.b16 %v164
      %v438 = vunpack.c.h.b16 %v164
      %v439 = vunpack.c.l.b16 %v165
      %v440 = vunpack.c.h.b16 %v165
      %v441 = vunpack.c.l.b16 %v166
      %v442 = vunpack.c.h.b16 %v166
      %v443 = vunpack.c.l.b16 %v167
      %v444 = vunpack.c.h.b16 %v167
      %v445 = vunpack.c.l.b16 %v168
      %v446 = vunpack.c.h.b16 %v168
      %v447 = vunpack.c.l.b16 %v169
      %v448 = vunpack.c.h.b16 %v169
      %v449 = vunpack.c.l.b16 %v170
      %v450 = vunpack.c.h.b16 %v170
      %v451 = vunpack.c.l.b16 %v171
      %v452 = vunpack.c.h.b16 %v171
      %v453 = vunpack.c.l.b16 %v172
      %v454 = vunpack.c.h.b16 %v172
      %v455 = vunpack.c.l.b16 %v173
      %v456 = vunpack.c.h.b16 %v173
      %v457 = vunpack.c.l.b16 %v174
      %v458 = vunpack.c.h.b16 %v174
      %v459 = vunpack.c.l.b16 %v175
      %v460 = vunpack.c.h.b16 %v175
      %v461 = vunpack.c.l.b16 %v176
      %v462 = vunpack.c.h.b16 %v176
      %v463 = vunpack.c.l.b16 %v177
      %v464 = vunpack.c.h.b16 %v177
      %v465 = vunpack.c.l.b16 %v178
      %v466 = vunpack.c.h.b16 %v178
      %v467 = vunpack.c.l.b16 %v179
      %v468 = vunpack.c.h.b16 %v179
      %v469 = vunpack.c.l.b16 %v180
      %v470 = vunpack.c.h.b16 %v180
      %v471 = vunpack.c.l.b16 %v181
      %v472 = vunpack.c.h.b16 %v181
      %v473 = vunpack.c.l.b16 %v182
      %v474 = vunpack.c.h.b16 %v182
      %v475 = vunpack.c.l.b16 %v183
      %v476 = vunpack.c.h.b16 %v183
      %v477 = vunpack.c.l.b16 %v184
      %v478 = vunpack.c.h.b16 %v184
      %v479 = vunpack.c.l.b16 %v185
      %v480 = vunpack.c.h.b16 %v185
      %v481 = vunpack.c.l.b16 %v186
      %v482 = vunpack.c.h.b16 %v186
      %v483 = vunpack.c.l.b16 %v187
      %v484 = vunpack.c.h.b16 %v187
      %v485 = vunpack.c.l.b16 %v188
      %v486 = vunpack.c.h.b16 %v188
      %v487 = vunpack.c.l.b16 %v189
      %v488 = vunpack.c.h.b16 %v189
      %v489 = vunpack.c.l.b16 %v190
      %v490 = vunpack.c.h.b16 %v190
      %v491 = vunpack.c.l.b16 %v191
      %v492 = vunpack.c.h.b16 %v191
      %v493 = vunpack.c.l.b16 %v192
      %v494 = vunpack.c.h.b16 %v192
      %v495 = vunpack.c.l.b16 %v193
      %v496 = vunpack.c.h.b16 %v193
      %v497 = vunpack.c.l.b16 %v194
      %v498 = vunpack.c.h.b16 %v194
      %v499 = vunpack.c.l.b16 %v195
      %v500 = vunpack.c.h.b16 %v195
      %v501 = vunpack.c.l.b16 %v196
      %v502 = vunpack.c.h.b16 %v196
      %v503 = vunpack.c.l.b16 %v197
      %v504 = vunpack.c.h.b16 %v197
      %v505 = vunpack.c.l.b16 %v198
      %v506 = vunpack.c.h.b16 %v198
      %v507 = vunpack.c.l.b16 %v199
      %v508 = vunpack.c.h.b16 %v199
      %v509 = vunpack.c.l.b16 %v200
      %v510 = vunpack.c.h.b16 %v200
      %v511 = vunpack.c.l.b16 %v201
      %v512 = vunpack.c.h.b16 %v201
      %v513 = vunpack.c.l.b16 %v202
      %v514 = vunpack.c.h.b16 %v202
      %v515 = vunpack.c.l.b16 %v203
      %v516 = vunpack.c.h.b16 %v203
      %v517 = vunpack.c.l.b16 %v204
      %v518 = vunpack.c.h.b16 %v204
      %v519 = vunpack.c.l.b16 %v205
      %v520 = vunpack.c.h.b16 %v205
      %v521 = vunpack.c.l.b16 %v206
      %v522 = vunpack.c.h.b16 %v206
      %v523 = vunpack.c.l.b16 %v207
      %v524 = vunpack.c.h.b16 %v207
      %v525 = vunpack.c.l.b16 %v208
      %v526 = vunpack.c.h.b16 %v208
      %v527 = vunpack.c.l.b16 %v209
      %v528 = vunpack.c.h.b16 %v209
      %v529 = vunpack.c.l.b16 %v210
      %v530 = vunpack.c.h.b16 %v210
      %v531 = vunpack.c.l.b16 %v211
      %v532 = vunpack.c.h.b16 %v211
      %v533 = vunpack.c.l.b16 %v212
      %v534 = vunpack.c.h.b16 %v212
      %v535 = vunpack.c.l.b16 %v213
      %v536 = vunpack.c.h.b16 %v213
      %v537 = vunpack.c.l.b16 %v214
      %v538 = vunpack.c.h.b16 %v214
      %v539 = vunpack.c.l.b16 %v215
      %v540 = vunpack.c.h.b16 %v215
      %v541 = vunpack.c.l.b16 %v216
      %v542 = vunpack.c.h.b16 %v216
      %v543 = vunpack.c.l.b16 %v217
      %v544 = vunpack.c.h.b16 %v217
      %v545 = vunpack.c.l.b16 %v218
      %v546 = vunpack.c.h.b16 %v218
      %v547 = vunpack.c.l.b16 %v219
      %v548 = vunpack.c.h.b16 %v219
      %v549 = vunpack.c.l.b16 %v220
      %v550 = vunpack.c.h.b16 %v220
      %v551 = vunpack.c.l.b16 %v221
      %v552 = vunpack.c.h.b16 %v221
      %v553 = vunpack.c.l.b16 %v222
      %v554 = vunpack.c.h.b16 %v222
      %v555 = vunpack.c.l.b16 %v223
      %v556 = vunpack.c.h.b16 %v223
      %v557 = vunpack.c.l.b16 %v224
      %v558 = vunpack.c.h.b16 %v224
      %v559 = vunpack.c.l.b16 %v225
      %v560 = vunpack.c.h.b16 %v225
      %v561 = vunpack.c.l.b16 %v226
      %v562 = vunpack.c.h.b16 %v226
      %v563 = vunpack.c.l.b16 %v227
      %v564 = vunpack.c.h.b16 %v227
      %v565 = vunpack.c.l.b16 %v228
      %v566 = vunpack.c.h.b16 %v228
      %v567 = vunpack.c.l.b16 %v229
      %v568 = vunpack.c.h.b16 %v229
      %v569 = vunpack.c.l.b16 %v230
      %v570 = vunpack.c.h.b16 %v230
      %v571 = vunpack.c.l.b16 %v231
      %v572 = vunpack.c.h.b16 %v231
      %v573 = vunpack.c.l.b16 %v232
      %v574 = vunpack.c.h.b16 %v232
      %v575 = vunpack.c.l.b16 %v233
      %v576 = vunpack.c.h.b16 %v233
      %v577 = vunpack.c.l.b16 %v234
      %v578 = vunpack.c.h.b16 %v234
      %v579 = vunpack.c.l.b16 %v235
      %v580 = vunpack.c.h.b16 %v235
      %v581 = vunpack.c.l.b16 %v236
      %v582 = vunpack.c.h.b16 %v236
      %v583 = vunpack.c.l.b16 %v237
      %v584 = vunpack.c.h.b16 %v237
      %v585 = vunpack.c.l.b16 %v238
      %v586 = vunpack.c.h.b16 %v238
      %v587 = vunpack.c.l.b16 %v239
      %v588 = vunpack.c.h.b16 %v239
      %v589 = vunpack.c.l.b16 %v240
      %v590 = vunpack.c.h.b16 %v240
      %v591 = vunpack.c.l.b16 %v241
      %v592 = vunpack.c.h.b16 %v241
      %v593 = vunpack.c.l.b16 %v242
      %v594 = vunpack.c.h.b16 %v242
      %v595 = vunpack.c.l.b16 %v243
      %v596 = vunpack.c.h.b16 %v243
      %v597 = vunpack.c.l.b16 %v244
      %v598 = vunpack.c.h.b16 %v244
      %v599 = vunpack.c.l.b16 %v245
      %v600 = vunpack.c.h.b16 %v245
      %v601 = vunpack.c.l.b16 %v246
      %v602 = vunpack.c.h.b16 %v246
      %v603 = vunpack.c.l.b16 %v247
      %v604 = vunpack.c.h.b16 %v247
      %v605 = vunpack.c.l.b16 %v248
      %v606 = vunpack.c.h.b16 %v248
      %v607 = vunpack.c.l.b16 %v249
      %v608 = vunpack.c.h.b16 %v249
      %v609 = vunpack.c.l.b16 %v250
      %v610 = vunpack.c.h.b16 %v250
      %v611 = vunpack.c.l.b16 %v251
      %v612 = vunpack.c.h.b16 %v251
      %v613 = vunpack.c.l.b16 %v252
      %v614 = vunpack.c.h.b16 %v252
      %v615 = vunpack.c.l.b16 %v253
      %v616 = vunpack.c.h.b16 %v253
      %v617 = vunpack.c.l.b16 %v254
      %v618 = vunpack.c.h.b16 %v254
      %v619 = vunpack.c.l.b16 %v255
      %v620 = vunpack.c.h.b16 %v255
      %v621 = vunpack.c.l.b16 %v256
      %v622 = vunpack.c.h.b16 %v256
      %v623 = vunpack.c.l.b16 %v257
      %v624 = vunpack.c.h.b16 %v257
      %v625 = vunpack.c.l.b16 %v258
      %v626 = vunpack.c.h.b16 %v258
      %v627 = vunpack.c.l.b16 %v259
      %v628 = vunpack.c.h.b16 %v259
      %v629 = vunpack.c.l.b16 %v260
      %v630 = vunpack.c.h.b16 %v260
      %v631 = vunpack.c.l.b16 %v261
      %v632 = vunpack.c.h.b16 %v261
      %v633 = vunpack.c.l.b16 %v262
      %v634 = vunpack.c.h.b16 %v262
      %v635 = vunpack.c.l.b16 %v263
      %v636 = vunpack.c.h.b16 %v263
      %v637 = vunpack.c.l.b16 %v264
      %v638 = vunpack.c.h.b16 %v264
      %v639 = vunpack.c.l.b16 %v265
      %v640 = vunpack.c.h.b16 %v265
      %v641 = vunpack.c.l.b16 %v266
      %v642 = vunpack.c.h.b16 %v266
      %v643 = vunpack.c.l.b16 %v267
      %v644 = vunpack.c.h.b16 %v267
      %v645 = vunpack.c.l.b16 %v268
      %v646 = vunpack.c.h.b16 %v268
      %v647 = vunpack.c.l.b16 %v269
      %v648 = vunpack.c.h.b16 %v269
      %v649 = vunpack.c.l.b16 %v270
      %v650 = vunpack.c.h.b16 %v270
      %v651 = vunpack.c.l.b16 %v271
      %v652 = vunpack.c.h.b16 %v271
      %v653 = vunpack.c.l.b16 %v272
      %v654 = vunpack.c.h.b16 %v272
      %v655 = vunpack.c.l.b16 %v273
      %v656 = vunpack.c.h.b16 %v273
      %v657 = vunpack.c.l.b16 %v274
      %v658 = vunpack.c.h.b16 %v274
      %v659 = vunpack.c.l.b16 %v275
      %v660 = vunpack.c.h.b16 %v275
      %v661 = vunpack.c.l.b16 %v276
      %v662 = vunpack.c.h.b16 %v276
      %v663 = vunpack.c.l.b16 %v277
      %v664 = vunpack.c.h.b16 %v277
      %v665 = vunpack.c.l.b16 %v278
      %v666 = vunpack.c.h.b16 %v278
      %v667 = vunpack.c.l.b16 %v279
      %v668 = vunpack.c.h.b16 %v279
      %v669 = vunpack.c.l.b16 %v280
      %v670 = vunpack.c.h.b16 %v280
      %v671 = vpack.c.b16 %v417, %v415
      %v672 = vpack.c.b16 %v418, %v416
      %v673 = vpack.c.b16 %v421, %v419
      %v674 = vpack.c.b16 %v422, %v420
      %v675 = vpack.c.b16 %v425, %v423
      %v676 = vpack.c.b16 %v426, %v424
      %v677 = vpack.c.b16 %v429, %v427
      %v678 = vpack.c.b16 %v430, %v428
      %v679 = vpack.c.b16 %v433, %v431
      %v680 = vpack.c.b16 %v434, %v432
      %v681 = vpack.c.b16 %v437, %v435
      %v682 = vpack.c.b16 %v438, %v436
      %v683 = vpack.c.b16 %v441, %v439
      %v684 = vpack.c.b16 %v442, %v440
      %v685 = vpack.c.b16 %v445, %v443
      %v686 = vpack.c.b16 %v446, %v444
      %v687 = vpack.c.b16 %v449, %v447
      %v688 = vpack.c.b16 %v450, %v448
      %v689 = vpack.c.b16 %v453, %v451
      %v690 = vpack.c.b16 %v454, %v452
      %v691 = vpack.c.b16 %v457, %v455
      %v692 = vpack.c.b16 %v458, %v456
      %v693 = vpack.c.b16 %v461, %v459
      %v694 = vpack.c.b16 %v462, %v460
      %v695 = vpack.c.b16 %v465, %v463
      %v696 = vpack.c.b16 %v466, %v464
      %v697 = vpack.c.b16 %v469, %v467
      %v698 = vpack.c.b16 %v470, %v468
      %v699 = vpack.c.b16 %v473, %v471
      %v700 = vpack.c.b16 %v474, %v472
      %v701 = vpack.c.b16 %v477, %v475
      %v702 = vpack.c.b16 %v478, %v476
      %v703 = vpack.c.b16 %v481, %v479
      %v704 = vpack.c.b16 %v482, %v480
      %v705 = vpack.c.b16 %v485, %v483
      %v706 = vpack.c.b16 %v486, %v484
      %v707 = vpack.c.b16 %v489, %v487
      %v708 = vpack.c.b16 %v490, %v488
      %v709 = vpack.c.b16 %v493, %v491
      %v710 = vpack.c.b16 %v494, %v492
      %v711 = vpack.c.b16 %v497, %v495
      %v712 = vpack.c.b16 %v498, %v496
      %v713 = vpack.c.b16 %v501, %v499
      %v714 = vpack.c.b16 %v502, %v500
      %v715 = vpack.c.b16 %v505, %v503
      %v716 = vpack.c.b16 %v506, %v504
      %v717 = vpack.c.b16 %v509, %v507
      %v718 = vpack.c.b16 %v510, %v508
      %v719 = vpack.c.b16 %v513, %v511
      %v720 = vpack.c.b16 %v514, %v512
      %v721 = vpack.c.b16 %v517, %v515
      %v722 = vpack.c.b16 %v518, %v516
      %v723 = vpack.c.b16 %v521, %v519
      %v724 = vpack.c.b16 %v522, %v520
      %v725 = vpack.c.b16 %v525, %v523
      %v726 = vpack.c.b16 %v526, %v524
      %v727 = vpack.c.b16 %v529, %v527
      %v728 = vpack.c.b16 %v530, %v528
      %v729 = vpack.c.b16 %v533, %v531
      %v730 = vpack.c.b16 %v534, %v532
      %v731 = vpack.c.b16 %v537, %v535
      %v732 = vpack.c.b16 %v538, %v536
      %v733 = vpack.c.b16 %v541, %v539
      %v734 = vpack.c.b16 %v542, %v540
      %v735 = vpack.c.b16 %v545, %v543
      %v736 = vpack.c.b16 %v546, %v544
      %v737 = vpack.c.b16 %v549, %v547
      %v738 = vpack.c.b16 %v550, %v548
      %v739 = vpack.c.b16 %v553, %v551
      %v740 = vpack.c.b16 %v554, %v552
      %v741 = vpack.c.b16 %v557, %v555
      %v742 = vpack.c.b16 %v558, %v556
      %v743 = vpack.c.b16 %v561, %v559
      %v744 = vpack.c.b16 %v562, %v560
      %v745 = vpack.c.b16 %v565, %v563
      %v746 = vpack.c.b16 %v566, %v564
      %v747 = vpack.c.b16 %v569, %v567
      %v748 = vpack.c.b16 %v570, %v568
      %v749 = vpack.c.b16 %v573, %v571
      %v750 = vpack.c.b16 %v574, %v572
      %v751 = vpack.c.b16 %v577, %v575
      %v752 = vpack.c.b16 %v578, %v576
      %v753 = vpack.c.b16 %v581, %v579
      %v754 = vpack.c.b16 %v582, %v580
      %v755 = vpack.c.b16 %v585, %v583
      %v756 = vpack.c.b16 %v586, %v584
      %v757 = vpack.c.b16 %v589, %v587
      %v758 = vpack.c.b16 %v590, %v588
      %v759 = vpack.c.b16 %v593, %v591
      %v760 = vpack.c.b16 %v594, %v592
      %v761 = vpack.c.b16 %v597, %v595
      %v762 = vpack.c.b16 %v598, %v596
      %v763 = vpack.c.b16 %v601, %v599
      %v764 = vpack.c.b16 %v602, %v600
      %v765 = vpack.c.b16 %v605, %v603
      %v766 = vpack.c.b16 %v606, %v604
      %v767 = vpack.c.b16 %v609, %v607
      %v768 = vpack.c.b16 %v610, %v608
      %v769 = vpack.c.b16 %v613, %v611
      %v770 = vpack.c.b16 %v614, %v612
      %v771 = vpack.c.b16 %v617, %v615
      %v772 = vpack.c.b16 %v618, %v616
      %v773 = vpack.c.b16 %v621, %v619
      %v774 = vpack.c.b16 %v622, %v620
      %v775 = vpack.c.b16 %v625, %v623
      %v776 = vpack.c.b16 %v626, %v624
      %v777 = vpack.c.b16 %v629, %v627
      %v778 = vpack.c.b16 %v630, %v628
      %v779 = vpack.c.b16 %v633, %v631
      %v780 = vpack.c.b16 %v634, %v632
      %v781 = vpack.c.b16 %v637, %v635
      %v782 = vpack.c.b16 %v638, %v636
      %v783 = vpack.c.b16 %v641, %v639
      %v784 = vpack.c.b16 %v642, %v640
      %v785 = vpack.c.b16 %v645, %v643
      %v786 = vpack.c.b16 %v646, %v644
      %v787 = vpack.c.b16 %v649, %v647
      %v788 = vpack.c.b16 %v650, %v648
      %v789 = vpack.c.b16 %v653, %v651
      %v790 = vpack.c.b16 %v654, %v652
      %v791 = vpack.c.b16 %v657, %v655
      %v792 = vpack.c.b16 %v658, %v656
      %v793 = vpack.c.b16 %v661, %v659
      %v794 = vpack.c.b16 %v662, %v660
      %v795 = vpack.c.b16 %v665, %v663
      %v796 = vpack.c.b16 %v666, %v664
      %v797 = vpack.c.b16 %v669, %v667
      %v798 = vpack.c.b16 %v670, %v668
      %927 = vmatpush.bf16.msra.mxu0 %v685
      %928 = vmatpush.bf16.msra.mxu0 %v683
      %929 = vmatpush.bf16.msra.mxu0 %v681
      %930 = vmatpush.bf16.msra.mxu0 %v679
      %931 = vmatpush.bf16.msra.mxu0 %v677
      %932 = vmatpush.bf16.msra.mxu0 %v675
      %933 = vmatpush.bf16.msra.mxu0 %v673
      %934 = vmatpush.bf16.msra.mxu0 %v671
      %935 = vmatmul.bf16.gmra.mxu0 %v145
      %v936 = vpop.f32.mrf.mxu0
      %v937 = vadd.f32 %v283, %v936
      %v938 = vpop.f32.mrf.mxu0
      %939 = vdwg.mxu0
      %940 = vmatpush.bf16.msra.mxu0 %v701
      %941 = vmatpush.bf16.msra.mxu0 %v699
      %942 = vmatpush.bf16.msra.mxu0 %v697
      %943 = vmatpush.bf16.msra.mxu0 %v695
      %944 = vmatpush.bf16.msra.mxu0 %v693
      %945 = vmatpush.bf16.msra.mxu0 %v691
      %946 = vmatpush.bf16.msra.mxu0 %v689
      %947 = vmatpush.bf16.msra.mxu0 %v687
      %948 = vmatmul.bf16.gmra.mxu0 %v146
      %v949 = vpop.f32.mrf.mxu0
      %v950 = vadd.f32 %v937, %v949
      %v951 = vpop.f32.mrf.mxu0
      %952 = vdwg.mxu0
      %953 = vmatpush.bf16.msra.mxu0 %v717
      %954 = vmatpush.bf16.msra.mxu0 %v715
      %955 = vmatpush.bf16.msra.mxu0 %v713
      %956 = vmatpush.bf16.msra.mxu0 %v711
      %957 = vmatpush.bf16.msra.mxu0 %v709
      %958 = vmatpush.bf16.msra.mxu0 %v707
      %959 = vmatpush.bf16.msra.mxu0 %v705
      %960 = vmatpush.bf16.msra.mxu0 %v703
      %961 = vmatmul.bf16.gmra.mxu0 %v147
      %v962 = vpop.f32.mrf.mxu0
      %v963 = vadd.f32 %v950, %v962
      %v964 = vpop.f32.mrf.mxu0
      %965 = vdwg.mxu0
      %966 = vmatpush.bf16.msra.mxu0 %v733
      %967 = vmatpush.bf16.msra.mxu0 %v731
      %968 = vmatpush.bf16.msra.mxu0 %v729
      %969 = vmatpush.bf16.msra.mxu0 %v727
      %970 = vmatpush.bf16.msra.mxu0 %v725
      %971 = vmatpush.bf16.msra.mxu0 %v723
      %972 = vmatpush.bf16.msra.mxu0 %v721
      %973 = vmatpush.bf16.msra.mxu0 %v719
      %974 = vmatmul.bf16.gmra.mxu0 %v148
      %v975 = vpop.f32.mrf.mxu0
      %v976 = vadd.f32 %v963, %v975
      %v977 = vpop.f32.mrf.mxu0
      %978 = vdwg.mxu0
      %979 = vmatpush.bf16.msra.mxu0 %v749
      %980 = vmatpush.bf16.msra.mxu0 %v747
      %981 = vmatpush.bf16.msra.mxu0 %v745
      %982 = vmatpush.bf16.msra.mxu0 %v743
      %983 = vmatpush.bf16.msra.mxu0 %v741
      %984 = vmatpush.bf16.msra.mxu0 %v739
      %985 = vmatpush.bf16.msra.mxu0 %v737
      %986 = vmatpush.bf16.msra.mxu0 %v735
      %987 = vmatmul.bf16.gmra.mxu0 %v149
      %v988 = vpop.f32.mrf.mxu0
      %v989 = vadd.f32 %v976, %v988
      %v990 = vpop.f32.mrf.mxu0
      %991 = vdwg.mxu0
      %992 = vmatpush.bf16.msra.mxu0 %v765
      %993 = vmatpush.bf16.msra.mxu0 %v763
      %994 = vmatpush.bf16.msra.mxu0 %v761
      %995 = vmatpush.bf16.msra.mxu0 %v759
      %996 = vmatpush.bf16.msra.mxu0 %v757
      %997 = vmatpush.bf16.msra.mxu0 %v755
      %998 = vmatpush.bf16.msra.mxu0 %v753
      %999 = vmatpush.bf16.msra.mxu0 %v751
      %1000 = vmatmul.bf16.gmra.mxu0 %v150
      %v1001 = vpop.f32.mrf.mxu0
      %v1002 = vadd.f32 %v989, %v1001
      %v1003 = vpop.f32.mrf.mxu0
      %1004 = vdwg.mxu0
      %1005 = vmatpush.bf16.msra.mxu0 %v781
      %1006 = vmatpush.bf16.msra.mxu0 %v779
      %1007 = vmatpush.bf16.msra.mxu0 %v777
      %1008 = vmatpush.bf16.msra.mxu0 %v775
      %1009 = vmatpush.bf16.msra.mxu0 %v773
      %1010 = vmatpush.bf16.msra.mxu0 %v771
      %1011 = vmatpush.bf16.msra.mxu0 %v769
      %1012 = vmatpush.bf16.msra.mxu0 %v767
      %1013 = vmatmul.bf16.gmra.mxu0 %v151
      %v1014 = vpop.f32.mrf.mxu0
      %v1015 = vadd.f32 %v1002, %v1014
      %v1016 = vpop.f32.mrf.mxu0
      %1017 = vdwg.mxu0
      %1018 = vmatpush.bf16.msra.mxu0 %v797
      %1019 = vmatpush.bf16.msra.mxu0 %v795
      %1020 = vmatpush.bf16.msra.mxu0 %v793
      %1021 = vmatpush.bf16.msra.mxu0 %v791
      %1022 = vmatpush.bf16.msra.mxu0 %v789
      %1023 = vmatpush.bf16.msra.mxu0 %v787
      %1024 = vmatpush.bf16.msra.mxu0 %v785
      %1025 = vmatpush.bf16.msra.mxu0 %v783
      %1026 = vmatmul.bf16.gmra.mxu0 %v152
      %v1027 = vpop.f32.mrf.mxu0
      %v1028 = vadd.f32 %v1015, %v1027
      %v1029 = vpop.f32.mrf.mxu0
      %1030 = vdwg.mxu0
      %1031 = vmatpush.bf16.msra.mxu0 %v686
      %1032 = vmatpush.bf16.msra.mxu0 %v684
      %1033 = vmatpush.bf16.msra.mxu0 %v682
      %1034 = vmatpush.bf16.msra.mxu0 %v680
      %1035 = vmatpush.bf16.msra.mxu0 %v678
      %1036 = vmatpush.bf16.msra.mxu0 %v676
      %1037 = vmatpush.bf16.msra.mxu0 %v674
      %1038 = vmatpush.bf16.msra.mxu0 %v672
      %1039 = vmatmul.bf16.gmra.mxu0 %v145
      %v1040 = vpop.f32.mrf.mxu0
      %v1041 = vadd.f32 %v284, %v1040
      %v1042 = vpop.f32.mrf.mxu0
      %1043 = vdwg.mxu0
      %1044 = vmatpush.bf16.msra.mxu0 %v702
      %1045 = vmatpush.bf16.msra.mxu0 %v700
      %1046 = vmatpush.bf16.msra.mxu0 %v698
      %1047 = vmatpush.bf16.msra.mxu0 %v696
      %1048 = vmatpush.bf16.msra.mxu0 %v694
      %1049 = vmatpush.bf16.msra.mxu0 %v692
      %1050 = vmatpush.bf16.msra.mxu0 %v690
      %1051 = vmatpush.bf16.msra.mxu0 %v688
      %1052 = vmatmul.bf16.gmra.mxu0 %v146
      %v1053 = vpop.f32.mrf.mxu0
      %v1054 = vadd.f32 %v1041, %v1053
      %v1055 = vpop.f32.mrf.mxu0
      %1056 = vdwg.mxu0
      %1057 = vmatpush.bf16.msra.mxu0 %v718
      %1058 = vmatpush.bf16.msra.mxu0 %v716
      %1059 = vmatpush.bf16.msra.mxu0 %v714
      %1060 = vmatpush.bf16.msra.mxu0 %v712
      %1061 = vmatpush.bf16.msra.mxu0 %v710
      %1062 = vmatpush.bf16.msra.mxu0 %v708
      %1063 = vmatpush.bf16.msra.mxu0 %v706
      %1064 = vmatpush.bf16.msra.mxu0 %v704
      %1065 = vmatmul.bf16.gmra.mxu0 %v147
      %v1066 = vpop.f32.mrf.mxu0
      %v1067 = vadd.f32 %v1054, %v1066
      %v1068 = vpop.f32.mrf.mxu0
      %1069 = vdwg.mxu0
      %1070 = vmatpush.bf16.msra.mxu0 %v734
      %1071 = vmatpush.bf16.msra.mxu0 %v732
      %1072 = vmatpush.bf16.msra.mxu0 %v730
      %1073 = vmatpush.bf16.msra.mxu0 %v728
      %1074 = vmatpush.bf16.msra.mxu0 %v726
      %1075 = vmatpush.bf16.msra.mxu0 %v724
      %1076 = vmatpush.bf16.msra.mxu0 %v722
      %1077 = vmatpush.bf16.msra.mxu0 %v720
      %1078 = vmatmul.bf16.gmra.mxu0 %v148
      %v1079 = vpop.f32.mrf.mxu0
      %v1080 = vadd.f32 %v1067, %v1079
      %v1081 = vpop.f32.mrf.mxu0
      %1082 = vdwg.mxu0
      %1083 = vmatpush.bf16.msra.mxu0 %v750
      %1084 = vmatpush.bf16.msra.mxu0 %v748
      %1085 = vmatpush.bf16.msra.mxu0 %v746
      %1086 = vmatpush.bf16.msra.mxu0 %v744
      %1087 = vmatpush.bf16.msra.mxu0 %v742
      %1088 = vmatpush.bf16.msra.mxu0 %v740
      %1089 = vmatpush.bf16.msra.mxu0 %v738
      %1090 = vmatpush.bf16.msra.mxu0 %v736
      %1091 = vmatmul.bf16.gmra.mxu0 %v149
      %v1092 = vpop.f32.mrf.mxu0
      %v1093 = vadd.f32 %v1080, %v1092
      %v1094 = vpop.f32.mrf.mxu0
      %1095 = vdwg.mxu0
      %1096 = vmatpush.bf16.msra.mxu0 %v766
      %1097 = vmatpush.bf16.msra.mxu0 %v764
      %1098 = vmatpush.bf16.msra.mxu0 %v762
      %1099 = vmatpush.bf16.msra.mxu0 %v760
      %1100 = vmatpush.bf16.msra.mxu0 %v758
      %1101 = vmatpush.bf16.msra.mxu0 %v756
      %1102 = vmatpush.bf16.msra.mxu0 %v754
      %1103 = vmatpush.bf16.msra.mxu0 %v752
      %1104 = vmatmul.bf16.gmra.mxu0 %v150
      %v1105 = vpop.f32.mrf.mxu0
      %v1106 = vadd.f32 %v1093, %v1105
      %v1107 = vpop.f32.mrf.mxu0
      %1108 = vdwg.mxu0
      %1109 = vmatpush.bf16.msra.mxu0 %v782
      %1110 = vmatpush.bf16.msra.mxu0 %v780
      %1111 = vmatpush.bf16.msra.mxu0 %v778
      %1112 = vmatpush.bf16.msra.mxu0 %v776
      %1113 = vmatpush.bf16.msra.mxu0 %v774
      %1114 = vmatpush.bf16.msra.mxu0 %v772
      %1115 = vmatpush.bf16.msra.mxu0 %v770
      %1116 = vmatpush.bf16.msra.mxu0 %v768
      %1117 = vmatmul.bf16.gmra.mxu0 %v151
      %v1118 = vpop.f32.mrf.mxu0
      %v1119 = vadd.f32 %v1106, %v1118
      %v1120 = vpop.f32.mrf.mxu0
      %1121 = vdwg.mxu0
      %1122 = vmatpush.bf16.msra.mxu0 %v798
      %1123 = vmatpush.bf16.msra.mxu0 %v796
      %1124 = vmatpush.bf16.msra.mxu0 %v794
      %1125 = vmatpush.bf16.msra.mxu0 %v792
      %1126 = vmatpush.bf16.msra.mxu0 %v790
      %1127 = vmatpush.bf16.msra.mxu0 %v788
      %1128 = vmatpush.bf16.msra.mxu0 %v786
      %1129 = vmatpush.bf16.msra.mxu0 %v784
      %1130 = vmatmul.bf16.gmra.mxu0 %v152
      %v1131 = vpop.f32.mrf.mxu0
      %v1132 = vadd.f32 %v1119, %v1131
      %v1133 = vpop.f32.mrf.mxu0
      %1134 = vdwg.mxu0
      %v1135 = vmul.f32 %v1132, 0.5
      %v1136 = vmul.f32 %v1135, 1.442695
      %v1137 = vpow.pop %v1136
      %v1138 = vld [vmem:[#allocation13] sm:$0x3]
      %v1139 = vmul.f32 %v1137, %v1138
      %v1140 = vadd.f32 %v1028, %v1139
      %v1141 = vpack.c.bf16 %v1140, %v1140
      %1142 = vst [vmem:[#allocation2] sm:$0x1] %v1141
      %v1143 = vmul.f32 %v1137, %v1137
      %v1144 = vadd.f32 %v1132, 1.0
      %v1145 = vmul.f32 %v1028, %v1028
      %v1146 = vsub.f32 %v1144, %v1145
      %v1147 = vsub.f32 %v1146, %v1143
      %v1148 = vmul.f32 %v1147, -0.5
      %vm1149 = vcmask 1041408
      %v1150 = vsel %vm1149, %v1148, 0.0
      %1151 = vadd.xlane.f32.xlu0 %v1150
      %v1152 = vpop.xlane.xlu0 %1151
      %v1153 = vrot.slane %v1152, 4
      %v1154 = vadd.f32 %v1152, %v1153
      %v1155 = vrot.slane %v1154, 2
      %v1156 = vadd.f32 %v1154, %v1155
      %v1157 = vrot.slane %v1156, 1
      %v1158 = vadd.f32 %v1156, %v1157
      %s1159 = vtos %v1158
      %s1160 = scalar_lea.smem [#allocation4], 0
      %1161 = sst [smem:[%s1160]] %s1159
      %1162 = vst [vmem:[#allocation3] sm:$0xff] 0.0
      %1163 = vst [vmem:[#allocation3 + $0x8] sm:$0xff] 0.0
    $region57: #{tpu_custom_call.1} parent=1 // pred_fallthru
      _
    %v1164 = vld [vmem:[#allocation2] sm:$0x1]
    %v1165 = vld [vmem:[#allocation14] sm:$0xff]
    %v1166 = vld [vmem:[#allocation14 + $0x8] sm:$0xff]
    %v1167 = vld [vmem:[#allocation14 + $0x10] sm:$0xff]
    %v1168 = vld [vmem:[#allocation14 + $0x18] sm:$0xff]
    %v1169 = vld [vmem:[#allocation14 + $0x20] sm:$0xff]
    %v1170 = vld [vmem:[#allocation14 + $0x28] sm:$0xff]
    %v1171 = vld [vmem:[#allocation14 + $0x30] sm:$0xff]
    %v1172 = vld [vmem:[#allocation14 + $0x38] sm:$0xff]
    %v1173 = vld [vmem:[#allocation14 + $0x40] sm:$0xff]
    %v1174 = vld [vmem:[#allocation14 + $0x48] sm:$0xff]
    %v1175 = vld [vmem:[#allocation14 + $0x50] sm:$0xff]
    %v1176 = vld [vmem:[#allocation14 + $0x58] sm:$0xff]
    %v1177 = vld [vmem:[#allocation14 + $0x60] sm:$0xff]
    %v1178 = vld [vmem:[#allocation14 + $0x68] sm:$0xff]
    %v1179 = vld [vmem:[#allocation14 + $0x70] sm:$0xff]
    %v1180 = vld [vmem:[#allocation14 + $0x78] sm:$0xff]
    %v1181 = vld [vmem:[#allocation14 + $0x80] sm:$0xff]
    %v1182 = vld [vmem:[#allocation14 + $0x88] sm:$0xff]
    %v1183 = vld [vmem:[#allocation14 + $0x90] sm:$0xff]
    %v1184 = vld [vmem:[#allocation14 + $0x98] sm:$0xff]
    %v1185 = vld [vmem:[#allocation14 + $0xa0] sm:$0xff]
    %v1186 = vld [vmem:[#allocation14 + $0xa8] sm:$0xff]
    %v1187 = vld [vmem:[#allocation14 + $0xb0] sm:$0xff]
    %v1188 = vld [vmem:[#allocation14 + $0xb8] sm:$0xff]
    %v1189 = vld [vmem:[#allocation14 + $0xc0] sm:$0xff]
    %v1190 = vld [vmem:[#allocation14 + $0xc8] sm:$0xff]
    %v1191 = vld [vmem:[#allocation14 + $0xd0] sm:$0xff]
    %v1192 = vld [vmem:[#allocation14 + $0xd8] sm:$0xff]
    %v1193 = vld [vmem:[#allocation14 + $0xe0] sm:$0xff]
    %v1194 = vld [vmem:[#allocation14 + $0xe8] sm:$0xff]
    %v1195 = vld [vmem:[#allocation14 + $0xf0] sm:$0xff]
    %v1196 = vld [vmem:[#allocation14 + $0xf8] sm:$0xff]
    %v1197 = vld [vmem:[#allocation14 + $0x100] sm:$0xff]
    %v1198 = vld [vmem:[#allocation14 + $0x108] sm:$0xff]
    %v1199 = vld [vmem:[#allocation14 + $0x110] sm:$0xff]
    %v1200 = vld [vmem:[#allocation14 + $0x118] sm:$0xff]
    %v1201 = vld [vmem:[#allocation14 + $0x120] sm:$0xff]
    %v1202 = vld [vmem:[#allocation14 + $0x128] sm:$0xff]
    %v1203 = vld [vmem:[#allocation14 + $0x130] sm:$0xff]
    %v1204 = vld [vmem:[#allocation14 + $0x138] sm:$0xff]
    %v1205 = vld [vmem:[#allocation14 + $0x140] sm:$0xff]
    %v1206 = vld [vmem:[#allocation14 + $0x148] sm:$0xff]
    %v1207 = vld [vmem:[#allocation14 + $0x150] sm:$0xff]
    %v1208 = vld [vmem:[#allocation14 + $0x158] sm:$0xff]
    %v1209 = vld [vmem:[#allocation14 + $0x160] sm:$0xff]
    %v1210 = vld [vmem:[#allocation14 + $0x168] sm:$0xff]
    %v1211 = vld [vmem:[#allocation14 + $0x170] sm:$0xff]
    %v1212 = vld [vmem:[#allocation14 + $0x178] sm:$0xff]
    %v1213 = vld [vmem:[#allocation14 + $0x180] sm:$0xff]
    %v1214 = vld [vmem:[#allocation14 + $0x188] sm:$0xff]
    %v1215 = vld [vmem:[#allocation14 + $0x190] sm:$0xff]
    %v1216 = vld [vmem:[#allocation14 + $0x198] sm:$0xff]
    %v1217 = vld [vmem:[#allocation14 + $0x1a0] sm:$0xff]
    %v1218 = vld [vmem:[#allocation14 + $0x1a8] sm:$0xff]
    %v1219 = vld [vmem:[#allocation14 + $0x1b0] sm:$0xff]
    %v1220 = vld [vmem:[#allocation14 + $0x1b8] sm:$0xff]
    %v1221 = vld [vmem:[#allocation14 + $0x1c0] sm:$0xff]
    %v1222 = vld [vmem:[#allocation14 + $0x1c8] sm:$0xff]
    %v1223 = vld [vmem:[#allocation14 + $0x1d0] sm:$0xff]
    %v1224 = vld [vmem:[#allocation14 + $0x1d8] sm:$0xff]
    %v1225 = vld [vmem:[#allocation14 + $0x1e0] sm:$0xff]
    %v1226 = vld [vmem:[#allocation14 + $0x1e8] sm:$0xff]
    %v1227 = vld [vmem:[#allocation14 + $0x1f0] sm:$0xff]
    %v1228 = vld [vmem:[#allocation14 + $0x1f8] sm:$0xff]
    %v1229 = vld [vmem:[#allocation16] sm:$0xff]
    %v1231 = vperm.slane %v1229, 0
    %v1232 = vperm.slane %v1229, 1
    %v1233 = vperm.slane %v1229, 2
    %v1234 = vperm.slane %v1229, 3
    %v1235 = vperm.slane %v1229, 4
    %v1236 = vperm.slane %v1229, 5
    %v1237 = vperm.slane %v1229, 6
    %v1238 = vperm.slane %v1229, 7
    %v1311 = vunpack.c.l.b16 %v1165
    %v1312 = vunpack.c.h.b16 %v1165
    %v1313 = vunpack.c.l.b16 %v1166
    %v1314 = vunpack.c.h.b16 %v1166
    %v1315 = vunpack.c.l.b16 %v1167
    %v1316 = vunpack.c.h.b16 %v1167
    %v1317 = vunpack.c.l.b16 %v1168
    %v1318 = vunpack.c.h.b16 %v1168
    %v1319 = vunpack.c.l.b16 %v1169
    %v1320 = vunpack.c.h.b16 %v1169
    %v1321 = vunpack.c.l.b16 %v1170
    %v1322 = vunpack.c.h.b16 %v1170
    %v1323 = vunpack.c.l.b16 %v1171
    %v1324 = vunpack.c.h.b16 %v1171
    %v1325 = vunpack.c.l.b16 %v1172
    %v1326 = vunpack.c.h.b16 %v1172
    %v1327 = vunpack.c.l.b16 %v1173
    %v1328 = vunpack.c.h.b16 %v1173
    %v1329 = vunpack.c.l.b16 %v1174
    %v1330 = vunpack.c.h.b16 %v1174
    %v1331 = vunpack.c.l.b16 %v1175
    %v1332 = vunpack.c.h.b16 %v1175
    %v1333 = vunpack.c.l.b16 %v1176
    %v1334 = vunpack.c.h.b16 %v1176
    %v1335 = vunpack.c.l.b16 %v1177
    %v1336 = vunpack.c.h.b16 %v1177
    %v1337 = vunpack.c.l.b16 %v1178
    %v1338 = vunpack.c.h.b16 %v1178
    %v1339 = vunpack.c.l.b16 %v1179
    %v1340 = vunpack.c.h.b16 %v1179
    %v1341 = vunpack.c.l.b16 %v1180
    %v1342 = vunpack.c.h.b16 %v1180
    %v1343 = vunpack.c.l.b16 %v1181
    %v1344 = vunpack.c.h.b16 %v1181
    %v1345 = vunpack.c.l.b16 %v1182
    %v1346 = vunpack.c.h.b16 %v1182
    %v1347 = vunpack.c.l.b16 %v1183
    %v1348 = vunpack.c.h.b16 %v1183
    %v1349 = vunpack.c.l.b16 %v1184
    %v1350 = vunpack.c.h.b16 %v1184
    %v1351 = vunpack.c.l.b16 %v1185
    %v1352 = vunpack.c.h.b16 %v1185
    %v1353 = vunpack.c.l.b16 %v1186
    %v1354 = vunpack.c.h.b16 %v1186
    %v1355 = vunpack.c.l.b16 %v1187
    %v1356 = vunpack.c.h.b16 %v1187
    %v1357 = vunpack.c.l.b16 %v1188
    %v1358 = vunpack.c.h.b16 %v1188
    %v1359 = vunpack.c.l.b16 %v1189
    %v1360 = vunpack.c.h.b16 %v1189
    %v1361 = vunpack.c.l.b16 %v1190
    %v1362 = vunpack.c.h.b16 %v1190
    %v1363 = vunpack.c.l.b16 %v1191
    %v1364 = vunpack.c.h.b16 %v1191
    %v1365 = vunpack.c.l.b16 %v1192
    %v1366 = vunpack.c.h.b16 %v1192
    %v1367 = vunpack.c.l.b16 %v1193
    %v1368 = vunpack.c.h.b16 %v1193
    %v1369 = vunpack.c.l.b16 %v1194
    %v1370 = vunpack.c.h.b16 %v1194
    %v1371 = vunpack.c.l.b16 %v1195
    %v1372 = vunpack.c.h.b16 %v1195
    %v1373 = vunpack.c.l.b16 %v1196
    %v1374 = vunpack.c.h.b16 %v1196
    %v1375 = vunpack.c.l.b16 %v1197
    %v1376 = vunpack.c.h.b16 %v1197
    %v1377 = vunpack.c.l.b16 %v1198
    %v1378 = vunpack.c.h.b16 %v1198
    %v1379 = vunpack.c.l.b16 %v1199
    %v1380 = vunpack.c.h.b16 %v1199
    %v1381 = vunpack.c.l.b16 %v1200
    %v1382 = vunpack.c.h.b16 %v1200
    %v1383 = vunpack.c.l.b16 %v1201
    %v1384 = vunpack.c.h.b16 %v1201
    %v1385 = vunpack.c.l.b16 %v1202
    %v1386 = vunpack.c.h.b16 %v1202
    %v1387 = vunpack.c.l.b16 %v1203
    %v1388 = vunpack.c.h.b16 %v1203
    %v1389 = vunpack.c.l.b16 %v1204
    %v1390 = vunpack.c.h.b16 %v1204
    %v1391 = vunpack.c.l.b16 %v1205
    %v1392 = vunpack.c.h.b16 %v1205
    %v1393 = vunpack.c.l.b16 %v1206
    %v1394 = vunpack.c.h.b16 %v1206
    %v1395 = vunpack.c.l.b16 %v1207
    %v1396 = vunpack.c.h.b16 %v1207
    %v1397 = vunpack.c.l.b16 %v1208
    %v1398 = vunpack.c.h.b16 %v1208
    %v1399 = vunpack.c.l.b16 %v1209
    %v1400 = vunpack.c.h.b16 %v1209
    %v1401 = vunpack.c.l.b16 %v1210
    %v1402 = vunpack.c.h.b16 %v1210
    %v1403 = vunpack.c.l.b16 %v1211
    %v1404 = vunpack.c.h.b16 %v1211
    %v1405 = vunpack.c.l.b16 %v1212
    %v1406 = vunpack.c.h.b16 %v1212
    %v1407 = vunpack.c.l.b16 %v1213
    %v1408 = vunpack.c.h.b16 %v1213
    %v1409 = vunpack.c.l.b16 %v1214
    %v1410 = vunpack.c.h.b16 %v1214
    %v1411 = vunpack.c.l.b16 %v1215
    %v1412 = vunpack.c.h.b16 %v1215
    %v1413 = vunpack.c.l.b16 %v1216
    %v1414 = vunpack.c.h.b16 %v1216
    %v1415 = vunpack.c.l.b16 %v1217
    %v1416 = vunpack.c.h.b16 %v1217
    %v1417 = vunpack.c.l.b16 %v1218
    %v1418 = vunpack.c.h.b16 %v1218
    %v1419 = vunpack.c.l.b16 %v1219
    %v1420 = vunpack.c.h.b16 %v1219
    %v1421 = vunpack.c.l.b16 %v1220
    %v1422 = vunpack.c.h.b16 %v1220
    %v1423 = vunpack.c.l.b16 %v1221
    %v1424 = vunpack.c.h.b16 %v1221
    %v1425 = vunpack.c.l.b16 %v1222
    %v1426 = vunpack.c.h.b16 %v1222
    %v1427 = vunpack.c.l.b16 %v1223
    %v1428 = vunpack.c.h.b16 %v1223
    %v1429 = vunpack.c.l.b16 %v1224
    %v1430 = vunpack.c.h.b16 %v1224
    %v1431 = vunpack.c.l.b16 %v1225
    %v1432 = vunpack.c.h.b16 %v1225
    %v1433 = vunpack.c.l.b16 %v1226
    %v1434 = vunpack.c.h.b16 %v1226
    %v1435 = vunpack.c.l.b16 %v1227
    %v1436 = vunpack.c.h.b16 %v1227
    %v1437 = vunpack.c.l.b16 %v1228
    %v1438 = vunpack.c.h.b16 %v1228
    %v1439 = vpack.c.b16 %v1319, %v1311
    %v1440 = vpack.c.b16 %v1320, %v1312
    %v1441 = vpack.c.b16 %v1321, %v1313
    %v1442 = vpack.c.b16 %v1322, %v1314
    %v1443 = vpack.c.b16 %v1323, %v1315
    %v1444 = vpack.c.b16 %v1324, %v1316
    %v1445 = vpack.c.b16 %v1325, %v1317
    %v1446 = vpack.c.b16 %v1326, %v1318
    %v1447 = vpack.c.b16 %v1335, %v1327
    %v1448 = vpack.c.b16 %v1336, %v1328
    %v1449 = vpack.c.b16 %v1337, %v1329
    %v1450 = vpack.c.b16 %v1338, %v1330
    %v1451 = vpack.c.b16 %v1339, %v1331
    %v1452 = vpack.c.b16 %v1340, %v1332
    %v1453 = vpack.c.b16 %v1341, %v1333
    %v1454 = vpack.c.b16 %v1342, %v1334
    %v1455 = vpack.c.b16 %v1351, %v1343
    %v1456 = vpack.c.b16 %v1352, %v1344
    %v1457 = vpack.c.b16 %v1353, %v1345
    %v1458 = vpack.c.b16 %v1354, %v1346
    %v1459 = vpack.c.b16 %v1355, %v1347
    %v1460 = vpack.c.b16 %v1356, %v1348
    %v1461 = vpack.c.b16 %v1357, %v1349
    %v1462 = vpack.c.b16 %v1358, %v1350
    %v1463 = vpack.c.b16 %v1367, %v1359
    %v1464 = vpack.c.b16 %v1368, %v1360
    %v1465 = vpack.c.b16 %v1369, %v1361
    %v1466 = vpack.c.b16 %v1370, %v1362
    %v1467 = vpack.c.b16 %v1371, %v1363
    %v1468 = vpack.c.b16 %v1372, %v1364
    %v1469 = vpack.c.b16 %v1373, %v1365
    %v1470 = vpack.c.b16 %v1374, %v1366
    %v1471 = vpack.c.b16 %v1383, %v1375
    %v1472 = vpack.c.b16 %v1384, %v1376
    %v1473 = vpack.c.b16 %v1385, %v1377
    %v1474 = vpack.c.b16 %v1386, %v1378
    %v1475 = vpack.c.b16 %v1387, %v1379
    %v1476 = vpack.c.b16 %v1388, %v1380
    %v1477 = vpack.c.b16 %v1389, %v1381
    %v1478 = vpack.c.b16 %v1390, %v1382
    %v1479 = vpack.c.b16 %v1399, %v1391
    %v1480 = vpack.c.b16 %v1400, %v1392
    %v1481 = vpack.c.b16 %v1401, %v1393
    %v1482 = vpack.c.b16 %v1402, %v1394
    %v1483 = vpack.c.b16 %v1403, %v1395
    %v1484 = vpack.c.b16 %v1404, %v1396
    %v1485 = vpack.c.b16 %v1405, %v1397
    %v1486 = vpack.c.b16 %v1406, %v1398
    %v1487 = vpack.c.b16 %v1415, %v1407
    %v1488 = vpack.c.b16 %v1416, %v1408
    %v1489 = vpack.c.b16 %v1417, %v1409
    %v1490 = vpack.c.b16 %v1418, %v1410
    %v1491 = vpack.c.b16 %v1419, %v1411
    %v1492 = vpack.c.b16 %v1420, %v1412
    %v1493 = vpack.c.b16 %v1421, %v1413
    %v1494 = vpack.c.b16 %v1422, %v1414
    %v1495 = vpack.c.b16 %v1431, %v1423
    %v1496 = vpack.c.b16 %v1432, %v1424
    %v1497 = vpack.c.b16 %v1433, %v1425
    %v1498 = vpack.c.b16 %v1434, %v1426
    %v1499 = vpack.c.b16 %v1435, %v1427
    %v1500 = vpack.c.b16 %v1436, %v1428
    %v1501 = vpack.c.b16 %v1437, %v1429
    %v1502 = vpack.c.b16 %v1438, %v1430
    %1567 = vmatpush.bf16.msra.mxu0 %v1495
    %1568 = vmatpush.bf16.msra.mxu0 %v1487
    %1569 = vmatpush.bf16.msra.mxu0 %v1479
    %1570 = vmatpush.bf16.msra.mxu0 %v1471
    %1571 = vmatpush.bf16.msra.mxu0 %v1463
    %1572 = vmatpush.bf16.msra.mxu0 %v1455
    %1573 = vmatpush.bf16.msra.mxu0 %v1447
    %1574 = vmatpush.bf16.msra.mxu0 %v1439
    %1575 = vmatmul.bf16.gmra.mxu0 %v1164
    %v1576 = vpop.f32.mrf.mxu0
    %v1577 = vadd.f32 %v1231, %v1576
    %v1578 = vpop.f32.mrf.mxu0
    %1579 = vdwg.mxu0
    %1580 = vmatpush.bf16.msra.mxu0 %v1496
    %1581 = vmatpush.bf16.msra.mxu0 %v1488
    %1582 = vmatpush.bf16.msra.mxu0 %v1480
    %1583 = vmatpush.bf16.msra.mxu0 %v1472
    %1584 = vmatpush.bf16.msra.mxu0 %v1464
    %1585 = vmatpush.bf16.msra.mxu0 %v1456
    %1586 = vmatpush.bf16.msra.mxu0 %v1448
    %1587 = vmatpush.bf16.msra.mxu0 %v1440
    %1588 = vmatmul.bf16.gmra.mxu0 %v1164
    %v1589 = vpop.f32.mrf.mxu0
    %v1590 = vadd.f32 %v1232, %v1589
    %v1591 = vpop.f32.mrf.mxu0
    %1592 = vdwg.mxu0
    %1593 = vmatpush.bf16.msra.mxu0 %v1497
    %1594 = vmatpush.bf16.msra.mxu0 %v1489
    %1595 = vmatpush.bf16.msra.mxu0 %v1481
    %1596 = vmatpush.bf16.msra.mxu0 %v1473
    %1597 = vmatpush.bf16.msra.mxu0 %v1465
    %1598 = vmatpush.bf16.msra.mxu0 %v1457
    %1599 = vmatpush.bf16.msra.mxu0 %v1449
    %1600 = vmatpush.bf16.msra.mxu0 %v1441
    %1601 = vmatmul.bf16.gmra.mxu0 %v1164
    %v1602 = vpop.f32.mrf.mxu0
    %v1603 = vadd.f32 %v1233, %v1602
    %v1604 = vpop.f32.mrf.mxu0
    %1605 = vdwg.mxu0
    %1606 = vmatpush.bf16.msra.mxu0 %v1498
    %1607 = vmatpush.bf16.msra.mxu0 %v1490
    %1608 = vmatpush.bf16.msra.mxu0 %v1482
    %1609 = vmatpush.bf16.msra.mxu0 %v1474
    %1610 = vmatpush.bf16.msra.mxu0 %v1466
    %1611 = vmatpush.bf16.msra.mxu0 %v1458
    %1612 = vmatpush.bf16.msra.mxu0 %v1450
    %1613 = vmatpush.bf16.msra.mxu0 %v1442
    %1614 = vmatmul.bf16.gmra.mxu0 %v1164
    %v1615 = vpop.f32.mrf.mxu0
    %v1616 = vadd.f32 %v1234, %v1615
    %v1617 = vpop.f32.mrf.mxu0
    %1618 = vdwg.mxu0
    %1619 = vmatpush.bf16.msra.mxu0 %v1499
    %1620 = vmatpush.bf16.msra.mxu0 %v1491
    %1621 = vmatpush.bf16.msra.mxu0 %v1483
    %1622 = vmatpush.bf16.msra.mxu0 %v1475
    %1623 = vmatpush.bf16.msra.mxu0 %v1467
    %1624 = vmatpush.bf16.msra.mxu0 %v1459
    %1625 = vmatpush.bf16.msra.mxu0 %v1451
    %1626 = vmatpush.bf16.msra.mxu0 %v1443
    %1627 = vmatmul.bf16.gmra.mxu0 %v1164
    %v1628 = vpop.f32.mrf.mxu0
    %v1629 = vadd.f32 %v1235, %v1628
    %v1630 = vpop.f32.mrf.mxu0
    %1631 = vdwg.mxu0
    %1632 = vmatpush.bf16.msra.mxu0 %v1500
    %1633 = vmatpush.bf16.msra.mxu0 %v1492
    %1634 = vmatpush.bf16.msra.mxu0 %v1484
    %1635 = vmatpush.bf16.msra.mxu0 %v1476
    %1636 = vmatpush.bf16.msra.mxu0 %v1468
    %1637 = vmatpush.bf16.msra.mxu0 %v1460
    %1638 = vmatpush.bf16.msra.mxu0 %v1452
    %1639 = vmatpush.bf16.msra.mxu0 %v1444
    %1640 = vmatmul.bf16.gmra.mxu0 %v1164
    %v1641 = vpop.f32.mrf.mxu0
    %v1642 = vadd.f32 %v1236, %v1641
    %v1643 = vpop.f32.mrf.mxu0
    %1644 = vdwg.mxu0
    %1645 = vmatpush.bf16.msra.mxu0 %v1501
    %1646 = vmatpush.bf16.msra.mxu0 %v1493
    %1647 = vmatpush.bf16.msra.mxu0 %v1485
    %1648 = vmatpush.bf16.msra.mxu0 %v1477
    %1649 = vmatpush.bf16.msra.mxu0 %v1469
    %1650 = vmatpush.bf16.msra.mxu0 %v1461
    %1651 = vmatpush.bf16.msra.mxu0 %v1453
    %1652 = vmatpush.bf16.msra.mxu0 %v1445
    %1653 = vmatmul.bf16.gmra.mxu0 %v1164
    %v1654 = vpop.f32.mrf.mxu0
    %v1655 = vadd.f32 %v1237, %v1654
    %v1656 = vpop.f32.mrf.mxu0
    %1657 = vdwg.mxu0
    %1658 = vmatpush.bf16.msra.mxu0 %v1502
    %1659 = vmatpush.bf16.msra.mxu0 %v1494
    %1660 = vmatpush.bf16.msra.mxu0 %v1486
    %1661 = vmatpush.bf16.msra.mxu0 %v1478
    %1662 = vmatpush.bf16.msra.mxu0 %v1470
    %1663 = vmatpush.bf16.msra.mxu0 %v1462
    %1664 = vmatpush.bf16.msra.mxu0 %v1454
    %1665 = vmatpush.bf16.msra.mxu0 %v1446
    %1666 = vmatmul.bf16.gmra.mxu0 %v1164
    %v1667 = vpop.f32.mrf.mxu0
    %v1668 = vadd.f32 %v1238, %v1667
    %v1669 = vpop.f32.mrf.mxu0
    %1670 = vdwg.mxu0
    %v1671 = vpack.c.bf16 %v1590, %v1577
    %v1672 = vpack.c.bf16 %v1616, %v1603
    %v1673 = vpack.c.bf16 %v1642, %v1629
    %v1674 = vpack.c.bf16 %v1668, %v1655
    %v1679 = vrot.slane %v1671, 3
    %v1680 = vrot.slane %v1672, 6
    %v1681 = vrot.slane %v1672, 1
    %v1682 = vrot.slane %v1673, 4
    %v1683 = vrot.slane %v1673, 7
    %v1684 = vrot.slane %v1674, 2
    %v1685 = vrot.slane %v1674, 5
    %vm1686 = vcmask 1040384
    %v1689 = vsel %vm1686, %v1671, %v1679
    %vm1690 = vcmask 1042434
    %v1693 = vsel %vm1690, %v1680, %v1681
    %vm1694 = vcmask 1041408
    %v1695 = vsel %vm1694, %v1689, %v1693
    %vm1696 = vcmask 1044484
    %v1699 = vsel %vm1696, %v1682, %v1683
    %vm1700 = vcmask 1046534
    %v1703 = vsel %vm1700, %v1684, %v1685
    %vm1704 = vcmask 1045508
    %v1705 = vsel %vm1704, %v1699, %v1703
    %vm1706 = vcmask 1043456
    %v1707 = vsel %vm1706, %v1695, %v1705
    %1709 = vst [vmem:[#allocation17] sm:$0xff] %v1707
    %s1710 = smul.u32 0, 1024
    %s1711 = sshra.s32 %s1710, 7
    %s1712 = sand.u32 %s1710, 127
    %s1713 = smul.addr %s1711, 2
    %s1714 = scalar_lea.vmem [#allocation10], %s1713
    %v1715 = vld [vmem:[%s1714] sm:$0xff]
    %v1716 = vld [vmem:[%s1714 + $0x8] sm:$0xff]
    %1719 = vst [vmem:[#allocation1] ss:$4 sm:$0xff] %v1715
    %s1720 = scalar_lea.vmem [#allocation1], 32
    %1721 = vst [vmem:[%s1720] ss:$4 sm:$0xff] %v1716
    %v1722 = vld.sshfl [vmem:[#allocation1] sm:$0xff pattern:$0x73625140]
    %v1723 = vld.sshfl [vmem:[#allocation1 + $0x8] sm:$0xff pattern:$0x73625140]
    %v1724 = vld.sshfl [vmem:[#allocation1 + $0x10] sm:$0xff pattern:$0x73625140]
    %v1725 = vld.sshfl [vmem:[#allocation1 + $0x18] sm:$0xff pattern:$0x73625140]
    %v1726 = vld.sshfl [vmem:[#allocation1 + $0x20] sm:$0xff pattern:$0x73625140]
    %v1727 = vld.sshfl [vmem:[#allocation1 + $0x28] sm:$0xff pattern:$0x73625140]
    %v1728 = vld.sshfl [vmem:[#allocation1 + $0x30] sm:$0xff pattern:$0x73625140]
    %v1729 = vld.sshfl [vmem:[#allocation1 + $0x38] sm:$0xff pattern:$0x73625140]
    %v1738 = vsub.f32 %v1577, %v1722
    %v1739 = vsub.f32 %v1590, %v1723
    %v1740 = vsub.f32 %v1603, %v1724
    %v1741 = vsub.f32 %v1616, %v1725
    %v1742 = vsub.f32 %v1629, %v1726
    %v1743 = vsub.f32 %v1642, %v1727
    %v1744 = vsub.f32 %v1655, %v1728
    %v1745 = vsub.f32 %v1668, %v1729
    %v1746 = vld [vmem:[#allocation3] sm:$0xff]
    %v1747 = vld [vmem:[#allocation3 + $0x8] sm:$0xff]
    %v1748 = vmul.f32 %v1738, %v1738
    %v1749 = vmul.f32 %v1739, %v1739
    %v1750 = vmul.f32 %v1740, %v1740
    %v1751 = vmul.f32 %v1741, %v1741
    %v1752 = vmul.f32 %v1742, %v1742
    %v1753 = vmul.f32 %v1743, %v1743
    %v1754 = vmul.f32 %v1744, %v1744
    %v1755 = vmul.f32 %v1745, %v1745
    %v1764 = vrot.slane %v1749, 6
    %v1765 = vrot.slane %v1750, 4
    %v1766 = vrot.slane %v1751, 2
    %v1767 = vrot.slane %v1753, 6
    %v1768 = vrot.slane %v1754, 4
    %v1769 = vrot.slane %v1755, 2
    %v1770 = vsel %vm1694, %v1748, %v1764
    %v1771 = vsel %vm1704, %v1765, %v1766
    %v1772 = vsel %vm1706, %v1770, %v1771
    %v1773 = vsel %vm1694, %v1752, %v1767
    %v1774 = vsel %vm1704, %v1768, %v1769
    %v1775 = vsel %vm1706, %v1773, %v1774
    %v1778 = vadd.f32 %v1746, %v1772
    %v1779 = vadd.f32 %v1747, %v1775
    %1780 = vst [vmem:[#allocation3] sm:$0xff] %v1778
    %1781 = vst [vmem:[#allocation3 + $0x8] sm:$0xff] %v1779
    // Predicated region
    $region58: #{tpu_custom_call.1} parent=1 // pred_check
      %p1782 = pneg %p118
    $region59: #{tpu_custom_call.1} parent=1 // pred_check_branch
      %1784 = sbr.rel (%p1782) target = $region61
    $region60: #{tpu_custom_call.1} parent=1 // pred_region
      %s1785 = sld [smem:[#allocation5]]
      %s1786 = sld [smem:[#allocation5 + $0x1]]
      %v1787 = vld [vmem:[#allocation3] sm:$0xff]
      %v1788 = vld [vmem:[#allocation3 + $0x8] sm:$0xff]
      %1791 = vst [vmem:[#allocation1] ss:$4 sm:$0xff] %v1787
      %s1792 = scalar_lea.vmem [#allocation1], 32
      %1793 = vst [vmem:[%s1792] ss:$4 sm:$0xff] %v1788
      %v1794 = vld.sshfl [vmem:[#allocation1] sm:$0xff pattern:$0x73625140]
      %v1795 = vld.sshfl [vmem:[#allocation1 + $0x8] sm:$0xff pattern:$0x73625140]
      %v1796 = vld.sshfl [vmem:[#allocation1 + $0x10] sm:$0xff pattern:$0x73625140]
      %v1797 = vld.sshfl [vmem:[#allocation1 + $0x18] sm:$0xff pattern:$0x73625140]
      %v1798 = vld.sshfl [vmem:[#allocation1 + $0x20] sm:$0xff pattern:$0x73625140]
      %v1799 = vld.sshfl [vmem:[#allocation1 + $0x28] sm:$0xff pattern:$0x73625140]
      %v1800 = vld.sshfl [vmem:[#allocation1 + $0x30] sm:$0xff pattern:$0x73625140]
      %v1801 = vld.sshfl [vmem:[#allocation1 + $0x38] sm:$0xff pattern:$0x73625140]
      %v1810 = vsel %vm1694, %v1794, 0.0
      %v1811 = vsel %vm1694, %v1795, 0.0
      %v1812 = vadd.f32 %v1810, %v1811
      %v1813 = vsel %vm1694, %v1796, 0.0
      %v1814 = vadd.f32 %v1812, %v1813
      %v1815 = vsel %vm1694, %v1797, 0.0
      %v1816 = vadd.f32 %v1814, %v1815
      %v1817 = vsel %vm1694, %v1798, 0.0
      %v1818 = vadd.f32 %v1816, %v1817
      %v1819 = vsel %vm1694, %v1799, 0.0
      %v1820 = vadd.f32 %v1818, %v1819
      %v1821 = vsel %vm1694, %v1800, 0.0
      %v1822 = vadd.f32 %v1820, %v1821
      %v1823 = vsel %vm1694, %v1801, 0.0
      %v1824 = vadd.f32 %v1822, %v1823
      %1825 = vadd.xlane.f32.xlu0 %v1824
      %v1826 = vpop.xlane.xlu0 %1825
      %v1827 = vrot.slane %v1826, 4
      %v1828 = vadd.f32 %v1826, %v1827
      %v1829 = vrot.slane %v1828, 2
      %v1830 = vadd.f32 %v1828, %v1829
      %v1831 = vrot.slane %v1830, 1
      %v1832 = vadd.f32 %v1830, %v1831
      %s1833 = vtos %v1832
      %s1834 = smul.f32 %s1833, %s1786
      %s1835 = sld [smem:[#allocation4]]
      %s1836 = smul.f32 %s1835, %s1786
      %s1837 = scalar_lea.smem [#allocation19], 0
      %1838 = sst [smem:[%s1837]] %s1834
      %s1839 = scalar_lea.smem [#allocation21], 0
      %1840 = sst [smem:[%s1839]] %s1836
      %s1841 = smul.f32 %s1785, %s1836
      %s1842 = sadd.f32 %s1834, %s1841
      %s1843 = scalar_lea.smem [#allocation18], 0
      %1844 = sst [smem:[%s1843]] %s1842
    $region61: #{tpu_custom_call.1} parent=1 // pred_fallthru
      _
    // Predicated region
    $region62: #{tpu_custom_call.1} parent=1 // pred_check
      _
    $region63: #{tpu_custom_call.1} parent=1 // pred_check_branch
      %1846 = sbr.rel (0) target = $region65
    $region64: #{tpu_custom_call.1} parent=1 // pred_region
      %1848 = vsyncadd [#allocation7], 0
      %s1850 = sshll.u32 [#allocation17], 4
      %s1851 = int_to_ptr.vmem [resolvable:$true] %s1850
      %s1852 = sshll.u32 %s7, 4
      %s1853 = int_to_ptr.hbm [resolvable:$true] %s1852
      %1855 = dma.vmem_to_hbm [thread:$0]  %s1851, 128, %s1853, [#allocation7]
    $region65: #{tpu_custom_call.1} parent=1 // pred_fallthru
      _
    // Predicated region
    $region66: #{tpu_custom_call.1} parent=1 // pred_check
      _
    $region67: #{tpu_custom_call.1} parent=1 // pred_check_branch
      %1857 = sbr.rel (0) target = $region69
    $region68: #{tpu_custom_call.1} parent=1 // pred_region
      %1859 = vsyncadd [#allocation9], 0
      %s1861 = sshll.u32 %s8, 4
      %s1862 = int_to_ptr.hbm [resolvable:$true] %s1861
      %1864 = dma.smem_to_hbm [#allocation18], 16, %s1862, [#allocation9]
    $region69: #{tpu_custom_call.1} parent=1 // pred_fallthru
      _
    // Predicated region
    $region70: #{tpu_custom_call.1} parent=1 // pred_check
      _
    $region71: #{tpu_custom_call.1} parent=1 // pred_check_branch
      %1866 = sbr.rel (0) target = $region73
    $region72: #{tpu_custom_call.1} parent=1 // pred_region
      %1868 = vsyncadd [#allocation20], 0
      %s1870 = sshll.u32 %s9, 4
      %s1871 = int_to_ptr.hbm [resolvable:$true] %s1870
      %1873 = dma.smem_to_hbm [#allocation19], 16, %s1871, [#allocation20]
    $region73: #{tpu_custom_call.1} parent=1 // pred_fallthru
      _
    // Predicated region
    $region74: #{tpu_custom_call.1} parent=1 // pred_check
      _
    $region75: #{tpu_custom_call.1} parent=1 // pred_check_branch
      %1875 = sbr.rel (0) target = $region77
    $region76: #{tpu_custom_call.1} parent=1 // pred_region
      %1877 = vsyncadd [#allocation20], 0
      %s1879 = sshll.u32 %s10, 4
      %s1880 = int_to_ptr.hbm [resolvable:$true] %s1879
      %1882 = dma.smem_to_hbm [#allocation21], 16, %s1880, [#allocation20]
    $region77: #{tpu_custom_call.1} parent=1 // pred_fallthru
      _
    // Predicated region
    $region78: #{tpu_custom_call.1} parent=1 // pred_check
      _
    $region79: #{tpu_custom_call.1} parent=1 // pred_check_branch
      %1884 = sbr.rel (0) target = $region81
    $region80: #{tpu_custom_call.1} parent=1 // pred_region
      %1886 = dma.done [#allocation7], 128
    $region81: #{tpu_custom_call.1} parent=1 // pred_fallthru
      _
    // Predicated region
    $region82: #{tpu_custom_call.1} parent=1 // pred_check
      _
    $region83: #{tpu_custom_call.1} parent=1 // pred_check_branch
      %1888 = sbr.rel (0) target = $region85
    $region84: #{tpu_custom_call.1} parent=1 // pred_region
      %1890 = dma.done [#allocation9], 16
    $region85: #{tpu_custom_call.1} parent=1 // pred_fallthru
      _
    // Predicated region
    $region86: #{tpu_custom_call.1} parent=1 // pred_check
      _
    $region87: #{tpu_custom_call.1} parent=1 // pred_check_branch
      %1892 = sbr.rel (0) target = $region89
    $region88: #{tpu_custom_call.1} parent=1 // pred_region
      %1894 = dma.done [#allocation20], 16
    $region89: #{tpu_custom_call.1} parent=1 // pred_fallthru
      _
    // Predicated region
    $region90: #{tpu_custom_call.1} parent=1 // pred_check
      _
    $region91: #{tpu_custom_call.1} parent=1 // pred_check_branch
      %1896 = sbr.rel (0) target = $region93
    $region92: #{tpu_custom_call.1} parent=1 // pred_region
      %1898 = dma.done [#allocation20], 16
    $region93: #{tpu_custom_call.1} parent=1 // pred_fallthru
      _
    %1899 = sfence
    %1900 = vsyncpa [#allocation6], 1
    %1901 = vsyncpa [#allocation12], 1
    %1902 = vsyncpa [#allocation15], 1
    %1903 = vsyncpa [#allocation7], 1
    %1904 = vsyncpa [#allocation8], 1
    %1905 = vsyncpa [#allocation9], 1
    %1906 = vsyncpa [#allocation20], 1

</llo_original>
